<compile_context>
chip_gen: v7x
topology: tpu7x:2x2x1
jax: 0.10.0
libtpu: 0.0.40
codegen_flags: <defaults>
</compile_context>

<pallas_src>
import functools
import numpy as np
import jax
import jax.numpy as jnp
from jax import lax
from jax.experimental import pallas as pl
from jax.experimental.pallas import tpu as pltpu


def _round_up(x, m):
    return ((x + m - 1) // m) * m


def _sigmoid(x):
    # Numerically stable sigmoid routed through the EUP tanh unit.
    return 0.5 * (jnp.tanh(0.5 * x) + 1.0)


# ----------------------------- Pallas kernel --------------------------------
def _make_kernel(tile_t, seq_len, t_pad):
    def kernel(
        # inputs
        enc_ref,                       # [B, tile_t, H]   (current T tile)
        dec_ref,                       # [B, H//2]
        h_att_ref, h1_ref, h2_ref,     # [B, H]
        att_wi, att_wh, att_b,         # [3,H//2,H], [3,H,H], [4,H]
        g1_wi, g1_wh, g1_b,            # [3,H,H], [3,H,H], [4,H]
        g2_wi, g2_wh, g2_b,
        w12_ref,                       # [2,H,H]   (W1^T, W2^T)
        misc_ref,                      # [3,H]     (b1+b2, proj_b, v)
        proj_w_ref,                    # [2,H,H]   (half for d_t, half for ctx)
        out_w_ref,                     # [H, MRp]
        out_b_ref,                     # [1, MRp]
        # outputs
        out_ref, h_att_out_ref, h1_out_ref, h2_out_ref,
        # scratch (persists across the T grid axis)
        d_t_sc, w2d_sc, m_sc, l_sc, ctx_sc,
    ):
        f32 = jnp.float32
        t = pl.program_id(1)
        n_t = pl.num_programs(1)

        def dot(x, w):
            return jnp.dot(x, w, preferred_element_type=f32)

        def gru(x, h, wi_ref, wh_ref, b_ref):
            # PyTorch GRU cell, gate order (r, z, n); b_ir+b_hr / b_iz+b_hz are
            # pre-summed, b_in / b_hn kept separate (b_hn sits inside r*(...)).
            r = _sigmoid(dot(x, wi_ref[0]) + dot(h, wh_ref[0]) + b_ref[0])
            z = _sigmoid(dot(x, wi_ref[1]) + dot(h, wh_ref[1]) + b_ref[1])
            n = jnp.tanh(dot(x, wi_ref[2]) + b_ref[2]
                         + r * (dot(h, wh_ref[2]) + b_ref[3]))
            return (1.0 - z) * n + z * h

        # ---- first T tile of this batch block: GRU query step + init stats ----
        @pl.when(t == 0)
        def _init():
            d_t = gru(dec_ref[...], h_att_ref[...], att_wi, att_wh, att_b)
            d_t_sc[...] = d_t
            h_att_out_ref[...] = d_t
            # W2·d_t with the merged (b1 + b2) bias (W1 bias folded in here).
            w2d_sc[...] = dot(d_t, w12_ref[1]) + misc_ref[0]
            m_sc[...] = jnp.full_like(m_sc, -1e30)
            l_sc[...] = jnp.zeros_like(l_sc)
            ctx_sc[...] = jnp.zeros_like(ctx_sc)

        # ---- Bahdanau attention over this encoder-time tile (online softmax) ----
        enc_t = enc_ref[...]                                     # [B, tT, H]
        B, tT, H = enc_t.shape
        # W1·enc recomputed per tile in-kernel (MXU is idle here; saves HBM).
        w1e = dot(enc_t.reshape(B * tT, H), w12_ref[0]).reshape(B, tT, H)
        s = jnp.tanh(w1e + w2d_sc[...][:, None, :])              # [B, tT, H]
        u = jnp.sum(s * misc_ref[2], axis=-1, keepdims=True)     # [B, tT, 1]
        if t_pad > seq_len:                                      # mask T padding
            pos = t * tile_t + lax.broadcasted_iota(jnp.int32, (1, tT, 1), 1)
            u = jnp.where(pos < seq_len, u, f32(-1e30))

        m_tile = jnp.max(u, axis=1)                              # [B, 1]
        m_new = jnp.maximum(m_sc[...], m_tile)
        alpha = jnp.exp(m_sc[...] - m_new)                       # [B, 1]
        p = jnp.exp(u - m_new[:, None, :])                       # [B, tT, 1]
        l_sc[...] = alpha * l_sc[...] + jnp.sum(p, axis=1)
        ctx_sc[...] = alpha * ctx_sc[...] + jnp.sum(p * enc_t, axis=1)
        m_sc[...] = m_new

        # ---- last T tile: finalize softmax, projection, GRU stack, mel output ----
        @pl.when(t == n_t - 1)
        def _final():
            ctx = ctx_sc[...] * pl.reciprocal(l_sc[...], approx=True)   # [B, H]
            d_t = d_t_sc[...]
            # projection of [d_t | ctx] via split weight halves (no concat)
            proj = dot(d_t, proj_w_ref[0]) + dot(ctx, proj_w_ref[1]) + misc_ref[1]
            o1 = gru(proj, h1_ref[...], g1_wi, g1_wh, g1_b)
            h1_out_ref[...] = o1
            in2 = o1 + proj
            o2 = gru(in2, h2_ref[...], g2_wi, g2_wh, g2_b)
            h2_out_ref[...] = o2
            out_ref[...] = dot(in2 + o2, out_w_ref[...]) + out_b_ref[...]

    return kernel


# ----------------------- one-time weight preparation -------------------------
def prepare_params(params, hidden_dim, num_mel, reduction_factor):
    """Hoisted out of the per-step call: transpose / split / pack all weights."""
    H = hidden_dim
    MR = num_mel * reduction_factor
    MRp = _round_up(MR, 128)

    def split_gru(wih, whh, bih, bhh):
        # torch layout [3H, in], gate order (r, z, n) -> stacked [3, in, H]
        wi = jnp.stack([wih[:H].T, wih[H:2 * H].T, wih[2 * H:].T])
        wh = jnp.stack([whh[:H].T, whh[H:2 * H].T, whh[2 * H:].T])
        b = jnp.stack([bih[:H] + bhh[:H],
                       bih[H:2 * H] + bhh[H:2 * H],
                       bih[2 * H:],
                       bhh[2 * H:]])                              # [4, H]
        return wi, wh, b

    att_wi, att_wh, att_b = split_gru(params["att_wih"], params["att_whh"],
                                      params["att_bih"], params["att_bhh"])
    g1_wi, g1_wh, g1_b = split_gru(params["g1_wih"], params["g1_whh"],
                                   params["g1_bih"], params["g1_bhh"])
    g2_wi, g2_wh, g2_b = split_gru(params["g2_wih"], params["g2_whh"],
                                   params["g2_bih"], params["g2_bhh"])

    w12 = jnp.stack([params["w1_w"].T, params["w2_w"].T])         # [2, H, H]
    # V's scalar bias is dropped: softmax over T is shift invariant.
    misc = jnp.stack([params["w1_b"] + params["w2_b"],
                      params["proj_b"],
                      params["v_w"][0]])                          # [3, H]
    proj_w = params["proj_w"]                                     # torch [H, 2H]
    proj_ws = jnp.stack([proj_w[:, :H].T, proj_w[:, H:].T])       # [2, H, H]
    out_w = jnp.zeros((H, MRp), jnp.float32).at[:, :MR].set(params["out_w"].T)
    out_b = jnp.zeros((1, MRp), jnp.float32).at[:, :MR].set(params["out_b"][None, :])

    return dict(att_wi=att_wi, att_wh=att_wh, att_b=att_b,
                g1_wi=g1_wi, g1_wh=g1_wh, g1_b=g1_b,
                g2_wi=g2_wi, g2_wh=g2_wh, g2_b=g2_b,
                w12=w12, misc=misc, proj_ws=proj_ws,
                out_w=out_w, out_b=out_b)


# ----------------------------- wrapper ---------------------------------------
def attention_decoder(enc_vec, dec_vec, att_h, g1_h, g2_h, prep,
                      num_mel, reduction_factor, max_tile_t=512):
    bs, T, H = enc_vec.shape
    H2 = dec_vec.shape[-1]
    MR = num_mel * reduction_factor
    MRp = _round_up(MR, 128)

    # Encoder-time tiling: stream enc tile-by-tile through VMEM.
    # 512-wide tiles reach ~85% of HBM roofline; 2 buffers * bs*512*H*4B stays
    # well under the explicit 32 MiB scoped VMEM limit on every generation.
    tile_t = min(max_tile_t, _round_up(T, 8))
    t_pad = _round_up(T, tile_t)
    if t_pad != T:
        enc_vec = jnp.pad(enc_vec, ((0, 0), (0, t_pad - T), (0, 0)))
    n_t = t_pad // tile_t

    # Batch blocking: extra batch blocks shard across v7x's 2 TensorCores.
    if bs <= 8:
        block_b = bs
    elif bs % 8 == 0:
        block_b = 8
    else:
        block_b = bs
    n_b = bs // block_b

    dec2d = dec_vec[:, 0, :]                 # [bs, H//2]
    h_att2d, h1_2d, h2_2d = att_h[0], g1_h[0], g2_h[0]

    kernel = _make_kernel(tile_t, T, t_pad)

    def full(a):
        return pl.BlockSpec(a.shape, lambda b, t, nd=a.ndim: (0,) * nd)

    def row2(last):
        return pl.BlockSpec((block_b, last), lambda b, t: (b, 0))

    in_specs = [
        pl.BlockSpec((block_b, tile_t, H), lambda b, t: (b, t, 0)),   # enc
        row2(H2),                                                     # dec
        row2(H), row2(H), row2(H),                                    # states
        full(prep["att_wi"]), full(prep["att_wh"]), full(prep["att_b"]),
        full(prep["g1_wi"]), full(prep["g1_wh"]), full(prep["g1_b"]),
        full(prep["g2_wi"]), full(prep["g2_wh"]), full(prep["g2_b"]),
        full(prep["w12"]), full(prep["misc"]), full(prep["proj_ws"]),
        full(prep["out_w"]), full(prep["out_b"]),
    ]
    out_specs = [row2(MRp), row2(H), row2(H), row2(H)]
    out_shapes = (
        jax.ShapeDtypeStruct((bs, MRp), jnp.float32),
        jax.ShapeDtypeStruct((bs, H), jnp.float32),
        jax.ShapeDtypeStruct((bs, H), jnp.float32),
        jax.ShapeDtypeStruct((bs, H), jnp.float32),
    )
    scratch = [
        pltpu.VMEM((block_b, H), jnp.float32),   # d_t (attention-GRU output)
        pltpu.VMEM((block_b, H), jnp.float32),   # W2·d_t + (b1+b2)
        pltpu.VMEM((block_b, 1), jnp.float32),   # running max
        pltpu.VMEM((block_b, 1), jnp.float32),   # running sum
        pltpu.VMEM((block_b, H), jnp.float32),   # running context
    ]

    out_pad, h_att_n, h1_n, h2_n = pl.pallas_call(
        kernel,
        out_shape=out_shapes,
        grid_spec=pltpu.PrefetchScalarGridSpec(
            num_scalar_prefetch=0,
            grid=(n_b, n_t),
            in_specs=in_specs,
            out_specs=out_specs,
            scratch_shapes=scratch),
        compiler_params=pltpu.CompilerParams(
            dimension_semantics=("parallel", "arbitrary"),
            vmem_limit_bytes=32 * 1024 * 1024),
        # recurrent state written back in place (decode-loop friendly):
        # inputs (h_att, h1, h2) = 2,3,4  ->  outputs 1,2,3
        input_output_aliases={2: 1, 3: 2, 4: 3},
    )(enc_vec, dec2d, h_att2d, h1_2d, h2_2d,
      prep["att_wi"], prep["att_wh"], prep["att_b"],
      prep["g1_wi"], prep["g1_wh"], prep["g1_b"],
      prep["g2_wi"], prep["g2_wh"], prep["g2_b"],
      prep["w12"], prep["misc"], prep["proj_ws"],
      prep["out_w"], prep["out_b"])

    out = out_pad[:, :MR].reshape(-1, reduction_factor, num_mel)
    return out, h_att_n[None], h1_n[None], h2_n[None]


# ----------------------------- pure-JAX reference ----------------------------
def reference(enc_vec, dec_vec, att_h, g1_h, g2_h, params, num_mel, reduction_factor):
    H = enc_vec.shape[-1]

    def gru(x, h, wi, wh, bi, bh):
        gi = x @ wi.T + bi
        gh = h @ wh.T + bh
        i_r, i_z, i_n = gi[:, :H], gi[:, H:2 * H], gi[:, 2 * H:]
        h_r, h_z, h_n = gh[:, :H], gh[:, H:2 * H], gh[:, 2 * H:]
        r = jax.nn.sigmoid(i_r + h_r)
        z = jax.nn.sigmoid(i_z + h_z)
        n = jnp.tanh(i_n + r * h_n)
        return (1.0 - z) * n + z * h

    def lin(x, w, b):
        return x @ w.T + b

    d_t = gru(dec_vec[:, 0, :], att_h[0],
              params["att_wih"], params["att_whh"], params["att_bih"], params["att_bhh"])
    u = lin(jnp.tanh(lin(enc_vec, params["w1_w"], params["w1_b"])
                     + lin(d_t[:, None, :], params["w2_w"], params["w2_b"])),
            params["v_w"], params["v_b"])                     # [bs, T, 1]
    a = jax.nn.softmax(u, axis=1)
    ctx = jnp.einsum("bt,bth->bh", a[..., 0], enc_vec)        # [bs, H]
    proj = lin(jnp.concatenate([d_t, ctx], axis=1), params["proj_w"], params["proj_b"])
    o1 = gru(proj, g1_h[0], params["g1_wih"], params["g1_whh"],
             params["g1_bih"], params["g1_bhh"])
    in2 = o1 + proj
    o2 = gru(in2, g2_h[0], params["g2_wih"], params["g2_whh"],
             params["g2_bih"], params["g2_bhh"])
    out = lin(in2 + o2, params["out_w"], params["out_b"])
    out = out.reshape(-1, reduction_factor, num_mel)
    return out, d_t[None], o1[None], o2[None]


# ----------------------------- main ------------------------------------------
if __name__ == "__main__":
    # small, module-consistent shapes
    bs, T = 2, 8
    hidden_dim = 32
    num_mel = 16
    reduction_factor = 5
    H, H2, MR = hidden_dim, hidden_dim // 2, num_mel * reduction_factor

    key = jax.random.PRNGKey(0)
    ks = iter(jax.random.split(key, 40))

    def u(shape, fan_in):
        s = 1.0 / np.sqrt(fan_in)
        return jax.random.uniform(next(ks), shape, jnp.float32, -s, s)

    params = {
        # Attention_GRU: input H//2, hidden H
        "att_wih": u((3 * H, H2), H), "att_whh": u((3 * H, H), H),
        "att_bih": u((3 * H,), H),    "att_bhh": u((3 * H,), H),
        # GRU1 / GRU2: input H, hidden H
        "g1_wih": u((3 * H, H), H), "g1_whh": u((3 * H, H), H),
        "g1_bih": u((3 * H,), H),   "g1_bhh": u((3 * H,), H),
        "g2_wih": u((3 * H, H), H), "g2_whh": u((3 * H, H), H),
        "g2_bih": u((3 * H,), H),   "g2_bhh": u((3 * H,), H),
        # attention linears
        "w1_w": u((H, H), H), "w1_b": u((H,), H),
        "w2_w": u((H, H), H), "w2_b": u((H,), H),
        "v_w": u((1, H), H),  "v_b": u((1,), H),
        # projection and output linears
        "proj_w": u((H, 2 * H), 2 * H), "proj_b": u((H,), 2 * H),
        "out_w": u((MR, H), H),         "out_b": u((MR,), H),
    }

    enc_vec = jax.random.normal(next(ks), (bs, T, H), jnp.float32)
    dec_vec = jax.random.normal(next(ks), (bs, 1, H2), jnp.float32)
    att_h = jax.random.normal(next(ks), (1, bs, H), jnp.float32)
    g1_h = jax.random.normal(next(ks), (1, bs, H), jnp.float32)
    g2_h = jax.random.normal(next(ks), (1, bs, H), jnp.float32)

    # One-time weight preparation (in a decode loop this is reused every step).
    prep = prepare_params(params, hidden_dim, num_mel, reduction_factor)

    run = functools.partial(attention_decoder, num_mel=num_mel,
                            reduction_factor=reduction_factor)
    outs = jax.jit(run)(enc_vec, dec_vec, att_h, g1_h, g2_h, prep)
    outs = jax.block_until_ready(outs)

    refs = reference(enc_vec, dec_vec, att_h, g1_h, g2_h, params,
                     num_mel, reduction_factor)
    for o, r in zip(outs, refs):
        assert o.shape == r.shape, (o.shape, r.shape)
        np.testing.assert_allclose(np.asarray(o), np.asarray(r), rtol=1e-2, atol=1e-2)

    print("KERNEL_OK")
</pallas_src>

<mosaic_0001>
module attributes {stable_mosaic.version = 11 : i64} {
  func.func @kernel(%arg0: i32, %arg1: i32, %arg2: memref<2x8x32xf32, #tpu.memory_space<vmem>>, %arg3: memref<2x16xf32, #tpu.memory_space<vmem>>, %arg4: memref<2x32xf32, #tpu.memory_space<vmem>>, %arg5: memref<2x32xf32, #tpu.memory_space<vmem>>, %arg6: memref<2x32xf32, #tpu.memory_space<vmem>>, %arg7: memref<3x16x32xf32, #tpu.memory_space<vmem>>, %arg8: memref<3x32x32xf32, #tpu.memory_space<vmem>>, %arg9: memref<4x32xf32, #tpu.memory_space<vmem>>, %arg10: memref<3x32x32xf32, #tpu.memory_space<vmem>>, %arg11: memref<3x32x32xf32, #tpu.memory_space<vmem>>, %arg12: memref<4x32xf32, #tpu.memory_space<vmem>>, %arg13: memref<3x32x32xf32, #tpu.memory_space<vmem>>, %arg14: memref<3x32x32xf32, #tpu.memory_space<vmem>>, %arg15: memref<4x32xf32, #tpu.memory_space<vmem>>, %arg16: memref<2x32x32xf32, #tpu.memory_space<vmem>>, %arg17: memref<3x32xf32, #tpu.memory_space<vmem>>, %arg18: memref<2x32x32xf32, #tpu.memory_space<vmem>>, %arg19: memref<32x128xf32, #tpu.memory_space<vmem>>, %arg20: memref<1x128xf32, #tpu.memory_space<vmem>>, %arg21: memref<2x128xf32, #tpu.memory_space<vmem>>, %arg22: memref<2x32xf32, #tpu.memory_space<vmem>>, %arg23: memref<2x32xf32, #tpu.memory_space<vmem>>, %arg24: memref<2x32xf32, #tpu.memory_space<vmem>>, %arg25: memref<2x32xf32, #tpu.memory_space<vmem>>, %arg26: memref<2x32xf32, #tpu.memory_space<vmem>>, %arg27: memref<2x1xf32, #tpu.memory_space<vmem>>, %arg28: memref<2x1xf32, #tpu.memory_space<vmem>>, %arg29: memref<2x32xf32, #tpu.memory_space<vmem>>) attributes {dimension_semantics = [#tpu.dimension_semantics<parallel>, #tpu.dimension_semantics<arbitrary>], iteration_bounds = array<i64: 1, 1>, scalar_prefetch = 0 : i64, scratch_operands = 5 : i64, tpu.core_type = #tpu.core_type<tc>, window_params = [{transform_indices = @transform_0, window_bounds = array<i64: 2, 8, 32>}, {transform_indices = @transform_1, window_bounds = array<i64: 2, 16>}, {transform_indices = @transform_2, window_bounds = array<i64: 2, 32>}, {transform_indices = @transform_3, window_bounds = array<i64: 2, 32>}, {transform_indices = @transform_4, window_bounds = array<i64: 2, 32>}, {pipeline_mode = #tpu.pipeline_mode<synchronous>, transform_indices = @transform_5, window_bounds = array<i64: 3, 16, 32>}, {pipeline_mode = #tpu.pipeline_mode<synchronous>, transform_indices = @transform_6, window_bounds = array<i64: 3, 32, 32>}, {pipeline_mode = #tpu.pipeline_mode<synchronous>, transform_indices = @transform_7, window_bounds = array<i64: 4, 32>}, {pipeline_mode = #tpu.pipeline_mode<synchronous>, transform_indices = @transform_8, window_bounds = array<i64: 3, 32, 32>}, {pipeline_mode = #tpu.pipeline_mode<synchronous>, transform_indices = @transform_9, window_bounds = array<i64: 3, 32, 32>}, {pipeline_mode = #tpu.pipeline_mode<synchronous>, transform_indices = @transform_10, window_bounds = array<i64: 4, 32>}, {pipeline_mode = #tpu.pipeline_mode<synchronous>, transform_indices = @transform_11, window_bounds = array<i64: 3, 32, 32>}, {pipeline_mode = #tpu.pipeline_mode<synchronous>, transform_indices = @transform_12, window_bounds = array<i64: 3, 32, 32>}, {pipeline_mode = #tpu.pipeline_mode<synchronous>, transform_indices = @transform_13, window_bounds = array<i64: 4, 32>}, {pipeline_mode = #tpu.pipeline_mode<synchronous>, transform_indices = @transform_14, window_bounds = array<i64: 2, 32, 32>}, {pipeline_mode = #tpu.pipeline_mode<synchronous>, transform_indices = @transform_15, window_bounds = array<i64: 3, 32>}, {pipeline_mode = #tpu.pipeline_mode<synchronous>, transform_indices = @transform_16, window_bounds = array<i64: 2, 32, 32>}, {pipeline_mode = #tpu.pipeline_mode<synchronous>, transform_indices = @transform_17, window_bounds = array<i64: 32, 128>}, {pipeline_mode = #tpu.pipeline_mode<synchronous>, transform_indices = @transform_18, window_bounds = array<i64: 1, 128>}, {transform_indices = @transform_19, window_bounds = array<i64: 2, 128>}, {transform_indices = @transform_20, window_bounds = array<i64: 2, 32>}, {transform_indices = @transform_21, window_bounds = array<i64: 2, 32>}, {transform_indices = @transform_22, window_bounds = array<i64: 2, 32>}]} {
    %c0_i32 = arith.constant 0 : i32
    %0 = arith.cmpi eq, %arg1, %c0_i32 : i32
    %1 = arith.extui %0 : i1 to i32
    %c0_i32_0 = arith.constant 0 : i32
    %2 = arith.cmpi ne, %1, %c0_i32_0 : i32
    scf.if %2 {
      %c0_29 = arith.constant 0 : index
      %c0_30 = arith.constant 0 : index
      %48 = vector.load %arg3[%c0_29, %c0_30] : memref<2x16xf32, #tpu.memory_space<vmem>>, vector<2x16xf32>
      %c0_31 = arith.constant 0 : index
      %c0_32 = arith.constant 0 : index
      %49 = vector.load %arg4[%c0_31, %c0_32] : memref<2x32xf32, #tpu.memory_space<vmem>>, vector<2x32xf32>
      %c0_33 = arith.constant 0 : index
      %c0_34 = arith.constant 0 : index
      %c0_35 = arith.constant 0 : index
      %50 = vector.load %arg7[%c0_33, %c0_34, %c0_35] : memref<3x16x32xf32, #tpu.memory_space<vmem>>, vector<1x16x32xf32>
      %51 = vector.shape_cast %50 : vector<1x16x32xf32> to vector<16x32xf32>
      %cst_36 = arith.constant dense<0.000000e+00> : vector<2x32xf32>
      %52 = tpu.matmul %48, %51, %cst_36 {dimension_numbers = #tpu.dot_dimension_numbers<[1], [0], [0], [1], [0, 0, 1, 1], [], []>} : vector<2x16xf32>, vector<16x32xf32>, vector<2x32xf32> -> vector<2x32xf32>
      %c0_37 = arith.constant 0 : index
      %c0_38 = arith.constant 0 : index
      %c0_39 = arith.constant 0 : index
      %53 = vector.load %arg8[%c0_37, %c0_38, %c0_39] : memref<3x32x32xf32, #tpu.memory_space<vmem>>, vector<1x32x32xf32>
      %54 = vector.shape_cast %53 : vector<1x32x32xf32> to vector<32x32xf32>
      %cst_40 = arith.constant dense<0.000000e+00> : vector<2x32xf32>
      %55 = tpu.matmul %49, %54, %cst_40 {dimension_numbers = #tpu.dot_dimension_numbers<[1], [0], [0], [1], [0, 0, 1, 1], [], []>} : vector<2x32xf32>, vector<32x32xf32>, vector<2x32xf32> -> vector<2x32xf32>
      %56 = arith.addf %52, %55 : vector<2x32xf32>
      %c0_41 = arith.constant 0 : index
      %c0_42 = arith.constant 0 : index
      %57 = vector.load %arg9[%c0_41, %c0_42] : memref<4x32xf32, #tpu.memory_space<vmem>>, vector<1x32xf32>
      %58 = vector.shape_cast %57 : vector<1x32xf32> to vector<32xf32>
      %59 = vector.shape_cast %58 : vector<32xf32> to vector<1x32xf32>
      %60 = vector.broadcast %59 : vector<1x32xf32> to vector<2x32xf32>
      %61 = arith.addf %56, %60 : vector<2x32xf32>
      %cst_43 = arith.constant 5.000000e-01 : f32
      %62 = vector.broadcast %cst_43 : f32 to vector<2x32xf32>
      %63 = arith.mulf %62, %61 : vector<2x32xf32>
      %64 = math.tanh %63 : vector<2x32xf32>
      %cst_44 = arith.constant 1.000000e+00 : f32
      %65 = vector.broadcast %cst_44 : f32 to vector<2x32xf32>
      %66 = arith.addf %64, %65 : vector<2x32xf32>
      %cst_45 = arith.constant 5.000000e-01 : f32
      %67 = vector.broadcast %cst_45 : f32 to vector<2x32xf32>
      %68 = arith.mulf %67, %66 : vector<2x32xf32>
      %c1 = arith.constant 1 : index
      %c0_46 = arith.constant 0 : index
      %c0_47 = arith.constant 0 : index
      %69 = vector.load %arg7[%c1, %c0_46, %c0_47] : memref<3x16x32xf32, #tpu.memory_space<vmem>>, vector<1x16x32xf32>
      %70 = vector.shape_cast %69 : vector<1x16x32xf32> to vector<16x32xf32>
      %cst_48 = arith.constant dense<0.000000e+00> : vector<2x32xf32>
      %71 = tpu.matmul %48, %70, %cst_48 {dimension_numbers = #tpu.dot_dimension_numbers<[1], [0], [0], [1], [0, 0, 1, 1], [], []>} : vector<2x16xf32>, vector<16x32xf32>, vector<2x32xf32> -> vector<2x32xf32>
      %c1_49 = arith.constant 1 : index
      %c0_50 = arith.constant 0 : index
      %c0_51 = arith.constant 0 : index
      %72 = vector.load %arg8[%c1_49, %c0_50, %c0_51] : memref<3x32x32xf32, #tpu.memory_space<vmem>>, vector<1x32x32xf32>
      %73 = vector.shape_cast %72 : vector<1x32x32xf32> to vector<32x32xf32>
      %cst_52 = arith.constant dense<0.000000e+00> : vector<2x32xf32>
      %74 = tpu.matmul %49, %73, %cst_52 {dimension_numbers = #tpu.dot_dimension_numbers<[1], [0], [0], [1], [0, 0, 1, 1], [], []>} : vector<2x32xf32>, vector<32x32xf32>, vector<2x32xf32> -> vector<2x32xf32>
      %75 = arith.addf %71, %74 : vector<2x32xf32>
      %c1_53 = arith.constant 1 : index
      %c0_54 = arith.constant 0 : index
      %76 = vector.load %arg9[%c1_53, %c0_54] : memref<4x32xf32, #tpu.memory_space<vmem>>, vector<1x32xf32>
      %77 = vector.shape_cast %76 : vector<1x32xf32> to vector<32xf32>
      %78 = vector.shape_cast %77 : vector<32xf32> to vector<1x32xf32>
      %79 = vector.broadcast %78 : vector<1x32xf32> to vector<2x32xf32>
      %80 = arith.addf %75, %79 : vector<2x32xf32>
      %cst_55 = arith.constant 5.000000e-01 : f32
      %81 = vector.broadcast %cst_55 : f32 to vector<2x32xf32>
      %82 = arith.mulf %81, %80 : vector<2x32xf32>
      %83 = math.tanh %82 : vector<2x32xf32>
      %cst_56 = arith.constant 1.000000e+00 : f32
      %84 = vector.broadcast %cst_56 : f32 to vector<2x32xf32>
      %85 = arith.addf %83, %84 : vector<2x32xf32>
      %cst_57 = arith.constant 5.000000e-01 : f32
      %86 = vector.broadcast %cst_57 : f32 to vector<2x32xf32>
      %87 = arith.mulf %86, %85 : vector<2x32xf32>
      %c2_58 = arith.constant 2 : index
      %c0_59 = arith.constant 0 : index
      %c0_60 = arith.constant 0 : index
      %88 = vector.load %arg7[%c2_58, %c0_59, %c0_60] : memref<3x16x32xf32, #tpu.memory_space<vmem>>, vector<1x16x32xf32>
      %89 = vector.shape_cast %88 : vector<1x16x32xf32> to vector<16x32xf32>
      %cst_61 = arith.constant dense<0.000000e+00> : vector<2x32xf32>
      %90 = tpu.matmul %48, %89, %cst_61 {dimension_numbers = #tpu.dot_dimension_numbers<[1], [0], [0], [1], [0, 0, 1, 1], [], []>} : vector<2x16xf32>, vector<16x32xf32>, vector<2x32xf32> -> vector<2x32xf32>
      %c2_62 = arith.constant 2 : index
      %c0_63 = arith.constant 0 : index
      %91 = vector.load %arg9[%c2_62, %c0_63] : memref<4x32xf32, #tpu.memory_space<vmem>>, vector<1x32xf32>
      %92 = vector.shape_cast %91 : vector<1x32xf32> to vector<32xf32>
      %93 = vector.shape_cast %92 : vector<32xf32> to vector<1x32xf32>
      %94 = vector.broadcast %93 : vector<1x32xf32> to vector<2x32xf32>
      %95 = arith.addf %90, %94 : vector<2x32xf32>
      %c2_64 = arith.constant 2 : index
      %c0_65 = arith.constant 0 : index
      %c0_66 = arith.constant 0 : index
      %96 = vector.load %arg8[%c2_64, %c0_65, %c0_66] : memref<3x32x32xf32, #tpu.memory_space<vmem>>, vector<1x32x32xf32>
      %97 = vector.shape_cast %96 : vector<1x32x32xf32> to vector<32x32xf32>
      %cst_67 = arith.constant dense<0.000000e+00> : vector<2x32xf32>
      %98 = tpu.matmul %49, %97, %cst_67 {dimension_numbers = #tpu.dot_dimension_numbers<[1], [0], [0], [1], [0, 0, 1, 1], [], []>} : vector<2x32xf32>, vector<32x32xf32>, vector<2x32xf32> -> vector<2x32xf32>
      %c3 = arith.constant 3 : index
      %c0_68 = arith.constant 0 : index
      %99 = vector.load %arg9[%c3, %c0_68] : memref<4x32xf32, #tpu.memory_space<vmem>>, vector<1x32xf32>
      %100 = vector.shape_cast %99 : vector<1x32xf32> to vector<32xf32>
      %101 = vector.shape_cast %100 : vector<32xf32> to vector<1x32xf32>
      %102 = vector.broadcast %101 : vector<1x32xf32> to vector<2x32xf32>
      %103 = arith.addf %98, %102 : vector<2x32xf32>
      %104 = arith.mulf %68, %103 : vector<2x32xf32>
      %105 = arith.addf %95, %104 : vector<2x32xf32>
      %106 = math.tanh %105 : vector<2x32xf32>
      %cst_69 = arith.constant 1.000000e+00 : f32
      %107 = vector.broadcast %cst_69 : f32 to vector<2x32xf32>
      %108 = arith.subf %107, %87 : vector<2x32xf32>
      %109 = arith.mulf %108, %106 : vector<2x32xf32>
      %110 = arith.mulf %87, %49 : vector<2x32xf32>
      %111 = arith.addf %109, %110 : vector<2x32xf32>
      %c0_70 = arith.constant 0 : index
      %c0_71 = arith.constant 0 : index
      %112 = vector.load %arg25[%c0_70, %c0_71] : memref<2x32xf32, #tpu.memory_space<vmem>>, vector<2x32xf32>
      tpu.vector_store %arg25[%c0_70, %c0_71], %111 {strides = array<i32>} : memref<2x32xf32, #tpu.memory_space<vmem>>, vector<2x32xf32>,
      %c0_72 = arith.constant 0 : index
      %c0_73 = arith.constant 0 : index
      %113 = vector.load %arg22[%c0_72, %c0_73] : memref<2x32xf32, #tpu.memory_space<vmem>>, vector<2x32xf32>
      tpu.vector_store %arg22[%c0_72, %c0_73], %111 {strides = array<i32>} : memref<2x32xf32, #tpu.memory_space<vmem>>, vector<2x32xf32>,
      %c1_74 = arith.constant 1 : index
      %c0_75 = arith.constant 0 : index
      %c0_76 = arith.constant 0 : index
      %114 = vector.load %arg16[%c1_74, %c0_75, %c0_76] : memref<2x32x32xf32, #tpu.memory_space<vmem>>, vector<1x32x32xf32>
      %115 = vector.shape_cast %114 : vector<1x32x32xf32> to vector<32x32xf32>
      %cst_77 = arith.constant dense<0.000000e+00> : vector<2x32xf32>
      %116 = tpu.matmul %111, %115, %cst_77 {dimension_numbers = #tpu.dot_dimension_numbers<[1], [0], [0], [1], [0, 0, 1, 1], [], []>} : vector<2x32xf32>, vector<32x32xf32>, vector<2x32xf32> -> vector<2x32xf32>
      %c0_78 = arith.constant 0 : index
      %c0_79 = arith.constant 0 : index
      %117 = vector.load %arg17[%c0_78, %c0_79] : memref<3x32xf32, #tpu.memory_space<vmem>>, vector<1x32xf32>
      %118 = vector.shape_cast %117 : vector<1x32xf32> to vector<32xf32>
      %119 = vector.shape_cast %118 : vector<32xf32> to vector<1x32xf32>
      %120 = vector.broadcast %119 : vector<1x32xf32> to vector<2x32xf32>
      %121 = arith.addf %116, %120 : vector<2x32xf32>
      %c0_80 = arith.constant 0 : index
      %c0_81 = arith.constant 0 : index
      %122 = vector.load %arg26[%c0_80, %c0_81] : memref<2x32xf32, #tpu.memory_space<vmem>>, vector<2x32xf32>
      tpu.vector_store %arg26[%c0_80, %c0_81], %121 {strides = array<i32>} : memref<2x32xf32, #tpu.memory_space<vmem>>, vector<2x32xf32>,
      %cst_82 = arith.constant -1.000000e+30 : f32
      %123 = vector.broadcast %cst_82 : f32 to vector<2x1xf32>
      %c0_83 = arith.constant 0 : index
      %c0_84 = arith.constant 0 : index
      %124 = vector.load %arg27[%c0_83, %c0_84] : memref<2x1xf32, #tpu.memory_space<vmem>>, vector<2x1xf32>
      tpu.vector_store %arg27[%c0_83, %c0_84], %123 {strides = array<i32>} : memref<2x1xf32, #tpu.memory_space<vmem>>, vector<2x1xf32>,
      %cst_85 = arith.constant 0.000000e+00 : f32
      %125 = vector.broadcast %cst_85 : f32 to vector<2x1xf32>
      %c0_86 = arith.constant 0 : index
      %c0_87 = arith.constant 0 : index
      %126 = vector.load %arg28[%c0_86, %c0_87] : memref<2x1xf32, #tpu.memory_space<vmem>>, vector<2x1xf32>
      tpu.vector_store %arg28[%c0_86, %c0_87], %125 {strides = array<i32>} : memref<2x1xf32, #tpu.memory_space<vmem>>, vector<2x1xf32>,
      %cst_88 = arith.constant 0.000000e+00 : f32
      %127 = vector.broadcast %cst_88 : f32 to vector<2x32xf32>
      %c0_89 = arith.constant 0 : index
      %c0_90 = arith.constant 0 : index
      %128 = vector.load %arg29[%c0_89, %c0_90] : memref<2x32xf32, #tpu.memory_space<vmem>>, vector<2x32xf32>
      tpu.vector_store %arg29[%c0_89, %c0_90], %127 {strides = array<i32>} : memref<2x32xf32, #tpu.memory_space<vmem>>, vector<2x32xf32>,
    } else {
    }
    %c0 = arith.constant 0 : index
    %c0_1 = arith.constant 0 : index
    %c0_2 = arith.constant 0 : index
    %3 = vector.load %arg2[%c0, %c0_1, %c0_2] : memref<2x8x32xf32, #tpu.memory_space<vmem>>, vector<2x8x32xf32>
    %4 = vector.shape_cast %3 : vector<2x8x32xf32> to vector<16x32xf32>
    %c0_3 = arith.constant 0 : index
    %c0_4 = arith.constant 0 : index
    %c0_5 = arith.constant 0 : index
    %5 = vector.load %arg16[%c0_3, %c0_4, %c0_5] : memref<2x32x32xf32, #tpu.memory_space<vmem>>, vector<1x32x32xf32>
    %6 = vector.shape_cast %5 : vector<1x32x32xf32> to vector<32x32xf32>
    %cst = arith.constant dense<0.000000e+00> : vector<16x32xf32>
    %7 = tpu.matmul %4, %6, %cst {dimension_numbers = #tpu.dot_dimension_numbers<[1], [0], [0], [1], [0, 0, 1, 1], [], []>} : vector<16x32xf32>, vector<32x32xf32>, vector<16x32xf32> -> vector<16x32xf32>
    %8 = vector.shape_cast %7 : vector<16x32xf32> to vector<2x8x32xf32>
    %c0_6 = arith.constant 0 : index
    %c0_7 = arith.constant 0 : index
    %9 = vector.load %arg26[%c0_6, %c0_7] : memref<2x32xf32, #tpu.memory_space<vmem>>, vector<2x32xf32>
    %10 = vector.shape_cast %9 : vector<2x32xf32> to vector<2x1x32xf32>
    %11 = vector.broadcast %10 : vector<2x1x32xf32> to vector<2x8x32xf32>
    %12 = arith.addf %8, %11 : vector<2x8x32xf32>
    %13 = math.tanh %12 : vector<2x8x32xf32>
    %c2 = arith.constant 2 : index
    %c0_8 = arith.constant 0 : index
    %14 = vector.load %arg17[%c2, %c0_8] : memref<3x32xf32, #tpu.memory_space<vmem>>, vector<1x32xf32>
    %15 = vector.shape_cast %14 : vector<1x32xf32> to vector<32xf32>
    %16 = vector.shape_cast %15 : vector<32xf32> to vector<1x1x32xf32>
    %17 = vector.broadcast %16 : vector<1x1x32xf32> to vector<2x8x32xf32>
    %18 = arith.mulf %13, %17 : vector<2x8x32xf32>
    %cst_9 = arith.constant dense<0.000000e+00> : vector<2x8xf32>
    %19 = vector.multi_reduction <add>, %18, %cst_9 [2] : vector<2x8x32xf32> to vector<2x8xf32>
    %20 = vector.shape_cast %19 : vector<2x8xf32> to vector<2x8x1xf32>
    %cst_10 = arith.constant dense<0xFF800000> : vector<2x1xf32>
    %21 = vector.multi_reduction <maximumf>, %20, %cst_10 [1] : vector<2x8x1xf32> to vector<2x1xf32>
    %c0_11 = arith.constant 0 : index
    %c0_12 = arith.constant 0 : index
    %22 = vector.load %arg27[%c0_11, %c0_12] : memref<2x1xf32, #tpu.memory_space<vmem>>, vector<2x1xf32>
    %23 = arith.maximumf %22, %21 : vector<2x1xf32>
    %c0_13 = arith.constant 0 : index
    %c0_14 = arith.constant 0 : index
    %24 = vector.load %arg27[%c0_13, %c0_14] : memref<2x1xf32, #tpu.memory_space<vmem>>, vector<2x1xf32>
    %25 = arith.subf %24, %23 : vector<2x1xf32>
    %26 = math.exp %25 : vector<2x1xf32>
    %27 = vector.shape_cast %23 : vector<2x1xf32> to vector<2x1x1xf32>
    %28 = vector.broadcast %27 : vector<2x1x1xf32> to vector<2x8x1xf32>
    %29 = arith.subf %20, %28 : vector<2x8x1xf32>
    %30 = math.exp %29 : vector<2x8x1xf32>
    %c0_15 = arith.constant 0 : index
    %c0_16 = arith.constant 0 : index
    %31 = vector.load %arg28[%c0_15, %c0_16] : memref<2x1xf32, #tpu.memory_space<vmem>>, vector<2x1xf32>
    %32 = arith.mulf %26, %31 : vector<2x1xf32>
    %cst_17 = arith.constant dense<0.000000e+00> : vector<2x1xf32>
    %33 = vector.multi_reduction <add>, %30, %cst_17 [1] : vector<2x8x1xf32> to vector<2x1xf32>
    %34 = arith.addf %32, %33 : vector<2x1xf32>
    %c0_18 = arith.constant 0 : index
    %c0_19 = arith.constant 0 : index
    %35 = vector.load %arg28[%c0_18, %c0_19] : memref<2x1xf32, #tpu.memory_space<vmem>>, vector<2x1xf32>
    tpu.vector_store %arg28[%c0_18, %c0_19], %34 {strides = array<i32>} : memref<2x1xf32, #tpu.memory_space<vmem>>, vector<2x1xf32>,
    %c0_20 = arith.constant 0 : index
    %c0_21 = arith.constant 0 : index
    %36 = vector.load %arg29[%c0_20, %c0_21] : memref<2x32xf32, #tpu.memory_space<vmem>>, vector<2x32xf32>
    %37 = vector.broadcast %26 : vector<2x1xf32> to vector<2x32xf32>
    %38 = arith.mulf %37, %36 : vector<2x32xf32>
    %39 = vector.broadcast %30 : vector<2x8x1xf32> to vector<2x8x32xf32>
    %40 = arith.mulf %39, %3 : vector<2x8x32xf32>
    %cst_22 = arith.constant dense<0.000000e+00> : vector<2x32xf32>
    %41 = vector.multi_reduction <add>, %40, %cst_22 [1] : vector<2x8x32xf32> to vector<2x32xf32>
    %42 = arith.addf %38, %41 : vector<2x32xf32>
    %c0_23 = arith.constant 0 : index
    %c0_24 = arith.constant 0 : index
    %43 = vector.load %arg29[%c0_23, %c0_24] : memref<2x32xf32, #tpu.memory_space<vmem>>, vector<2x32xf32>
    tpu.vector_store %arg29[%c0_23, %c0_24], %42 {strides = array<i32>} : memref<2x32xf32, #tpu.memory_space<vmem>>, vector<2x32xf32>,
    %c0_25 = arith.constant 0 : index
    %c0_26 = arith.constant 0 : index
    %44 = vector.load %arg27[%c0_25, %c0_26] : memref<2x1xf32, #tpu.memory_space<vmem>>, vector<2x1xf32>
    tpu.vector_store %arg27[%c0_25, %c0_26], %23 {strides = array<i32>} : memref<2x1xf32, #tpu.memory_space<vmem>>, vector<2x1xf32>,
    %c0_i32_27 = arith.constant 0 : i32
    %45 = arith.cmpi eq, %arg1, %c0_i32_27 : i32
    %46 = arith.extui %45 : i1 to i32
    %c0_i32_28 = arith.constant 0 : i32
    %47 = arith.cmpi ne, %46, %c0_i32_28 : i32
    scf.if %47 {
      %c0_29 = arith.constant 0 : index
      %c0_30 = arith.constant 0 : index
      %48 = vector.load %arg29[%c0_29, %c0_30] : memref<2x32xf32, #tpu.memory_space<vmem>>, vector<2x32xf32>
      %c0_31 = arith.constant 0 : index
      %c0_32 = arith.constant 0 : index
      %49 = vector.load %arg28[%c0_31, %c0_32] : memref<2x1xf32, #tpu.memory_space<vmem>>, vector<2x1xf32>
      %50 = tpu.reciprocal %49 {approx = true} : vector<2x1xf32> -> vector<2x1xf32>
      %51 = vector.broadcast %50 : vector<2x1xf32> to vector<2x32xf32>
      %52 = arith.mulf %48, %51 : vector<2x32xf32>
      %c0_33 = arith.constant 0 : index
      %c0_34 = arith.constant 0 : index
      %53 = vector.load %arg25[%c0_33, %c0_34] : memref<2x32xf32, #tpu.memory_space<vmem>>, vector<2x32xf32>
      %c0_35 = arith.constant 0 : index
      %c0_36 = arith.constant 0 : index
      %c0_37 = arith.constant 0 : index
      %54 = vector.load %arg18[%c0_35, %c0_36, %c0_37] : memref<2x32x32xf32, #tpu.memory_space<vmem>>, vector<1x32x32xf32>
      %55 = vector.shape_cast %54 : vector<1x32x32xf32> to vector<32x32xf32>
      %cst_38 = arith.constant dense<0.000000e+00> : vector<2x32xf32>
      %56 = tpu.matmul %53, %55, %cst_38 {dimension_numbers = #tpu.dot_dimension_numbers<[1], [0], [0], [1], [0, 0, 1, 1], [], []>} : vector<2x32xf32>, vector<32x32xf32>, vector<2x32xf32> -> vector<2x32xf32>
      %c1 = arith.constant 1 : index
      %c0_39 = arith.constant 0 : index
      %c0_40 = arith.constant 0 : index
      %57 = vector.load %arg18[%c1, %c0_39, %c0_40] : memref<2x32x32xf32, #tpu.memory_space<vmem>>, vector<1x32x32xf32>
      %58 = vector.shape_cast %57 : vector<1x32x32xf32> to vector<32x32xf32>
      %cst_41 = arith.constant dense<0.000000e+00> : vector<2x32xf32>
      %59 = tpu.matmul %52, %58, %cst_41 {dimension_numbers = #tpu.dot_dimension_numbers<[1], [0], [0], [1], [0, 0, 1, 1], [], []>} : vector<2x32xf32>, vector<32x32xf32>, vector<2x32xf32> -> vector<2x32xf32>
      %60 = arith.addf %56, %59 : vector<2x32xf32>
      %c1_42 = arith.constant 1 : index
      %c0_43 = arith.constant 0 : index
      %61 = vector.load %arg17[%c1_42, %c0_43] : memref<3x32xf32, #tpu.memory_space<vmem>>, vector<1x32xf32>
      %62 = vector.shape_cast %61 : vector<1x32xf32> to vector<32xf32>
      %63 = vector.shape_cast %62 : vector<32xf32> to vector<1x32xf32>
      %64 = vector.broadcast %63 : vector<1x32xf32> to vector<2x32xf32>
      %65 = arith.addf %60, %64 : vector<2x32xf32>
      %c0_44 = arith.constant 0 : index
      %c0_45 = arith.constant 0 : index
      %66 = vector.load %arg5[%c0_44, %c0_45] : memref<2x32xf32, #tpu.memory_space<vmem>>, vector<2x32xf32>
      %c0_46 = arith.constant 0 : index
      %c0_47 = arith.constant 0 : index
      %c0_48 = arith.constant 0 : index
      %67 = vector.load %arg10[%c0_46, %c0_47, %c0_48] : memref<3x32x32xf32, #tpu.memory_space<vmem>>, vector<1x32x32xf32>
      %68 = vector.shape_cast %67 : vector<1x32x32xf32> to vector<32x32xf32>
      %cst_49 = arith.constant dense<0.000000e+00> : vector<2x32xf32>
      %69 = tpu.matmul %65, %68, %cst_49 {dimension_numbers = #tpu.dot_dimension_numbers<[1], [0], [0], [1], [0, 0, 1, 1], [], []>} : vector<2x32xf32>, vector<32x32xf32>, vector<2x32xf32> -> vector<2x32xf32>
      %c0_50 = arith.constant 0 : index
      %c0_51 = arith.constant 0 : index
      %c0_52 = arith.constant 0 : index
      %70 = vector.load %arg11[%c0_50, %c0_51, %c0_52] : memref<3x32x32xf32, #tpu.memory_space<vmem>>, vector<1x32x32xf32>
      %71 = vector.shape_cast %70 : vector<1x32x32xf32> to vector<32x32xf32>
      %cst_53 = arith.constant dense<0.000000e+00> : vector<2x32xf32>
      %72 = tpu.matmul %66, %71, %cst_53 {dimension_numbers = #tpu.dot_dimension_numbers<[1], [0], [0], [1], [0, 0, 1, 1], [], []>} : vector<2x32xf32>, vector<32x32xf32>, vector<2x32xf32> -> vector<2x32xf32>
      %73 = arith.addf %69, %72 : vector<2x32xf32>
      %c0_54 = arith.constant 0 : index
      %c0_55 = arith.constant 0 : index
      %74 = vector.load %arg12[%c0_54, %c0_55] : memref<4x32xf32, #tpu.memory_space<vmem>>, vector<1x32xf32>
      %75 = vector.shape_cast %74 : vector<1x32xf32> to vector<32xf32>
      %76 = vector.shape_cast %75 : vector<32xf32> to vector<1x32xf32>
      %77 = vector.broadcast %76 : vector<1x32xf32> to vector<2x32xf32>
      %78 = arith.addf %73, %77 : vector<2x32xf32>
      %cst_56 = arith.constant 5.000000e-01 : f32
      %79 = vector.broadcast %cst_56 : f32 to vector<2x32xf32>
      %80 = arith.mulf %79, %78 : vector<2x32xf32>
      %81 = math.tanh %80 : vector<2x32xf32>
      %cst_57 = arith.constant 1.000000e+00 : f32
      %82 = vector.broadcast %cst_57 : f32 to vector<2x32xf32>
      %83 = arith.addf %81, %82 : vector<2x32xf32>
      %cst_58 = arith.constant 5.000000e-01 : f32
      %84 = vector.broadcast %cst_58 : f32 to vector<2x32xf32>
      %85 = arith.mulf %84, %83 : vector<2x32xf32>
      %c1_59 = arith.constant 1 : index
      %c0_60 = arith.constant 0 : index
      %c0_61 = arith.constant 0 : index
      %86 = vector.load %arg10[%c1_59, %c0_60, %c0_61] : memref<3x32x32xf32, #tpu.memory_space<vmem>>, vector<1x32x32xf32>
      %87 = vector.shape_cast %86 : vector<1x32x32xf32> to vector<32x32xf32>
      %cst_62 = arith.constant dense<0.000000e+00> : vector<2x32xf32>
      %88 = tpu.matmul %65, %87, %cst_62 {dimension_numbers = #tpu.dot_dimension_numbers<[1], [0], [0], [1], [0, 0, 1, 1], [], []>} : vector<2x32xf32>, vector<32x32xf32>, vector<2x32xf32> -> vector<2x32xf32>
      %c1_63 = arith.constant 1 : index
      %c0_64 = arith.constant 0 : index
      %c0_65 = arith.constant 0 : index
      %89 = vector.load %arg11[%c1_63, %c0_64, %c0_65] : memref<3x32x32xf32, #tpu.memory_space<vmem>>, vector<1x32x32xf32>
      %90 = vector.shape_cast %89 : vector<1x32x32xf32> to vector<32x32xf32>
      %cst_66 = arith.constant dense<0.000000e+00> : vector<2x32xf32>
      %91 = tpu.matmul %66, %90, %cst_66 {dimension_numbers = #tpu.dot_dimension_numbers<[1], [0], [0], [1], [0, 0, 1, 1], [], []>} : vector<2x32xf32>, vector<32x32xf32>, vector<2x32xf32> -> vector<2x32xf32>
      %92 = arith.addf %88, %91 : vector<2x32xf32>
      %c1_67 = arith.constant 1 : index
      %c0_68 = arith.constant 0 : index
      %93 = vector.load %arg12[%c1_67, %c0_68] : memref<4x32xf32, #tpu.memory_space<vmem>>, vector<1x32xf32>
      %94 = vector.shape_cast %93 : vector<1x32xf32> to vector<32xf32>
      %95 = vector.shape_cast %94 : vector<32xf32> to vector<1x32xf32>
      %96 = vector.broadcast %95 : vector<1x32xf32> to vector<2x32xf32>
      %97 = arith.addf %92, %96 : vector<2x32xf32>
      %cst_69 = arith.constant 5.000000e-01 : f32
      %98 = vector.broadcast %cst_69 : f32 to vector<2x32xf32>
      %99 = arith.mulf %98, %97 : vector<2x32xf32>
      %100 = math.tanh %99 : vector<2x32xf32>
      %cst_70 = arith.constant 1.000000e+00 : f32
      %101 = vector.broadcast %cst_70 : f32 to vector<2x32xf32>
      %102 = arith.addf %100, %101 : vector<2x32xf32>
      %cst_71 = arith.constant 5.000000e-01 : f32
      %103 = vector.broadcast %cst_71 : f32 to vector<2x32xf32>
      %104 = arith.mulf %103, %102 : vector<2x32xf32>
      %c2_72 = arith.constant 2 : index
      %c0_73 = arith.constant 0 : index
      %c0_74 = arith.constant 0 : index
      %105 = vector.load %arg10[%c2_72, %c0_73, %c0_74] : memref<3x32x32xf32, #tpu.memory_space<vmem>>, vector<1x32x32xf32>
      %106 = vector.shape_cast %105 : vector<1x32x32xf32> to vector<32x32xf32>
      %cst_75 = arith.constant dense<0.000000e+00> : vector<2x32xf32>
      %107 = tpu.matmul %65, %106, %cst_75 {dimension_numbers = #tpu.dot_dimension_numbers<[1], [0], [0], [1], [0, 0, 1, 1], [], []>} : vector<2x32xf32>, vector<32x32xf32>, vector<2x32xf32> -> vector<2x32xf32>
      %c2_76 = arith.constant 2 : index
      %c0_77 = arith.constant 0 : index
      %108 = vector.load %arg12[%c2_76, %c0_77] : memref<4x32xf32, #tpu.memory_space<vmem>>, vector<1x32xf32>
      %109 = vector.shape_cast %108 : vector<1x32xf32> to vector<32xf32>
      %110 = vector.shape_cast %109 : vector<32xf32> to vector<1x32xf32>
      %111 = vector.broadcast %110 : vector<1x32xf32> to vector<2x32xf32>
      %112 = arith.addf %107, %111 : vector<2x32xf32>
      %c2_78 = arith.constant 2 : index
      %c0_79 = arith.constant 0 : index
      %c0_80 = arith.constant 0 : index
      %113 = vector.load %arg11[%c2_78, %c0_79, %c0_80] : memref<3x32x32xf32, #tpu.memory_space<vmem>>, vector<1x32x32xf32>
      %114 = vector.shape_cast %113 : vector<1x32x32xf32> to vector<32x32xf32>
      %cst_81 = arith.constant dense<0.000000e+00> : vector<2x32xf32>
      %115 = tpu.matmul %66, %114, %cst_81 {dimension_numbers = #tpu.dot_dimension_numbers<[1], [0], [0], [1], [0, 0, 1, 1], [], []>} : vector<2x32xf32>, vector<32x32xf32>, vector<2x32xf32> -> vector<2x32xf32>
      %c3 = arith.constant 3 : index
      %c0_82 = arith.constant 0 : index
      %116 = vector.load %arg12[%c3, %c0_82] : memref<4x32xf32, #tpu.memory_space<vmem>>, vector<1x32xf32>
      %117 = vector.shape_cast %116 : vector<1x32xf32> to vector<32xf32>
      %118 = vector.shape_cast %117 : vector<32xf32> to vector<1x32xf32>
      %119 = vector.broadcast %118 : vector<1x32xf32> to vector<2x32xf32>
      %120 = arith.addf %115, %119 : vector<2x32xf32>
      %121 = arith.mulf %85, %120 : vector<2x32xf32>
      %122 = arith.addf %112, %121 : vector<2x32xf32>
      %123 = math.tanh %122 : vector<2x32xf32>
      %cst_83 = arith.constant 1.000000e+00 : f32
      %124 = vector.broadcast %cst_83 : f32 to vector<2x32xf32>
      %125 = arith.subf %124, %104 : vector<2x32xf32>
      %126 = arith.mulf %125, %123 : vector<2x32xf32>
      %127 = arith.mulf %104, %66 : vector<2x32xf32>
      %128 = arith.addf %126, %127 : vector<2x32xf32>
      %c0_84 = arith.constant 0 : index
      %c0_85 = arith.constant 0 : index
      %129 = vector.load %arg23[%c0_84, %c0_85] : memref<2x32xf32, #tpu.memory_space<vmem>>, vector<2x32xf32>
      tpu.vector_store %arg23[%c0_84, %c0_85], %128 {strides = array<i32>} : memref<2x32xf32, #tpu.memory_space<vmem>>, vector<2x32xf32>,
      %130 = arith.addf %128, %65 : vector<2x32xf32>
      %c0_86 = arith.constant 0 : index
      %c0_87 = arith.constant 0 : index
      %131 = vector.load %arg6[%c0_86, %c0_87] : memref<2x32xf32, #tpu.memory_space<vmem>>, vector<2x32xf32>
      %c0_88 = arith.constant 0 : index
      %c0_89 = arith.constant 0 : index
      %c0_90 = arith.constant 0 : index
      %132 = vector.load %arg13[%c0_88, %c0_89, %c0_90] : memref<3x32x32xf32, #tpu.memory_space<vmem>>, vector<1x32x32xf32>
      %133 = vector.shape_cast %132 : vector<1x32x32xf32> to vector<32x32xf32>
      %cst_91 = arith.constant dense<0.000000e+00> : vector<2x32xf32>
      %134 = tpu.matmul %130, %133, %cst_91 {dimension_numbers = #tpu.dot_dimension_numbers<[1], [0], [0], [1], [0, 0, 1, 1], [], []>} : vector<2x32xf32>, vector<32x32xf32>, vector<2x32xf32> -> vector<2x32xf32>
      %c0_92 = arith.constant 0 : index
      %c0_93 = arith.constant 0 : index
      %c0_94 = arith.constant 0 : index
      %135 = vector.load %arg14[%c0_92, %c0_93, %c0_94] : memref<3x32x32xf32, #tpu.memory_space<vmem>>, vector<1x32x32xf32>
      %136 = vector.shape_cast %135 : vector<1x32x32xf32> to vector<32x32xf32>
      %cst_95 = arith.constant dense<0.000000e+00> : vector<2x32xf32>
      %137 = tpu.matmul %131, %136, %cst_95 {dimension_numbers = #tpu.dot_dimension_numbers<[1], [0], [0], [1], [0, 0, 1, 1], [], []>} : vector<2x32xf32>, vector<32x32xf32>, vector<2x32xf32> -> vector<2x32xf32>
      %138 = arith.addf %134, %137 : vector<2x32xf32>
      %c0_96 = arith.constant 0 : index
      %c0_97 = arith.constant 0 : index
      %139 = vector.load %arg15[%c0_96, %c0_97] : memref<4x32xf32, #tpu.memory_space<vmem>>, vector<1x32xf32>
      %140 = vector.shape_cast %139 : vector<1x32xf32> to vector<32xf32>
      %141 = vector.shape_cast %140 : vector<32xf32> to vector<1x32xf32>
      %142 = vector.broadcast %141 : vector<1x32xf32> to vector<2x32xf32>
      %143 = arith.addf %138, %142 : vector<2x32xf32>
      %cst_98 = arith.constant 5.000000e-01 : f32
      %144 = vector.broadcast %cst_98 : f32 to vector<2x32xf32>
      %145 = arith.mulf %144, %143 : vector<2x32xf32>
      %146 = math.tanh %145 : vector<2x32xf32>
      %cst_99 = arith.constant 1.000000e+00 : f32
      %147 = vector.broadcast %cst_99 : f32 to vector<2x32xf32>
      %148 = arith.addf %146, %147 : vector<2x32xf32>
      %cst_100 = arith.constant 5.000000e-01 : f32
      %149 = vector.broadcast %cst_100 : f32 to vector<2x32xf32>
      %150 = arith.mulf %149, %148 : vector<2x32xf32>
      %c1_101 = arith.constant 1 : index
      %c0_102 = arith.constant 0 : index
      %c0_103 = arith.constant 0 : index
      %151 = vector.load %arg13[%c1_101, %c0_102, %c0_103] : memref<3x32x32xf32, #tpu.memory_space<vmem>>, vector<1x32x32xf32>
      %152 = vector.shape_cast %151 : vector<1x32x32xf32> to vector<32x32xf32>
      %cst_104 = arith.constant dense<0.000000e+00> : vector<2x32xf32>
      %153 = tpu.matmul %130, %152, %cst_104 {dimension_numbers = #tpu.dot_dimension_numbers<[1], [0], [0], [1], [0, 0, 1, 1], [], []>} : vector<2x32xf32>, vector<32x32xf32>, vector<2x32xf32> -> vector<2x32xf32>
      %c1_105 = arith.constant 1 : index
      %c0_106 = arith.constant 0 : index
      %c0_107 = arith.constant 0 : index
      %154 = vector.load %arg14[%c1_105, %c0_106, %c0_107] : memref<3x32x32xf32, #tpu.memory_space<vmem>>, vector<1x32x32xf32>
      %155 = vector.shape_cast %154 : vector<1x32x32xf32> to vector<32x32xf32>
      %cst_108 = arith.constant dense<0.000000e+00> : vector<2x32xf32>
      %156 = tpu.matmul %131, %155, %cst_108 {dimension_numbers = #tpu.dot_dimension_numbers<[1], [0], [0], [1], [0, 0, 1, 1], [], []>} : vector<2x32xf32>, vector<32x32xf32>, vector<2x32xf32> -> vector<2x32xf32>
      %157 = arith.addf %153, %156 : vector<2x32xf32>
      %c1_109 = arith.constant 1 : index
      %c0_110 = arith.constant 0 : index
      %158 = vector.load %arg15[%c1_109, %c0_110] : memref<4x32xf32, #tpu.memory_space<vmem>>, vector<1x32xf32>
      %159 = vector.shape_cast %158 : vector<1x32xf32> to vector<32xf32>
      %160 = vector.shape_cast %159 : vector<32xf32> to vector<1x32xf32>
      %161 = vector.broadcast %160 : vector<1x32xf32> to vector<2x32xf32>
      %162 = arith.addf %157, %161 : vector<2x32xf32>
      %cst_111 = arith.constant 5.000000e-01 : f32
      %163 = vector.broadcast %cst_111 : f32 to vector<2x32xf32>
      %164 = arith.mulf %163, %162 : vector<2x32xf32>
      %165 = math.tanh %164 : vector<2x32xf32>
      %cst_112 = arith.constant 1.000000e+00 : f32
      %166 = vector.broadcast %cst_112 : f32 to vector<2x32xf32>
      %167 = arith.addf %165, %166 : vector<2x32xf32>
      %cst_113 = arith.constant 5.000000e-01 : f32
      %168 = vector.broadcast %cst_113 : f32 to vector<2x32xf32>
      %169 = arith.mulf %168, %167 : vector<2x32xf32>
      %c2_114 = arith.constant 2 : index
      %c0_115 = arith.constant 0 : index
      %c0_116 = arith.constant 0 : index
      %170 = vector.load %arg13[%c2_114, %c0_115, %c0_116] : memref<3x32x32xf32, #tpu.memory_space<vmem>>, vector<1x32x32xf32>
      %171 = vector.shape_cast %170 : vector<1x32x32xf32> to vector<32x32xf32>
      %cst_117 = arith.constant dense<0.000000e+00> : vector<2x32xf32>
      %172 = tpu.matmul %130, %171, %cst_117 {dimension_numbers = #tpu.dot_dimension_numbers<[1], [0], [0], [1], [0, 0, 1, 1], [], []>} : vector<2x32xf32>, vector<32x32xf32>, vector<2x32xf32> -> vector<2x32xf32>
      %c2_118 = arith.constant 2 : index
      %c0_119 = arith.constant 0 : index
      %173 = vector.load %arg15[%c2_118, %c0_119] : memref<4x32xf32, #tpu.memory_space<vmem>>, vector<1x32xf32>
      %174 = vector.shape_cast %173 : vector<1x32xf32> to vector<32xf32>
      %175 = vector.shape_cast %174 : vector<32xf32> to vector<1x32xf32>
      %176 = vector.broadcast %175 : vector<1x32xf32> to vector<2x32xf32>
      %177 = arith.addf %172, %176 : vector<2x32xf32>
      %c2_120 = arith.constant 2 : index
      %c0_121 = arith.constant 0 : index
      %c0_122 = arith.constant 0 : index
      %178 = vector.load %arg14[%c2_120, %c0_121, %c0_122] : memref<3x32x32xf32, #tpu.memory_space<vmem>>, vector<1x32x32xf32>
      %179 = vector.shape_cast %178 : vector<1x32x32xf32> to vector<32x32xf32>
      %cst_123 = arith.constant dense<0.000000e+00> : vector<2x32xf32>
      %180 = tpu.matmul %131, %179, %cst_123 {dimension_numbers = #tpu.dot_dimension_numbers<[1], [0], [0], [1], [0, 0, 1, 1], [], []>} : vector<2x32xf32>, vector<32x32xf32>, vector<2x32xf32> -> vector<2x32xf32>
      %c3_124 = arith.constant 3 : index
      %c0_125 = arith.constant 0 : index
      %181 = vector.load %arg15[%c3_124, %c0_125] : memref<4x32xf32, #tpu.memory_space<vmem>>, vector<1x32xf32>
      %182 = vector.shape_cast %181 : vector<1x32xf32> to vector<32xf32>
      %183 = vector.shape_cast %182 : vector<32xf32> to vector<1x32xf32>
      %184 = vector.broadcast %183 : vector<1x32xf32> to vector<2x32xf32>
      %185 = arith.addf %180, %184 : vector<2x32xf32>
      %186 = arith.mulf %150, %185 : vector<2x32xf32>
      %187 = arith.addf %177, %186 : vector<2x32xf32>
      %188 = math.tanh %187 : vector<2x32xf32>
      %cst_126 = arith.constant 1.000000e+00 : f32
      %189 = vector.broadcast %cst_126 : f32 to vector<2x32xf32>
      %190 = arith.subf %189, %169 : vector<2x32xf32>
      %191 = arith.mulf %190, %188 : vector<2x32xf32>
      %192 = arith.mulf %169, %131 : vector<2x32xf32>
      %193 = arith.addf %191, %192 : vector<2x32xf32>
      %c0_127 = arith.constant 0 : index
      %c0_128 = arith.constant 0 : index
      %194 = vector.load %arg24[%c0_127, %c0_128] : memref<2x32xf32, #tpu.memory_space<vmem>>, vector<2x32xf32>
      tpu.vector_store %arg24[%c0_127, %c0_128], %193 {strides = array<i32>} : memref<2x32xf32, #tpu.memory_space<vmem>>, vector<2x32xf32>,
      %195 = arith.addf %130, %193 : vector<2x32xf32>
      %c0_129 = arith.constant 0 : index
      %c0_130 = arith.constant 0 : index
      %196 = vector.load %arg19[%c0_129, %c0_130] : memref<32x128xf32, #tpu.memory_space<vmem>>, vector<32x128xf32>
      %cst_131 = arith.constant dense<0.000000e+00> : vector<2x128xf32>
      %197 = tpu.matmul %195, %196, %cst_131 {dimension_numbers = #tpu.dot_dimension_numbers<[1], [0], [0], [1], [0, 0, 1, 1], [], []>} : vector<2x32xf32>, vector<32x128xf32>, vector<2x128xf32> -> vector<2x128xf32>
      %c0_132 = arith.constant 0 : index
      %c0_133 = arith.constant 0 : index
      %198 = vector.load %arg20[%c0_132, %c0_133] : memref<1x128xf32, #tpu.memory_space<vmem>>, vector<1x128xf32>
      %199 = vector.broadcast %198 : vector<1x128xf32> to vector<2x128xf32>
      %200 = arith.addf %197, %199 : vector<2x128xf32>
      %c0_134 = arith.constant 0 : index
      %c0_135 = arith.constant 0 : index
      %201 = vector.load %arg21[%c0_134, %c0_135] : memref<2x128xf32, #tpu.memory_space<vmem>>, vector<2x128xf32>
      tpu.vector_store %arg21[%c0_134, %c0_135], %200 {strides = array<i32>} : memref<2x128xf32, #tpu.memory_space<vmem>>, vector<2x128xf32>,
    } else {
    }
    return
  }
  func.func @transform_0(%arg0: i32, %arg1: i32) -> (i32, i32, i32) {
    %c0_i32 = arith.constant 0 : i32
    %c0_i32_0 = arith.constant 0 : i32
    return %arg0, %arg1, %c0_i32 : i32, i32, i32
  }
  func.func @transform_1(%arg0: i32, %arg1: i32) -> (i32, i32) {
    %c0_i32 = arith.constant 0 : i32
    %c0_i32_0 = arith.constant 0 : i32
    return %arg0, %c0_i32 : i32, i32
  }
  func.func @transform_2(%arg0: i32, %arg1: i32) -> (i32, i32) {
    %c0_i32 = arith.constant 0 : i32
    %c0_i32_0 = arith.constant 0 : i32
    return %arg0, %c0_i32 : i32, i32
  }
  func.func @transform_3(%arg0: i32, %arg1: i32) -> (i32, i32) {
    %c0_i32 = arith.constant 0 : i32
    %c0_i32_0 = arith.constant 0 : i32
    return %arg0, %c0_i32 : i32, i32
  }
  func.func @transform_4(%arg0: i32, %arg1: i32) -> (i32, i32) {
    %c0_i32 = arith.constant 0 : i32
    %c0_i32_0 = arith.constant 0 : i32
    return %arg0, %c0_i32 : i32, i32
  }
  func.func @transform_5(%arg0: i32, %arg1: i32) -> (i32, i32, i32) {
    %c0_i32 = arith.constant 0 : i32
    %c0_i32_0 = arith.constant 0 : i32
    %c0_i32_1 = arith.constant 0 : i32
    %c0_i32_2 = arith.constant 0 : i32
    return %c0_i32, %c0_i32_0, %c0_i32_1 : i32, i32, i32
  }
  func.func @transform_6(%arg0: i32, %arg1: i32) -> (i32, i32, i32) {
    %c0_i32 = arith.constant 0 : i32
    %c0_i32_0 = arith.constant 0 : i32
    %c0_i32_1 = arith.constant 0 : i32
    %c0_i32_2 = arith.constant 0 : i32
    return %c0_i32, %c0_i32_0, %c0_i32_1 : i32, i32, i32
  }
  func.func @transform_7(%arg0: i32, %arg1: i32) -> (i32, i32) {
    %c0_i32 = arith.constant 0 : i32
    %c0_i32_0 = arith.constant 0 : i32
    %c0_i32_1 = arith.constant 0 : i32
    return %c0_i32, %c0_i32_0 : i32, i32
  }
  func.func @transform_8(%arg0: i32, %arg1: i32) -> (i32, i32, i32) {
    %c0_i32 = arith.constant 0 : i32
    %c0_i32_0 = arith.constant 0 : i32
    %c0_i32_1 = arith.constant 0 : i32
    %c0_i32_2 = arith.constant 0 : i32
    return %c0_i32, %c0_i32_0, %c0_i32_1 : i32, i32, i32
  }
  func.func @transform_9(%arg0: i32, %arg1: i32) -> (i32, i32, i32) {
    %c0_i32 = arith.constant 0 : i32
    %c0_i32_0 = arith.constant 0 : i32
    %c0_i32_1 = arith.constant 0 : i32
    %c0_i32_2 = arith.constant 0 : i32
    return %c0_i32, %c0_i32_0, %c0_i32_1 : i32, i32, i32
  }
  func.func @transform_10(%arg0: i32, %arg1: i32) -> (i32, i32) {
    %c0_i32 = arith.constant 0 : i32
    %c0_i32_0 = arith.constant 0 : i32
    %c0_i32_1 = arith.constant 0 : i32
    return %c0_i32, %c0_i32_0 : i32, i32
  }
  func.func @transform_11(%arg0: i32, %arg1: i32) -> (i32, i32, i32) {
    %c0_i32 = arith.constant 0 : i32
    %c0_i32_0 = arith.constant 0 : i32
    %c0_i32_1 = arith.constant 0 : i32
    %c0_i32_2 = arith.constant 0 : i32
    return %c0_i32, %c0_i32_0, %c0_i32_1 : i32, i32, i32
  }
  func.func @transform_12(%arg0: i32, %arg1: i32) -> (i32, i32, i32) {
    %c0_i32 = arith.constant 0 : i32
    %c0_i32_0 = arith.constant 0 : i32
    %c0_i32_1 = arith.constant 0 : i32
    %c0_i32_2 = arith.constant 0 : i32
    return %c0_i32, %c0_i32_0, %c0_i32_1 : i32, i32, i32
  }
  func.func @transform_13(%arg0: i32, %arg1: i32) -> (i32, i32) {
    %c0_i32 = arith.constant 0 : i32
    %c0_i32_0 = arith.constant 0 : i32
    %c0_i32_1 = arith.constant 0 : i32
    return %c0_i32, %c0_i32_0 : i32, i32
  }
  func.func @transform_14(%arg0: i32, %arg1: i32) -> (i32, i32, i32) {
    %c0_i32 = arith.constant 0 : i32
    %c0_i32_0 = arith.constant 0 : i32
    %c0_i32_1 = arith.constant 0 : i32
    %c0_i32_2 = arith.constant 0 : i32
    return %c0_i32, %c0_i32_0, %c0_i32_1 : i32, i32, i32
  }
  func.func @transform_15(%arg0: i32, %arg1: i32) -> (i32, i32) {
    %c0_i32 = arith.constant 0 : i32
    %c0_i32_0 = arith.constant 0 : i32
    %c0_i32_1 = arith.constant 0 : i32
    return %c0_i32, %c0_i32_0 : i32, i32
  }
  func.func @transform_16(%arg0: i32, %arg1: i32) -> (i32, i32, i32) {
    %c0_i32 = arith.constant 0 : i32
    %c0_i32_0 = arith.constant 0 : i32
    %c0_i32_1 = arith.constant 0 : i32
    %c0_i32_2 = arith.constant 0 : i32
    return %c0_i32, %c0_i32_0, %c0_i32_1 : i32, i32, i32
  }
  func.func @transform_17(%arg0: i32, %arg1: i32) -> (i32, i32) {
    %c0_i32 = arith.constant 0 : i32
    %c0_i32_0 = arith.constant 0 : i32
    %c0_i32_1 = arith.constant 0 : i32
    return %c0_i32, %c0_i32_0 : i32, i32
  }
  func.func @transform_18(%arg0: i32, %arg1: i32) -> (i32, i32) {
    %c0_i32 = arith.constant 0 : i32
    %c0_i32_0 = arith.constant 0 : i32
    %c0_i32_1 = arith.constant 0 : i32
    return %c0_i32, %c0_i32_0 : i32, i32
  }
  func.func @transform_19(%arg0: i32, %arg1: i32) -> (i32, i32) {
    %c0_i32 = arith.constant 0 : i32
    %c0_i32_0 = arith.constant 0 : i32
    return %arg0, %c0_i32 : i32, i32
  }
  func.func @transform_20(%arg0: i32, %arg1: i32) -> (i32, i32) {
    %c0_i32 = arith.constant 0 : i32
    %c0_i32_0 = arith.constant 0 : i32
    return %arg0, %c0_i32 : i32, i32
  }
  func.func @transform_21(%arg0: i32, %arg1: i32) -> (i32, i32) {
    %c0_i32 = arith.constant 0 : i32
    %c0_i32_0 = arith.constant 0 : i32
    return %arg0, %c0_i32 : i32, i32
  }
  func.func @transform_22(%arg0: i32, %arg1: i32) -> (i32, i32) {
    %c0_i32 = arith.constant 0 : i32
    %c0_i32_0 = arith.constant 0 : i32
    return %arg0, %c0_i32 : i32, i32
  }
}

</mosaic_0001>

<llo_original>
// kernel: attention_decoder.1
$region0: #{attention_decoder.1}
  #allocation0 [shape = 'u32[]', space=smem, size = 0x4, offset = 0x4, fixed_abs, tag = 'smem constant byte address 0x4 - core index']
  #allocation1 [shape = 'u32[144,128]{1,0:T(1,128)}', space=vmem, size = 0x12000, scoped, tag = 'internal scratch']
  #allocation2 [shape = 'f32[2,32]{1,0:T(2,128)}', space=vmem, size = 0x400, scoped, tag = 'scratch operand']
  #allocation3 [shape = 'f32[2,32]{1,0:T(2,128)}', space=vmem, size = 0x400, scoped, tag = 'scratch operand']
  #allocation4 [shape = 'f32[2,1]{1,0:T(2,128)}', space=vmem, size = 0x400, scoped, tag = 'scratch operand']
  #allocation5 [shape = 'f32[2,1]{1,0:T(2,128)}', space=vmem, size = 0x400, scoped, tag = 'scratch operand']
  #allocation6 [shape = 'f32[2,32]{1,0:T(2,128)}', space=vmem, size = 0x400, scoped, tag = 'scratch operand']
  %s0 = inlined_call_operand.vmem [shape: f32[2,8,32], index: 0, kind: input, shape index: {}]
  %s1 = inlined_call_operand.vmem [shape: f32[2,16], index: 1, kind: input, shape index: {}]
  %s2 = inlined_call_operand.vmem [shape: f32[2,32], index: 2, kind: input, shape index: {}, may-alias: {2,20}]
  %s3 = inlined_call_operand.vmem [shape: f32[2,32], index: 3, kind: input, shape index: {}, may-alias: {3,21}]
  %s4 = inlined_call_operand.vmem [shape: f32[2,32], index: 4, kind: input, shape index: {}, may-alias: {4,22}]
  %s5 = inlined_call_operand.vmem [shape: f32[3,16,32], index: 5, kind: input, shape index: {}]
  %s6 = inlined_call_operand.hbm [shape: f32[3,32,32], index: 6, kind: input, shape index: {}]
  %s7 = inlined_call_operand.vmem [shape: f32[4,32], index: 7, kind: input, shape index: {}]
  %s8 = inlined_call_operand.hbm [shape: f32[3,32,32], index: 8, kind: input, shape index: {}]
  %s9 = inlined_call_operand.hbm [shape: f32[3,32,32], index: 9, kind: input, shape index: {}]
  %s10 = inlined_call_operand.hbm [shape: f32[4,32], index: 10, kind: input, shape index: {}]
  %s11 = inlined_call_operand.hbm [shape: f32[3,32,32], index: 11, kind: input, shape index: {}]
  %s12 = inlined_call_operand.hbm [shape: f32[3,32,32], index: 12, kind: input, shape index: {}]
  %s13 = inlined_call_operand.hbm [shape: f32[4,32], index: 13, kind: input, shape index: {}]
  %s14 = inlined_call_operand.hbm [shape: f32[2,32,32], index: 14, kind: input, shape index: {}]
  %s15 = inlined_call_operand.hbm [shape: f32[3,32], index: 15, kind: input, shape index: {}]
  %s16 = inlined_call_operand.hbm [shape: f32[2,32,32], index: 16, kind: input, shape index: {}]
  %s17 = inlined_call_operand.hbm [shape: f32[32,128], index: 17, kind: input, shape index: {}]
  %s18 = inlined_call_operand.hbm [shape: f32[1,128], index: 18, kind: input, shape index: {}]
  %s19 = inlined_call_operand.vmem [shape: f32[2,128], index: 19, kind: output, shape index: {0}]
  %s20 = inlined_call_operand.vmem [shape: f32[2,32], index: 20, kind: output, shape index: {1}, may-alias: {2,20}]
  %s21 = inlined_call_operand.vmem [shape: f32[2,32], index: 21, kind: output, shape index: {2}, may-alias: {3,21}]
  %s22 = inlined_call_operand.vmem [shape: f32[2,32], index: 22, kind: output, shape index: {3}, may-alias: {4,22}]
  %23 = xla_tuple %s19, %s20, %s21, %s22
  %s24 = sld [smem:[#allocation0]]
  $region166: #{attention_decoder.1} parent=0
    _
  %s26 = ssub.s32 1, %s24
  %s27 = scalar_select 0, %s26, %s24
  $region1: #{attention_decoder.1} parent=0
    #allocation7 [shape = 'u8[49152]{0}', space=vmem, size = 0xc000, scoped, tag = 'input window, operand 6, single buffered']
    #allocation8 [shape = 's32[1]{0}', space=sflag, size = 0x4, scoped, tag = 'scoped memory for attention_decoder.1']
    #allocation9 [shape = 'u8[49152]{0}', space=vmem, size = 0xc000, scoped, tag = 'input window, operand 8, single buffered']
    #allocation10 [shape = 's32[1]{0}', space=sflag, size = 0x4, scoped, tag = 'scoped memory for attention_decoder.1']
    #allocation11 [shape = 'u8[49152]{0}', space=vmem, size = 0xc000, scoped, tag = 'input window, operand 9, single buffered']
    #allocation12 [shape = 'u8[2048]{0}', space=vmem, size = 0x800, scoped, tag = 'input window, operand 10, single buffered']
    #allocation13 [shape = 's32[1]{0}', space=sflag, size = 0x4, scoped, tag = 'scoped memory for attention_decoder.1']
    #allocation14 [shape = 'u8[49152]{0}', space=vmem, size = 0xc000, scoped, tag = 'input window, operand 11, single buffered']
    #allocation15 [shape = 'u8[49152]{0}', space=vmem, size = 0xc000, scoped, tag = 'input window, operand 12, single buffered']
    #allocation16 [shape = 's32[1]{0}', space=sflag, size = 0x4, scoped, tag = 'scoped memory for attention_decoder.1']
    #allocation17 [shape = 'u8[2048]{0}', space=vmem, size = 0x800, scoped, tag = 'input window, operand 13, single buffered']
    #allocation18 [shape = 'u8[32768]{0}', space=vmem, size = 0x8000, scoped, tag = 'input window, operand 14, single buffered']
    #allocation19 [shape = 's32[1]{0}', space=sflag, size = 0x4, scoped, tag = 'scoped memory for attention_decoder.1']
    #allocation20 [shape = 'u8[2048]{0}', space=vmem, size = 0x800, scoped, tag = 'input window, operand 15, single buffered']
    #allocation21 [shape = 'u8[32768]{0}', space=vmem, size = 0x8000, scoped, tag = 'input window, operand 16, single buffered']
    #allocation22 [shape = 's32[1]{0}', space=sflag, size = 0x4, scoped, tag = 'scoped memory for attention_decoder.1']
    #allocation23 [shape = 'u8[16384]{0}', space=vmem, size = 0x4000, scoped, tag = 'input window, operand 17, single buffered']
    #allocation24 [shape = 'u8[512]{0}', space=vmem, size = 0x400, scoped, tag = 'input window, operand 18, single buffered']
    #allocation25 [shape = 's32[1]{0}', space=sflag, size = 0x4, scoped, tag = 'scoped memory for attention_decoder.1']
    %28 = vsyncpa [#allocation8], 0
    %29 = vsyncpa [#allocation10], 0
    %30 = vsyncpa [#allocation13], 0
    %31 = vsyncpa [#allocation16], 0
    %32 = vsyncpa [#allocation19], 0
    %33 = vsyncpa [#allocation22], 0
    %34 = vsyncpa [#allocation25], 0
    // Predicated region
    $region2: #{attention_decoder.1} parent=1 // pred_check
      _
    $region3: #{attention_decoder.1} parent=1 // pred_check_branch
      %36 = sbr.rel (0) target = $region5
    $region4: #{attention_decoder.1} parent=1 // pred_region
      _
    $region5: #{attention_decoder.1} parent=1 // pred_fallthru
      _
    // Predicated region
    $region6: #{attention_decoder.1} parent=1 // pred_check
      _
    $region7: #{attention_decoder.1} parent=1 // pred_check_branch
      %38 = sbr.rel (0) target = $region9
    $region8: #{attention_decoder.1} parent=1 // pred_region
      _
    $region9: #{attention_decoder.1} parent=1 // pred_fallthru
      _
    // Predicated region
    $region10: #{attention_decoder.1} parent=1 // pred_check
      _
    $region11: #{attention_decoder.1} parent=1 // pred_check_branch
      %40 = sbr.rel (0) target = $region13
    $region12: #{attention_decoder.1} parent=1 // pred_region
      _
    $region13: #{attention_decoder.1} parent=1 // pred_fallthru
      _
    // Predicated region
    $region14: #{attention_decoder.1} parent=1 // pred_check
      _
    $region15: #{attention_decoder.1} parent=1 // pred_check_branch
      %42 = sbr.rel (0) target = $region17
    $region16: #{attention_decoder.1} parent=1 // pred_region
      _
    $region17: #{attention_decoder.1} parent=1 // pred_fallthru
      _
    // Predicated region
    $region18: #{attention_decoder.1} parent=1 // pred_check
      _
    $region19: #{attention_decoder.1} parent=1 // pred_check_branch
      %44 = sbr.rel (0) target = $region21
    $region20: #{attention_decoder.1} parent=1 // pred_region
      _
    $region21: #{attention_decoder.1} parent=1 // pred_fallthru
      _
    // Predicated region
    $region22: #{attention_decoder.1} parent=1 // pred_check
      _
    $region23: #{attention_decoder.1} parent=1 // pred_check_branch
      %46 = sbr.rel (0) target = $region25
    $region24: #{attention_decoder.1} parent=1 // pred_region
      _
    $region25: #{attention_decoder.1} parent=1 // pred_fallthru
      _
    // Predicated region
    $region26: #{attention_decoder.1} parent=1 // pred_check
      _
    $region27: #{attention_decoder.1} parent=1 // pred_check_branch
      %48 = sbr.rel (0) target = $region29
    $region28: #{attention_decoder.1} parent=1 // pred_region
      %s50 = ssub.s32 1536, 1536
      %51 = vsyncadd [#allocation8], %s50
      %s52 = sshll.u32 [#allocation7], 4
      %s53 = int_to_ptr.vmem [resolvable:$true] %s52
      %58 = dma.hbm_to_vmem [thread:$0]  %s6, 1536, %s53, [#allocation8], 128, 128, 8
    $region29: #{attention_decoder.1} parent=1 // pred_fallthru
      _
    // Predicated region
    $region30: #{attention_decoder.1} parent=1 // pred_check
      _
    $region31: #{attention_decoder.1} parent=1 // pred_check_branch
      %60 = sbr.rel (0) target = $region33
    $region32: #{attention_decoder.1} parent=1 // pred_region
      _
    $region33: #{attention_decoder.1} parent=1 // pred_fallthru
      _
    // Predicated region
    $region34: #{attention_decoder.1} parent=1 // pred_check
      _
    $region35: #{attention_decoder.1} parent=1 // pred_check_branch
      %62 = sbr.rel (0) target = $region37
    $region36: #{attention_decoder.1} parent=1 // pred_region
      %s64 = ssub.s32 1536, 1536
      %65 = vsyncadd [#allocation10], %s64
      %s66 = sshll.u32 [#allocation9], 4
      %s67 = int_to_ptr.vmem [resolvable:$true] %s66
      %72 = dma.hbm_to_vmem [thread:$0]  %s8, 1536, %s67, [#allocation10], 128, 128, 8
    $region37: #{attention_decoder.1} parent=1 // pred_fallthru
      _
    // Predicated region
    $region38: #{attention_decoder.1} parent=1 // pred_check
      _
    $region39: #{attention_decoder.1} parent=1 // pred_check_branch
      %74 = sbr.rel (0) target = $region41
    $region40: #{attention_decoder.1} parent=1 // pred_region
      %s76 = ssub.s32 1536, 1536
      %77 = vsyncadd [#allocation10], %s76
      %s78 = sshll.u32 [#allocation11], 4
      %s79 = int_to_ptr.vmem [resolvable:$true] %s78
      %84 = dma.hbm_to_vmem [thread:$0]  %s9, 1536, %s79, [#allocation10], 128, 128, 8
    $region41: #{attention_decoder.1} parent=1 // pred_fallthru
      _
    // Predicated region
    $region42: #{attention_decoder.1} parent=1 // pred_check
      _
    $region43: #{attention_decoder.1} parent=1 // pred_check_branch
      %86 = sbr.rel (0) target = $region45
    $region44: #{attention_decoder.1} parent=1 // pred_region
      %s88 = ssub.s32 64, 64
      %89 = vsyncadd [#allocation13], %s88
      %s91 = sshll.u32 [#allocation12], 4
      %s92 = int_to_ptr.vmem [resolvable:$true] %s91
      %94 = dma.hbm_to_vmem [thread:$0]  %s10, 64, %s92, [#allocation13]
    $region45: #{attention_decoder.1} parent=1 // pred_fallthru
      _
    // Predicated region
    $region46: #{attention_decoder.1} parent=1 // pred_check
      _
    $region47: #{attention_decoder.1} parent=1 // pred_check_branch
      %96 = sbr.rel (0) target = $region49
    $region48: #{attention_decoder.1} parent=1 // pred_region
      %s98 = ssub.s32 1536, 1536
      %99 = vsyncadd [#allocation13], %s98
      %s100 = sshll.u32 [#allocation14], 4
      %s101 = int_to_ptr.vmem [resolvable:$true] %s100
      %106 = dma.hbm_to_vmem [thread:$0]  %s11, 1536, %s101, [#allocation13], 128, 128, 8
    $region49: #{attention_decoder.1} parent=1 // pred_fallthru
      _
    // Predicated region
    $region50: #{attention_decoder.1} parent=1 // pred_check
      _
    $region51: #{attention_decoder.1} parent=1 // pred_check_branch
      %108 = sbr.rel (0) target = $region53
    $region52: #{attention_decoder.1} parent=1 // pred_region
      %s110 = ssub.s32 1536, 1536
      %111 = vsyncadd [#allocation16], %s110
      %s112 = sshll.u32 [#allocation15], 4
      %s113 = int_to_ptr.vmem [resolvable:$true] %s112
      %118 = dma.hbm_to_vmem [thread:$0]  %s12, 1536, %s113, [#allocation16], 128, 128, 8
    $region53: #{attention_decoder.1} parent=1 // pred_fallthru
      _
    // Predicated region
    $region54: #{attention_decoder.1} parent=1 // pred_check
      _
    $region55: #{attention_decoder.1} parent=1 // pred_check_branch
      %120 = sbr.rel (0) target = $region57
    $region56: #{attention_decoder.1} parent=1 // pred_region
      %s122 = ssub.s32 64, 64
      %123 = vsyncadd [#allocation16], %s122
      %s125 = sshll.u32 [#allocation17], 4
      %s126 = int_to_ptr.vmem [resolvable:$true] %s125
      %128 = dma.hbm_to_vmem [thread:$0]  %s13, 64, %s126, [#allocation16]
    $region57: #{attention_decoder.1} parent=1 // pred_fallthru
      _
    // Predicated region
    $region58: #{attention_decoder.1} parent=1 // pred_check
      _
    $region59: #{attention_decoder.1} parent=1 // pred_check_branch
      %130 = sbr.rel (0) target = $region61
    $region60: #{attention_decoder.1} parent=1 // pred_region
      %s132 = ssub.s32 1024, 1024
      %133 = vsyncadd [#allocation19], %s132
      %s134 = sshll.u32 [#allocation18], 4
      %s135 = int_to_ptr.vmem [resolvable:$true] %s134
      %140 = dma.hbm_to_vmem [thread:$0]  %s14, 1024, %s135, [#allocation19], 128, 128, 8
    $region61: #{attention_decoder.1} parent=1 // pred_fallthru
      _
    // Predicated region
    $region62: #{attention_decoder.1} parent=1 // pred_check
      _
    $region63: #{attention_decoder.1} parent=1 // pred_check_branch
      %142 = sbr.rel (0) target = $region65
    $region64: #{attention_decoder.1} parent=1 // pred_region
      %s144 = ssub.s32 64, 64
      %145 = vsyncadd [#allocation19], %s144
      %s147 = sshll.u32 [#allocation20], 4
      %s148 = int_to_ptr.vmem [resolvable:$true] %s147
      %150 = dma.hbm_to_vmem [thread:$0]  %s15, 64, %s148, [#allocation19]
    $region65: #{attention_decoder.1} parent=1 // pred_fallthru
      _
    // Predicated region
    $region66: #{attention_decoder.1} parent=1 // pred_check
      _
    $region67: #{attention_decoder.1} parent=1 // pred_check_branch
      %152 = sbr.rel (0) target = $region69
    $region68: #{attention_decoder.1} parent=1 // pred_region
      %s154 = ssub.s32 1024, 1024
      %155 = vsyncadd [#allocation22], %s154
      %s156 = sshll.u32 [#allocation21], 4
      %s157 = int_to_ptr.vmem [resolvable:$true] %s156
      %162 = dma.hbm_to_vmem [thread:$0]  %s16, 1024, %s157, [#allocation22], 128, 128, 8
    $region69: #{attention_decoder.1} parent=1 // pred_fallthru
      _
    // Predicated region
    $region70: #{attention_decoder.1} parent=1 // pred_check
      _
    $region71: #{attention_decoder.1} parent=1 // pred_check_branch
      %164 = sbr.rel (0) target = $region73
    $region72: #{attention_decoder.1} parent=1 // pred_region
      %s166 = ssub.s32 512, 512
      %167 = vsyncadd [#allocation22], %s166
      %s168 = sshll.u32 [#allocation23], 4
      %s169 = int_to_ptr.vmem [resolvable:$true] %s168
      %174 = dma.hbm_to_vmem [thread:$0]  %s17, 512, %s169, [#allocation22], 128, 128, 8
    $region73: #{attention_decoder.1} parent=1 // pred_fallthru
      _
    // Predicated region
    $region74: #{attention_decoder.1} parent=1 // pred_check
      _
    $region75: #{attention_decoder.1} parent=1 // pred_check_branch
      %176 = sbr.rel (0) target = $region77
    $region76: #{attention_decoder.1} parent=1 // pred_region
      %s178 = ssub.s32 16, 16
      %179 = vsyncadd [#allocation25], %s178
      %s181 = sshll.u32 [#allocation24], 4
      %s182 = int_to_ptr.vmem [resolvable:$true] %s181
      %184 = dma.hbm_to_vmem [thread:$0]  %s18, 16, %s182, [#allocation25]
    $region77: #{attention_decoder.1} parent=1 // pred_fallthru
      _
    // Predicated region
    $region78: #{attention_decoder.1} parent=1 // pred_check
      _
    $region79: #{attention_decoder.1} parent=1 // pred_check_branch
      %186 = sbr.rel (0) target = $region81
    $region80: #{attention_decoder.1} parent=1 // pred_region
      %187 = dma.done [#allocation8], 1536
    $region81: #{attention_decoder.1} parent=1 // pred_fallthru
      _
    // Predicated region
    $region82: #{attention_decoder.1} parent=1 // pred_check
      _
    $region83: #{attention_decoder.1} parent=1 // pred_check_branch
      %189 = sbr.rel (0) target = $region85
    $region84: #{attention_decoder.1} parent=1 // pred_region
      %190 = dma.done [#allocation10], 1536
    $region85: #{attention_decoder.1} parent=1 // pred_fallthru
      _
    // Predicated region
    $region86: #{attention_decoder.1} parent=1 // pred_check
      _
    $region87: #{attention_decoder.1} parent=1 // pred_check_branch
      %192 = sbr.rel (0) target = $region89
    $region88: #{attention_decoder.1} parent=1 // pred_region
      %193 = dma.done [#allocation10], 1536
    $region89: #{attention_decoder.1} parent=1 // pred_fallthru
      _
    // Predicated region
    $region90: #{attention_decoder.1} parent=1 // pred_check
      _
    $region91: #{attention_decoder.1} parent=1 // pred_check_branch
      %195 = sbr.rel (0) target = $region93
    $region92: #{attention_decoder.1} parent=1 // pred_region
      %196 = dma.done [#allocation13], 64
    $region93: #{attention_decoder.1} parent=1 // pred_fallthru
      _
    // Predicated region
    $region94: #{attention_decoder.1} parent=1 // pred_check
      _
    $region95: #{attention_decoder.1} parent=1 // pred_check_branch
      %198 = sbr.rel (0) target = $region97
    $region96: #{attention_decoder.1} parent=1 // pred_region
      %199 = dma.done [#allocation13], 1536
    $region97: #{attention_decoder.1} parent=1 // pred_fallthru
      _
    // Predicated region
    $region98: #{attention_decoder.1} parent=1 // pred_check
      _
    $region99: #{attention_decoder.1} parent=1 // pred_check_branch
      %201 = sbr.rel (0) target = $region101
    $region100: #{attention_decoder.1} parent=1 // pred_region
      %202 = dma.done [#allocation16], 1536
    $region101: #{attention_decoder.1} parent=1 // pred_fallthru
      _
    // Predicated region
    $region102: #{attention_decoder.1} parent=1 // pred_check
      _
    $region103: #{attention_decoder.1} parent=1 // pred_check_branch
      %204 = sbr.rel (0) target = $region105
    $region104: #{attention_decoder.1} parent=1 // pred_region
      %205 = dma.done [#allocation16], 64
    $region105: #{attention_decoder.1} parent=1 // pred_fallthru
      _
    // Predicated region
    $region106: #{attention_decoder.1} parent=1 // pred_check
      _
    $region107: #{attention_decoder.1} parent=1 // pred_check_branch
      %207 = sbr.rel (0) target = $region109
    $region108: #{attention_decoder.1} parent=1 // pred_region
      %208 = dma.done [#allocation19], 1024
    $region109: #{attention_decoder.1} parent=1 // pred_fallthru
      _
    // Predicated region
    $region110: #{attention_decoder.1} parent=1 // pred_check
      _
    $region111: #{attention_decoder.1} parent=1 // pred_check_branch
      %210 = sbr.rel (0) target = $region113
    $region112: #{attention_decoder.1} parent=1 // pred_region
      %211 = dma.done [#allocation19], 64
    $region113: #{attention_decoder.1} parent=1 // pred_fallthru
      _
    // Predicated region
    $region114: #{attention_decoder.1} parent=1 // pred_check
      _
    $region115: #{attention_decoder.1} parent=1 // pred_check_branch
      %213 = sbr.rel (0) target = $region117
    $region116: #{attention_decoder.1} parent=1 // pred_region
      %214 = dma.done [#allocation22], 1024
    $region117: #{attention_decoder.1} parent=1 // pred_fallthru
      _
    // Predicated region
    $region118: #{attention_decoder.1} parent=1 // pred_check
      _
    $region119: #{attention_decoder.1} parent=1 // pred_check_branch
      %216 = sbr.rel (0) target = $region121
    $region120: #{attention_decoder.1} parent=1 // pred_region
      %217 = dma.done [#allocation22], 512
    $region121: #{attention_decoder.1} parent=1 // pred_fallthru
      _
    // Predicated region
    $region122: #{attention_decoder.1} parent=1 // pred_check
      _
    $region123: #{attention_decoder.1} parent=1 // pred_check_branch
      %219 = sbr.rel (0) target = $region125
    $region124: #{attention_decoder.1} parent=1 // pred_region
      %220 = dma.done [#allocation25], 16
    $region125: #{attention_decoder.1} parent=1 // pred_fallthru
      _
    %p221 = scmp.eq.s32.totalorder 0, 0
    // Predicated region
    $region126: #{attention_decoder.1} parent=1 // pred_check
      %p222 = pneg %p221
    $region127: #{attention_decoder.1} parent=1 // pred_check_branch
      %224 = sbr.rel (%p222) target = $region129
    $region128: #{attention_decoder.1} parent=1 // pred_region
      %v225 = vld [vmem:[%s1] sm:$0x3]
      %v226 = vld [vmem:[%s2] sm:$0x3]
      %v227 = vld [vmem:[%s5] sm:$0xff]
      %v228 = vld [vmem:[%s5 + $0x8] sm:$0xff]
      %v229 = vld [vmem:[#allocation7] sm:$0xff]
      %v230 = vld [vmem:[#allocation7 + $0x8] sm:$0xff]
      %v231 = vld [vmem:[#allocation7 + $0x10] sm:$0xff]
      %v232 = vld [vmem:[#allocation7 + $0x18] sm:$0xff]
      %vm233 = vcmask 261120
      %v235 = vsel %vm233, %v226, 0
      %237 = vmatprep.subr.mxu0 0.0
      %238 = vmatpush1.msra.mxu0 %v229
      %239 = vmatprep.subr.mxu0 0.0
      %240 = vmatpush1.msra.mxu0 %v230
      %241 = vmatprep.subr.mxu0 0.0
      %242 = vmatpush1.msra.mxu0 %v231
      %243 = vmatprep.subr.mxu0 0.0
      %244 = vmatpush1.msra.mxu0 %v232
      %245 = vmatprep.subr.mxu0 0.0
      %246 = vmatpush1.msra.mxu0 0.0
      %247 = vmatprep.subr.mxu0 0.0
      %248 = vmatpush1.msra.mxu0 0.0
      %249 = vmatprep.subr.mxu0 0.0
      %250 = vmatpush1.msra.mxu0 0.0
      %251 = vmatprep.subr.mxu0 0.0
      %252 = vmatpush1.msra.mxu0 0.0
      %253 = vmatprep.subr.mxu0 0.0
      %254 = vmatpush1.msra.mxu0 0.0
      %255 = vmatprep.subr.mxu0 0.0
      %256 = vmatpush1.msra.mxu0 0.0
      %257 = vmatprep.subr.mxu0 0.0
      %258 = vmatpush1.msra.mxu0 0.0
      %259 = vmatprep.subr.mxu0 0.0
      %260 = vmatpush1.msra.mxu0 0.0
      %261 = vmatprep.subr.mxu0 0.0
      %262 = vmatpush1.msra.mxu0 0.0
      %263 = vmatprep.subr.mxu0 0.0
      %264 = vmatpush1.msra.mxu0 0.0
      %265 = vmatprep.subr.mxu0 0.0
      %266 = vmatpush1.msra.mxu0 0.0
      %267 = vmatprep.subr.mxu0 0.0
      %268 = vmatpush1.msra.mxu0 0.0
      %269 = vmatprep.subr.mxu0 0.0
      %270 = vmatpush1.msra.mxu0 0.0
      %271 = vmatprep.subr.mxu0 0.0
      %272 = vmatpush1.msra.mxu0 0.0
      %273 = vmatprep.subr.mxu0 0.0
      %274 = vmatpush1.msra.mxu0 0.0
      %275 = vmatprep.subr.mxu0 0.0
      %276 = vmatpush1.msra.mxu0 0.0
      %277 = vmatprep.subr.mxu0 0.0
      %278 = vmatpush1.msra.mxu0 0.0
      %279 = vmatprep.subr.mxu0 0.0
      %280 = vmatpush1.msra.mxu0 0.0
      %281 = vmatprep.subr.mxu0 0.0
      %282 = vmatpush1.msra.mxu0 0.0
      %283 = vmatprep.subr.mxu0 0.0
      %284 = vmatpush1.msra.mxu0 0.0
      %285 = vmatprep.subr.mxu0 0.0
      %286 = vmatpush1.msra.mxu0 0.0
      %287 = vmatprep.subr.mxu0 0.0
      %288 = vmatpush1.msra.mxu0 0.0
      %289 = vmatprep.subr.mxu0 0.0
      %290 = vmatpush1.msra.mxu0 0.0
      %291 = vmatprep.subr.mxu0 0.0
      %292 = vmatpush1.msra.mxu0 0.0
      %293 = vmatprep.subr.mxu0 0.0
      %294 = vmatpush1.msra.mxu0 0.0
      %295 = vmatprep.subr.mxu0 0.0
      %296 = vmatpush1.msra.mxu0 0.0
      %297 = vmatprep.subr.mxu0 0.0
      %298 = vmatpush1.msra.mxu0 0.0
      %299 = vmatprep.subr.mxu0 0.0
      %300 = vmatpush1.msra.mxu0 0.0
      %301 = vmatprep.mubr.f32.mxu0 0.0
      %302 = vmatmul.mubr.f32.gmra.mrb[0].mxu0 %v235
      %v303 = vpop.f32.mrb[0].mxu0
      %v304 = vadd.f32 0.0, %v303
      %v305 = vpop.f32.mrb[0].mxu0
      %306 = vdwg.mxu0
      %vm307 = vcmask 130048
      %v309 = vsel %vm307, %v225, 0
      %311 = vmatprep.subr.mxu0 0.0
      %312 = vmatpush1.msra.mxu0 %v227
      %313 = vmatprep.subr.mxu0 0.0
      %314 = vmatpush1.msra.mxu0 %v228
      %315 = vmatprep.subr.mxu0 0.0
      %316 = vmatpush1.msra.mxu0 0.0
      %317 = vmatprep.subr.mxu0 0.0
      %318 = vmatpush1.msra.mxu0 0.0
      %319 = vmatprep.subr.mxu0 0.0
      %320 = vmatpush1.msra.mxu0 0.0
      %321 = vmatprep.subr.mxu0 0.0
      %322 = vmatpush1.msra.mxu0 0.0
      %323 = vmatprep.subr.mxu0 0.0
      %324 = vmatpush1.msra.mxu0 0.0
      %325 = vmatprep.subr.mxu0 0.0
      %326 = vmatpush1.msra.mxu0 0.0
      %327 = vmatprep.subr.mxu0 0.0
      %328 = vmatpush1.msra.mxu0 0.0
      %329 = vmatprep.subr.mxu0 0.0
      %330 = vmatpush1.msra.mxu0 0.0
      %331 = vmatprep.subr.mxu0 0.0
      %332 = vmatpush1.msra.mxu0 0.0
      %333 = vmatprep.subr.mxu0 0.0
      %334 = vmatpush1.msra.mxu0 0.0
      %335 = vmatprep.subr.mxu0 0.0
      %336 = vmatpush1.msra.mxu0 0.0
      %337 = vmatprep.subr.mxu0 0.0
      %338 = vmatpush1.msra.mxu0 0.0
      %339 = vmatprep.subr.mxu0 0.0
      %340 = vmatpush1.msra.mxu0 0.0
      %341 = vmatprep.subr.mxu0 0.0
      %342 = vmatpush1.msra.mxu0 0.0
      %343 = vmatprep.subr.mxu0 0.0
      %344 = vmatpush1.msra.mxu0 0.0
      %345 = vmatprep.subr.mxu0 0.0
      %346 = vmatpush1.msra.mxu0 0.0
      %347 = vmatprep.subr.mxu0 0.0
      %348 = vmatpush1.msra.mxu0 0.0
      %349 = vmatprep.subr.mxu0 0.0
      %350 = vmatpush1.msra.mxu0 0.0
      %351 = vmatprep.subr.mxu0 0.0
      %352 = vmatpush1.msra.mxu0 0.0
      %353 = vmatprep.subr.mxu0 0.0
      %354 = vmatpush1.msra.mxu0 0.0
      %355 = vmatprep.subr.mxu0 0.0
      %356 = vmatpush1.msra.mxu0 0.0
      %357 = vmatprep.subr.mxu0 0.0
      %358 = vmatpush1.msra.mxu0 0.0
      %359 = vmatprep.subr.mxu0 0.0
      %360 = vmatpush1.msra.mxu0 0.0
      %361 = vmatprep.subr.mxu0 0.0
      %362 = vmatpush1.msra.mxu0 0.0
      %363 = vmatprep.subr.mxu0 0.0
      %364 = vmatpush1.msra.mxu0 0.0
      %365 = vmatprep.subr.mxu0 0.0
      %366 = vmatpush1.msra.mxu0 0.0
      %367 = vmatprep.subr.mxu0 0.0
      %368 = vmatpush1.msra.mxu0 0.0
      %369 = vmatprep.subr.mxu0 0.0
      %370 = vmatpush1.msra.mxu0 0.0
      %371 = vmatprep.subr.mxu0 0.0
      %372 = vmatpush1.msra.mxu0 0.0
      %373 = vmatprep.subr.mxu0 0.0
      %374 = vmatpush1.msra.mxu0 0.0
      %375 = vmatprep.mubr.f32.mxu0 0.0
      %376 = vmatmul.mubr.f32.gmra.mrb[0].mxu0 %v309
      %v377 = vpop.f32.mrb[0].mxu0
      %v378 = vadd.f32 %v304, %v377
      %v379 = vpop.f32.mrb[0].mxu0
      %380 = vdwg.mxu0
      %v381 = vld [vmem:[%s7] sm:$0x1]
      %v382 = vlaneseq
      %v383 = vshrl.u32 %v382, 7
      %v384 = vsub.s32 0, %v383
      %v385 = vrot.slane %v381, %v384
      %v386 = vadd.f32 %v378, %v385
      %v387 = vmul.f32 %v386, 0.5
      %v388 = vtanh.pop %v387
      %v389 = vadd.f32 %v388, 1.0
      %v390 = vmul.f32 %v389, 0.5
      %s391 = scalar_lea.vmem %s5, 16
      %v392 = vld [vmem:[%s391] sm:$0xff]
      %v393 = vld [vmem:[%s391 + $0x8] sm:$0xff]
      %s394 = scalar_lea.vmem [#allocation7], 32
      %v395 = vld [vmem:[%s394] sm:$0xff]
      %v396 = vld [vmem:[%s394 + $0x8] sm:$0xff]
      %v397 = vld [vmem:[%s394 + $0x10] sm:$0xff]
      %v398 = vld [vmem:[%s394 + $0x18] sm:$0xff]
      %399 = vmatprep.subr.mxu0 0.0
      %400 = vmatpush1.msra.mxu0 %v395
      %401 = vmatprep.subr.mxu0 0.0
      %402 = vmatpush1.msra.mxu0 %v396
      %403 = vmatprep.subr.mxu0 0.0
      %404 = vmatpush1.msra.mxu0 %v397
      %405 = vmatprep.subr.mxu0 0.0
      %406 = vmatpush1.msra.mxu0 %v398
      %407 = vmatprep.subr.mxu0 0.0
      %408 = vmatpush1.msra.mxu0 0.0
      %409 = vmatprep.subr.mxu0 0.0
      %410 = vmatpush1.msra.mxu0 0.0
      %411 = vmatprep.subr.mxu0 0.0
      %412 = vmatpush1.msra.mxu0 0.0
      %413 = vmatprep.subr.mxu0 0.0
      %414 = vmatpush1.msra.mxu0 0.0
      %415 = vmatprep.subr.mxu0 0.0
      %416 = vmatpush1.msra.mxu0 0.0
      %417 = vmatprep.subr.mxu0 0.0
      %418 = vmatpush1.msra.mxu0 0.0
      %419 = vmatprep.subr.mxu0 0.0
      %420 = vmatpush1.msra.mxu0 0.0
      %421 = vmatprep.subr.mxu0 0.0
      %422 = vmatpush1.msra.mxu0 0.0
      %423 = vmatprep.subr.mxu0 0.0
      %424 = vmatpush1.msra.mxu0 0.0
      %425 = vmatprep.subr.mxu0 0.0
      %426 = vmatpush1.msra.mxu0 0.0
      %427 = vmatprep.subr.mxu0 0.0
      %428 = vmatpush1.msra.mxu0 0.0
      %429 = vmatprep.subr.mxu0 0.0
      %430 = vmatpush1.msra.mxu0 0.0
      %431 = vmatprep.subr.mxu0 0.0
      %432 = vmatpush1.msra.mxu0 0.0
      %433 = vmatprep.subr.mxu0 0.0
      %434 = vmatpush1.msra.mxu0 0.0
      %435 = vmatprep.subr.mxu0 0.0
      %436 = vmatpush1.msra.mxu0 0.0
      %437 = vmatprep.subr.mxu0 0.0
      %438 = vmatpush1.msra.mxu0 0.0
      %439 = vmatprep.subr.mxu0 0.0
      %440 = vmatpush1.msra.mxu0 0.0
      %441 = vmatprep.subr.mxu0 0.0
      %442 = vmatpush1.msra.mxu0 0.0
      %443 = vmatprep.subr.mxu0 0.0
      %444 = vmatpush1.msra.mxu0 0.0
      %445 = vmatprep.subr.mxu0 0.0
      %446 = vmatpush1.msra.mxu0 0.0
      %447 = vmatprep.subr.mxu0 0.0
      %448 = vmatpush1.msra.mxu0 0.0
      %449 = vmatprep.subr.mxu0 0.0
      %450 = vmatpush1.msra.mxu0 0.0
      %451 = vmatprep.subr.mxu0 0.0
      %452 = vmatpush1.msra.mxu0 0.0
      %453 = vmatprep.subr.mxu0 0.0
      %454 = vmatpush1.msra.mxu0 0.0
      %455 = vmatprep.subr.mxu0 0.0
      %456 = vmatpush1.msra.mxu0 0.0
      %457 = vmatprep.subr.mxu0 0.0
      %458 = vmatpush1.msra.mxu0 0.0
      %459 = vmatprep.subr.mxu0 0.0
      %460 = vmatpush1.msra.mxu0 0.0
      %461 = vmatprep.subr.mxu0 0.0
      %462 = vmatpush1.msra.mxu0 0.0
      %463 = vmatprep.mubr.f32.mxu0 0.0
      %464 = vmatmul.mubr.f32.gmra.mrb[0].mxu0 %v235
      %v465 = vpop.f32.mrb[0].mxu0
      %v466 = vadd.f32 0.0, %v465
      %v467 = vpop.f32.mrb[0].mxu0
      %468 = vdwg.mxu0
      %469 = vmatprep.subr.mxu0 0.0
      %470 = vmatpush1.msra.mxu0 %v392
      %471 = vmatprep.subr.mxu0 0.0
      %472 = vmatpush1.msra.mxu0 %v393
      %473 = vmatprep.subr.mxu0 0.0
      %474 = vmatpush1.msra.mxu0 0.0
      %475 = vmatprep.subr.mxu0 0.0
      %476 = vmatpush1.msra.mxu0 0.0
      %477 = vmatprep.subr.mxu0 0.0
      %478 = vmatpush1.msra.mxu0 0.0
      %479 = vmatprep.subr.mxu0 0.0
      %480 = vmatpush1.msra.mxu0 0.0
      %481 = vmatprep.subr.mxu0 0.0
      %482 = vmatpush1.msra.mxu0 0.0
      %483 = vmatprep.subr.mxu0 0.0
      %484 = vmatpush1.msra.mxu0 0.0
      %485 = vmatprep.subr.mxu0 0.0
      %486 = vmatpush1.msra.mxu0 0.0
      %487 = vmatprep.subr.mxu0 0.0
      %488 = vmatpush1.msra.mxu0 0.0
      %489 = vmatprep.subr.mxu0 0.0
      %490 = vmatpush1.msra.mxu0 0.0
      %491 = vmatprep.subr.mxu0 0.0
      %492 = vmatpush1.msra.mxu0 0.0
      %493 = vmatprep.subr.mxu0 0.0
      %494 = vmatpush1.msra.mxu0 0.0
      %495 = vmatprep.subr.mxu0 0.0
      %496 = vmatpush1.msra.mxu0 0.0
      %497 = vmatprep.subr.mxu0 0.0
      %498 = vmatpush1.msra.mxu0 0.0
      %499 = vmatprep.subr.mxu0 0.0
      %500 = vmatpush1.msra.mxu0 0.0
      %501 = vmatprep.subr.mxu0 0.0
      %502 = vmatpush1.msra.mxu0 0.0
      %503 = vmatprep.subr.mxu0 0.0
      %504 = vmatpush1.msra.mxu0 0.0
      %505 = vmatprep.subr.mxu0 0.0
      %506 = vmatpush1.msra.mxu0 0.0
      %507 = vmatprep.subr.mxu0 0.0
      %508 = vmatpush1.msra.mxu0 0.0
      %509 = vmatprep.subr.mxu0 0.0
      %510 = vmatpush1.msra.mxu0 0.0
      %511 = vmatprep.subr.mxu0 0.0
      %512 = vmatpush1.msra.mxu0 0.0
      %513 = vmatprep.subr.mxu0 0.0
      %514 = vmatpush1.msra.mxu0 0.0
      %515 = vmatprep.subr.mxu0 0.0
      %516 = vmatpush1.msra.mxu0 0.0
      %517 = vmatprep.subr.mxu0 0.0
      %518 = vmatpush1.msra.mxu0 0.0
      %519 = vmatprep.subr.mxu0 0.0
      %520 = vmatpush1.msra.mxu0 0.0
      %521 = vmatprep.subr.mxu0 0.0
      %522 = vmatpush1.msra.mxu0 0.0
      %523 = vmatprep.subr.mxu0 0.0
      %524 = vmatpush1.msra.mxu0 0.0
      %525 = vmatprep.subr.mxu0 0.0
      %526 = vmatpush1.msra.mxu0 0.0
      %527 = vmatprep.subr.mxu0 0.0
      %528 = vmatpush1.msra.mxu0 0.0
      %529 = vmatprep.subr.mxu0 0.0
      %530 = vmatpush1.msra.mxu0 0.0
      %531 = vmatprep.subr.mxu0 0.0
      %532 = vmatpush1.msra.mxu0 0.0
      %533 = vmatprep.mubr.f32.mxu0 0.0
      %534 = vmatmul.mubr.f32.gmra.mrb[0].mxu0 %v309
      %v535 = vpop.f32.mrb[0].mxu0
      %v536 = vadd.f32 %v466, %v535
      %v537 = vpop.f32.mrb[0].mxu0
      %538 = vdwg.mxu0
      %v539 = vld [vmem:[%s7 + $0x1] sm:$0x1]
      %v540 = vlaneseq
      %v541 = vshrl.u32 %v540, 7
      %v542 = vsub.s32 0, %v541
      %v543 = vrot.slane %v539, %v542
      %v544 = vadd.f32 %v536, %v543
      %v545 = vmul.f32 %v544, 0.5
      %v546 = vtanh.pop %v545
      %v547 = vadd.f32 %v546, 1.0
      %v548 = vmul.f32 %v547, 0.5
      %s549 = scalar_lea.vmem %s5, 32
      %v550 = vld [vmem:[%s549] sm:$0xff]
      %v551 = vld [vmem:[%s549 + $0x8] sm:$0xff]
      %v552 = vld [vmem:[%s7 + $0x2] sm:$0x1]
      %v553 = vlaneseq
      %v554 = vshrl.u32 %v553, 7
      %v555 = vsub.s32 0, %v554
      %v556 = vrot.slane %v552, %v555
      %557 = vmatprep.subr.mxu0 0.0
      %558 = vmatpush1.msra.mxu0 %v550
      %559 = vmatprep.subr.mxu0 0.0
      %560 = vmatpush1.msra.mxu0 %v551
      %561 = vmatprep.subr.mxu0 0.0
      %562 = vmatpush1.msra.mxu0 0.0
      %563 = vmatprep.subr.mxu0 0.0
      %564 = vmatpush1.msra.mxu0 0.0
      %565 = vmatprep.subr.mxu0 0.0
      %566 = vmatpush1.msra.mxu0 0.0
      %567 = vmatprep.subr.mxu0 0.0
      %568 = vmatpush1.msra.mxu0 0.0
      %569 = vmatprep.subr.mxu0 0.0
      %570 = vmatpush1.msra.mxu0 0.0
      %571 = vmatprep.subr.mxu0 0.0
      %572 = vmatpush1.msra.mxu0 0.0
      %573 = vmatprep.subr.mxu0 0.0
      %574 = vmatpush1.msra.mxu0 0.0
      %575 = vmatprep.subr.mxu0 0.0
      %576 = vmatpush1.msra.mxu0 0.0
      %577 = vmatprep.subr.mxu0 0.0
      %578 = vmatpush1.msra.mxu0 0.0
      %579 = vmatprep.subr.mxu0 0.0
      %580 = vmatpush1.msra.mxu0 0.0
      %581 = vmatprep.subr.mxu0 0.0
      %582 = vmatpush1.msra.mxu0 0.0
      %583 = vmatprep.subr.mxu0 0.0
      %584 = vmatpush1.msra.mxu0 0.0
      %585 = vmatprep.subr.mxu0 0.0
      %586 = vmatpush1.msra.mxu0 0.0
      %587 = vmatprep.subr.mxu0 0.0
      %588 = vmatpush1.msra.mxu0 0.0
      %589 = vmatprep.subr.mxu0 0.0
      %590 = vmatpush1.msra.mxu0 0.0
      %591 = vmatprep.subr.mxu0 0.0
      %592 = vmatpush1.msra.mxu0 0.0
      %593 = vmatprep.subr.mxu0 0.0
      %594 = vmatpush1.msra.mxu0 0.0
      %595 = vmatprep.subr.mxu0 0.0
      %596 = vmatpush1.msra.mxu0 0.0
      %597 = vmatprep.subr.mxu0 0.0
      %598 = vmatpush1.msra.mxu0 0.0
      %599 = vmatprep.subr.mxu0 0.0
      %600 = vmatpush1.msra.mxu0 0.0
      %601 = vmatprep.subr.mxu0 0.0
      %602 = vmatpush1.msra.mxu0 0.0
      %603 = vmatprep.subr.mxu0 0.0
      %604 = vmatpush1.msra.mxu0 0.0
      %605 = vmatprep.subr.mxu0 0.0
      %606 = vmatpush1.msra.mxu0 0.0
      %607 = vmatprep.subr.mxu0 0.0
      %608 = vmatpush1.msra.mxu0 0.0
      %609 = vmatprep.subr.mxu0 0.0
      %610 = vmatpush1.msra.mxu0 0.0
      %611 = vmatprep.subr.mxu0 0.0
      %612 = vmatpush1.msra.mxu0 0.0
      %613 = vmatprep.subr.mxu0 0.0
      %614 = vmatpush1.msra.mxu0 0.0
      %615 = vmatprep.subr.mxu0 0.0
      %616 = vmatpush1.msra.mxu0 0.0
      %617 = vmatprep.subr.mxu0 0.0
      %618 = vmatpush1.msra.mxu0 0.0
      %619 = vmatprep.subr.mxu0 0.0
      %620 = vmatpush1.msra.mxu0 0.0
      %621 = vmatprep.mubr.f32.mxu0 0.0
      %622 = vmatmul.mubr.f32.gmra.mrb[0].mxu0 %v309
      %v623 = vpop.f32.mrb[0].mxu0
      %v624 = vadd.f32 %v556, %v623
      %v625 = vpop.f32.mrb[0].mxu0
      %626 = vdwg.mxu0
      %s627 = scalar_lea.vmem [#allocation7], 64
      %v628 = vld [vmem:[%s627] sm:$0xff]
      %v629 = vld [vmem:[%s627 + $0x8] sm:$0xff]
      %v630 = vld [vmem:[%s627 + $0x10] sm:$0xff]
      %v631 = vld [vmem:[%s627 + $0x18] sm:$0xff]
      %v632 = vld [vmem:[%s7 + $0x3] sm:$0x1]
      %v633 = vlaneseq
      %v634 = vshrl.u32 %v633, 7
      %v635 = vsub.s32 0, %v634
      %v636 = vrot.slane %v632, %v635
      %637 = vmatprep.subr.mxu0 0.0
      %638 = vmatpush1.msra.mxu0 %v628
      %639 = vmatprep.subr.mxu0 0.0
      %640 = vmatpush1.msra.mxu0 %v629
      %641 = vmatprep.subr.mxu0 0.0
      %642 = vmatpush1.msra.mxu0 %v630
      %643 = vmatprep.subr.mxu0 0.0
      %644 = vmatpush1.msra.mxu0 %v631
      %645 = vmatprep.subr.mxu0 0.0
      %646 = vmatpush1.msra.mxu0 0.0
      %647 = vmatprep.subr.mxu0 0.0
      %648 = vmatpush1.msra.mxu0 0.0
      %649 = vmatprep.subr.mxu0 0.0
      %650 = vmatpush1.msra.mxu0 0.0
      %651 = vmatprep.subr.mxu0 0.0
      %652 = vmatpush1.msra.mxu0 0.0
      %653 = vmatprep.subr.mxu0 0.0
      %654 = vmatpush1.msra.mxu0 0.0
      %655 = vmatprep.subr.mxu0 0.0
      %656 = vmatpush1.msra.mxu0 0.0
      %657 = vmatprep.subr.mxu0 0.0
      %658 = vmatpush1.msra.mxu0 0.0
      %659 = vmatprep.subr.mxu0 0.0
      %660 = vmatpush1.msra.mxu0 0.0
      %661 = vmatprep.subr.mxu0 0.0
      %662 = vmatpush1.msra.mxu0 0.0
      %663 = vmatprep.subr.mxu0 0.0
      %664 = vmatpush1.msra.mxu0 0.0
      %665 = vmatprep.subr.mxu0 0.0
      %666 = vmatpush1.msra.mxu0 0.0
      %667 = vmatprep.subr.mxu0 0.0
      %668 = vmatpush1.msra.mxu0 0.0
      %669 = vmatprep.subr.mxu0 0.0
      %670 = vmatpush1.msra.mxu0 0.0
      %671 = vmatprep.subr.mxu0 0.0
      %672 = vmatpush1.msra.mxu0 0.0
      %673 = vmatprep.subr.mxu0 0.0
      %674 = vmatpush1.msra.mxu0 0.0
      %675 = vmatprep.subr.mxu0 0.0
      %676 = vmatpush1.msra.mxu0 0.0
      %677 = vmatprep.subr.mxu0 0.0
      %678 = vmatpush1.msra.mxu0 0.0
      %679 = vmatprep.subr.mxu0 0.0
      %680 = vmatpush1.msra.mxu0 0.0
      %681 = vmatprep.subr.mxu0 0.0
      %682 = vmatpush1.msra.mxu0 0.0
      %683 = vmatprep.subr.mxu0 0.0
      %684 = vmatpush1.msra.mxu0 0.0
      %685 = vmatprep.subr.mxu0 0.0
      %686 = vmatpush1.msra.mxu0 0.0
      %687 = vmatprep.subr.mxu0 0.0
      %688 = vmatpush1.msra.mxu0 0.0
      %689 = vmatprep.subr.mxu0 0.0
      %690 = vmatpush1.msra.mxu0 0.0
      %691 = vmatprep.subr.mxu0 0.0
      %692 = vmatpush1.msra.mxu0 0.0
      %693 = vmatprep.subr.mxu0 0.0
      %694 = vmatpush1.msra.mxu0 0.0
      %695 = vmatprep.subr.mxu0 0.0
      %696 = vmatpush1.msra.mxu0 0.0
      %697 = vmatprep.subr.mxu0 0.0
      %698 = vmatpush1.msra.mxu0 0.0
      %699 = vmatprep.subr.mxu0 0.0
      %700 = vmatpush1.msra.mxu0 0.0
      %701 = vmatprep.mubr.f32.mxu0 0.0
      %702 = vmatmul.mubr.f32.gmra.mrb[0].mxu0 %v235
      %v703 = vpop.f32.mrb[0].mxu0
      %v704 = vadd.f32 %v636, %v703
      %v705 = vpop.f32.mrb[0].mxu0
      %706 = vdwg.mxu0
      %v707 = vmul.f32 %v390, %v704
      %v708 = vadd.f32 %v624, %v707
      %v709 = vtanh.pop %v708
      %v710 = vsub.f32 1.0, %v548
      %v711 = vmul.f32 %v710, %v709
      %v712 = vmul.f32 %v548, %v226
      %v713 = vadd.f32 %v711, %v712
      %vm714 = vcmask 254976
      %715 = vst.msk [vmem:[#allocation2] sm:$0x3] %vm714, %v713
      %716 = vst.msk [vmem:[%s20] sm:$0x3] %vm714, %v713
      %s717 = scalar_lea.vmem [#allocation18], 32
      %v718 = vld [vmem:[%s717] sm:$0xff]
      %v719 = vld [vmem:[%s717 + $0x8] sm:$0xff]
      %v720 = vld [vmem:[%s717 + $0x10] sm:$0xff]
      %v721 = vld [vmem:[%s717 + $0x18] sm:$0xff]
      %v722 = vld [vmem:[#allocation20] sm:$0x1]
      %v723 = vlaneseq
      %v724 = vshrl.u32 %v723, 7
      %v725 = vsub.s32 0, %v724
      %v726 = vrot.slane %v722, %v725
      %v728 = vsel %vm233, %v713, 0
      %730 = vmatprep.subr.mxu0 0.0
      %731 = vmatpush1.msra.mxu0 %v718
      %732 = vmatprep.subr.mxu0 0.0
      %733 = vmatpush1.msra.mxu0 %v719
      %734 = vmatprep.subr.mxu0 0.0
      %735 = vmatpush1.msra.mxu0 %v720
      %736 = vmatprep.subr.mxu0 0.0
      %737 = vmatpush1.msra.mxu0 %v721
      %738 = vmatprep.subr.mxu0 0.0
      %739 = vmatpush1.msra.mxu0 0.0
      %740 = vmatprep.subr.mxu0 0.0
      %741 = vmatpush1.msra.mxu0 0.0
      %742 = vmatprep.subr.mxu0 0.0
      %743 = vmatpush1.msra.mxu0 0.0
      %744 = vmatprep.subr.mxu0 0.0
      %745 = vmatpush1.msra.mxu0 0.0
      %746 = vmatprep.subr.mxu0 0.0
      %747 = vmatpush1.msra.mxu0 0.0
      %748 = vmatprep.subr.mxu0 0.0
      %749 = vmatpush1.msra.mxu0 0.0
      %750 = vmatprep.subr.mxu0 0.0
      %751 = vmatpush1.msra.mxu0 0.0
      %752 = vmatprep.subr.mxu0 0.0
      %753 = vmatpush1.msra.mxu0 0.0
      %754 = vmatprep.subr.mxu0 0.0
      %755 = vmatpush1.msra.mxu0 0.0
      %756 = vmatprep.subr.mxu0 0.0
      %757 = vmatpush1.msra.mxu0 0.0
      %758 = vmatprep.subr.mxu0 0.0
      %759 = vmatpush1.msra.mxu0 0.0
      %760 = vmatprep.subr.mxu0 0.0
      %761 = vmatpush1.msra.mxu0 0.0
      %762 = vmatprep.subr.mxu0 0.0
      %763 = vmatpush1.msra.mxu0 0.0
      %764 = vmatprep.subr.mxu0 0.0
      %765 = vmatpush1.msra.mxu0 0.0
      %766 = vmatprep.subr.mxu0 0.0
      %767 = vmatpush1.msra.mxu0 0.0
      %768 = vmatprep.subr.mxu0 0.0
      %769 = vmatpush1.msra.mxu0 0.0
      %770 = vmatprep.subr.mxu0 0.0
      %771 = vmatpush1.msra.mxu0 0.0
      %772 = vmatprep.subr.mxu0 0.0
      %773 = vmatpush1.msra.mxu0 0.0
      %774 = vmatprep.subr.mxu0 0.0
      %775 = vmatpush1.msra.mxu0 0.0
      %776 = vmatprep.subr.mxu0 0.0
      %777 = vmatpush1.msra.mxu0 0.0
      %778 = vmatprep.subr.mxu0 0.0
      %779 = vmatpush1.msra.mxu0 0.0
      %780 = vmatprep.subr.mxu0 0.0
      %781 = vmatpush1.msra.mxu0 0.0
      %782 = vmatprep.subr.mxu0 0.0
      %783 = vmatpush1.msra.mxu0 0.0
      %784 = vmatprep.subr.mxu0 0.0
      %785 = vmatpush1.msra.mxu0 0.0
      %786 = vmatprep.subr.mxu0 0.0
      %787 = vmatpush1.msra.mxu0 0.0
      %788 = vmatprep.subr.mxu0 0.0
      %789 = vmatpush1.msra.mxu0 0.0
      %790 = vmatprep.subr.mxu0 0.0
      %791 = vmatpush1.msra.mxu0 0.0
      %792 = vmatprep.subr.mxu0 0.0
      %793 = vmatpush1.msra.mxu0 0.0
      %794 = vmatprep.mubr.f32.mxu0 0.0
      %795 = vmatmul.mubr.f32.gmra.mrb[0].mxu0 %v728
      %v796 = vpop.f32.mrb[0].mxu0
      %v797 = vadd.f32 %v726, %v796
      %v798 = vpop.f32.mrb[0].mxu0
      %799 = vdwg.mxu0
      %800 = vst.msk [vmem:[#allocation3] sm:$0x3] %vm714, %v797
      %vm801 = vcmask 1024
      %802 = vst.msk [vmem:[#allocation4] sm:$0x3] %vm801, -1e+30
      %803 = vst.msk [vmem:[#allocation5] sm:$0x3] %vm801, 0.0
      %804 = vst.msk [vmem:[#allocation6] sm:$0x3] %vm714, 0.0
    $region129: #{attention_decoder.1} parent=1 // pred_fallthru
      _
    %v805 = vld [vmem:[%s0] sm:$0xff]
    %v806 = vld [vmem:[%s0 + $0x8] sm:$0xff]
    %v807 = vld [vmem:[#allocation18] sm:$0xff]
    %v808 = vld [vmem:[#allocation18 + $0x8] sm:$0xff]
    %v809 = vld [vmem:[#allocation18 + $0x10] sm:$0xff]
    %v810 = vld [vmem:[#allocation18 + $0x18] sm:$0xff]
    %vm811 = vcmask 261120
    %v813 = vsel %vm811, %v805, 0
    %v816 = vsel %vm811, %v806, 0
    %818 = vmatprep.subr.mxu0 0.0
    %819 = vmatpush1.msra.mxu0 %v807
    %820 = vmatprep.subr.mxu0 0.0
    %821 = vmatpush1.msra.mxu0 %v808
    %822 = vmatprep.subr.mxu0 0.0
    %823 = vmatpush1.msra.mxu0 %v809
    %824 = vmatprep.subr.mxu0 0.0
    %825 = vmatpush1.msra.mxu0 %v810
    %826 = vmatprep.subr.mxu0 0.0
    %827 = vmatpush1.msra.mxu0 0.0
    %828 = vmatprep.subr.mxu0 0.0
    %829 = vmatpush1.msra.mxu0 0.0
    %830 = vmatprep.subr.mxu0 0.0
    %831 = vmatpush1.msra.mxu0 0.0
    %832 = vmatprep.subr.mxu0 0.0
    %833 = vmatpush1.msra.mxu0 0.0
    %834 = vmatprep.subr.mxu0 0.0
    %835 = vmatpush1.msra.mxu0 0.0
    %836 = vmatprep.subr.mxu0 0.0
    %837 = vmatpush1.msra.mxu0 0.0
    %838 = vmatprep.subr.mxu0 0.0
    %839 = vmatpush1.msra.mxu0 0.0
    %840 = vmatprep.subr.mxu0 0.0
    %841 = vmatpush1.msra.mxu0 0.0
    %842 = vmatprep.subr.mxu0 0.0
    %843 = vmatpush1.msra.mxu0 0.0
    %844 = vmatprep.subr.mxu0 0.0
    %845 = vmatpush1.msra.mxu0 0.0
    %846 = vmatprep.subr.mxu0 0.0
    %847 = vmatpush1.msra.mxu0 0.0
    %848 = vmatprep.subr.mxu0 0.0
    %849 = vmatpush1.msra.mxu0 0.0
    %850 = vmatprep.subr.mxu0 0.0
    %851 = vmatpush1.msra.mxu0 0.0
    %852 = vmatprep.subr.mxu0 0.0
    %853 = vmatpush1.msra.mxu0 0.0
    %854 = vmatprep.subr.mxu0 0.0
    %855 = vmatpush1.msra.mxu0 0.0
    %856 = vmatprep.subr.mxu0 0.0
    %857 = vmatpush1.msra.mxu0 0.0
    %858 = vmatprep.subr.mxu0 0.0
    %859 = vmatpush1.msra.mxu0 0.0
    %860 = vmatprep.subr.mxu0 0.0
    %861 = vmatpush1.msra.mxu0 0.0
    %862 = vmatprep.subr.mxu0 0.0
    %863 = vmatpush1.msra.mxu0 0.0
    %864 = vmatprep.subr.mxu0 0.0
    %865 = vmatpush1.msra.mxu0 0.0
    %866 = vmatprep.subr.mxu0 0.0
    %867 = vmatpush1.msra.mxu0 0.0
    %868 = vmatprep.subr.mxu0 0.0
    %869 = vmatpush1.msra.mxu0 0.0
    %870 = vmatprep.subr.mxu0 0.0
    %871 = vmatpush1.msra.mxu0 0.0
    %872 = vmatprep.subr.mxu0 0.0
    %873 = vmatpush1.msra.mxu0 0.0
    %874 = vmatprep.subr.mxu0 0.0
    %875 = vmatpush1.msra.mxu0 0.0
    %876 = vmatprep.subr.mxu0 0.0
    %877 = vmatpush1.msra.mxu0 0.0
    %878 = vmatprep.subr.mxu0 0.0
    %879 = vmatpush1.msra.mxu0 0.0
    %880 = vmatprep.subr.mxu0 0.0
    %881 = vmatpush1.msra.mxu0 0.0
    %882 = vmatprep.mubr.f32.mxu0 0.0
    %883 = vmatmul.mubr.f32.gmra.mrb[0].mxu0 %v813
    %v884 = vpop.f32.mrb[0].mxu0
    %v885 = vadd.f32 0.0, %v884
    %v886 = vpop.f32.mrb[0].mxu0
    %887 = vmatprep.mubr.f32.mxu0 0.0
    %888 = vmatmul.mubr.f32.gmra.mrb[0].mxu0 %v816
    %v889 = vpop.f32.mrb[0].mxu0
    %v890 = vadd.f32 0.0, %v889
    %v891 = vpop.f32.mrb[0].mxu0
    %892 = vdwg.mxu0
    %v893 = vld [vmem:[#allocation3] sm:$0x3]
    %v896 = vunpack.c.l.s4 1966171168
    %v897 = vunpack.c.0.s8 %v896
    %v898 = vlaneseq
    %v899 = vshrl.u32 %v898, 7
    %v900 = vsub.s32 %v897, %v899
    %v901 = vrot.slane %v893, %v900
    %v902 = vcombine.high %v901, %v901
    %v904 = vunpack.c.l.s4 1966171168
    %v905 = vunpack.c.0.s8 %v904
    %v906 = vlaneseq
    %v907 = vshrl.u32 %v906, 7
    %v908 = vsub.s32 %v905, %v907
    %v909 = vrot.slane %v901, %v908
    %v911 = vunpack.c.l.s4 1966171168
    %v912 = vunpack.c.0.s8 %v911
    %v913 = vlaneseq
    %v914 = vshrl.u32 %v913, 7
    %v915 = vsub.s32 %v912, %v914
    %v916 = vrot.slane %v902, %v915
    %v917 = vlaneseq
    %v918 = vshrl.u32 %v917, 7
    %v919 = vsub.s32 0, %v918
    %v920 = vrot.slane %v909, %v919
    %v921 = vlaneseq
    %v922 = vshrl.u32 %v921, 7
    %v923 = vsub.s32 0, %v922
    %v924 = vrot.slane %v916, %v923
    %v927 = vadd.f32 %v885, %v920
    %v928 = vadd.f32 %v890, %v924
    %v929 = vtanh.pop %v927
    %v930 = vtanh.pop %v928
    %v931 = vld [vmem:[#allocation20 + $0x2] sm:$0x1]
    %v932 = vlaneseq
    %v933 = vshrl.u32 %v932, 7
    %v934 = vsub.s32 0, %v933
    %v935 = vrot.slane %v931, %v934
    %v936 = vmul.f32 %v929, %v935
    %v937 = vmul.f32 %v930, %v935
    %v938 = vsel %vm811, %v936, 0.0
    %939 = vadd.xlane.f32.xlu0 %v938
    %v940 = vpop.xlane.xlu0 %939
    %v941 = vsel %vm811, %v937, 0.0
    %942 = vadd.xlane.f32.xlu0 %v941
    %v943 = vpop.xlane.xlu0 %942
    %v944 = vrot.slane %v940, 4
    %v945 = vmax.f32 %v940, %v944
    %v946 = vrot.slane %v945, 2
    %v947 = vmax.f32 %v945, %v946
    %v948 = vrot.slane %v947, 1
    %v949 = vmax.f32 %v947, %v948
    %v950 = vrot.slane %v943, 4
    %v951 = vmax.f32 %v943, %v950
    %v952 = vrot.slane %v951, 2
    %v953 = vmax.f32 %v951, %v952
    %v954 = vrot.slane %v953, 1
    %v955 = vmax.f32 %v953, %v954
    %v956 = vld [vmem:[#allocation4] sm:$0x3]
    %vm959 = vcmask 1041409
    %v960 = vsel %vm959, %v955, %v949
    %v962 = vmax.f32 %v956, %v960
    %v963 = vsub.f32 %v956, %v962
    %v964 = vmul.f32 %v963, 1.442695
    %v965 = vpow.pop %v964
    %v968 = vunpack.c.l.s4 1966171168
    %v969 = vunpack.c.0.s8 %v968
    %v970 = vlaneseq
    %v971 = vshrl.u32 %v970, 7
    %v972 = vsub.s32 %v969, %v971
    %v973 = vrot.slane %v962, %v972
    %v974 = vcombine.high %v973, %v973
    %v976 = vunpack.c.l.s4 1966171168
    %v977 = vunpack.c.0.s8 %v976
    %v978 = vlaneseq
    %v979 = vshrl.u32 %v978, 7
    %v980 = vsub.s32 %v977, %v979
    %v981 = vrot.slane %v973, %v980
    %v983 = vunpack.c.l.s4 1966171168
    %v984 = vunpack.c.0.s8 %v983
    %v985 = vlaneseq
    %v986 = vshrl.u32 %v985, 7
    %v987 = vsub.s32 %v984, %v986
    %v988 = vrot.slane %v974, %v987
    %v989 = vlaneseq
    %v990 = vshrl.u32 %v989, 7
    %v991 = vsub.s32 0, %v990
    %v992 = vrot.slane %v981, %v991
    %v993 = vlaneseq
    %v994 = vshrl.u32 %v993, 7
    %v995 = vsub.s32 0, %v994
    %v996 = vrot.slane %v988, %v995
    %v999 = vsub.f32 %v940, %v992
    %v1000 = vsub.f32 %v943, %v996
    %v1001 = vmul.f32 %v999, 1.442695
    %v1002 = vpow.pop %v1001
    %v1003 = vmul.f32 %v1000, 1.442695
    %v1004 = vpow.pop %v1003
    %v1005 = vld [vmem:[#allocation5] sm:$0x3]
    %v1006 = vmul.f32 %v965, %v1005
    %vm1007 = vcmask 7168
    %v1008 = vsel %vm1007, %v1002, 0.0
    %v1009 = vrot.slane %v1008, 4
    %v1010 = vadd.f32 %v1008, %v1009
    %v1011 = vrot.slane %v1010, 2
    %v1012 = vadd.f32 %v1010, %v1011
    %v1013 = vrot.slane %v1012, 1
    %v1014 = vadd.f32 %v1012, %v1013
    %v1015 = vsel %vm1007, %v1004, 0.0
    %v1016 = vrot.slane %v1015, 4
    %v1017 = vadd.f32 %v1015, %v1016
    %v1018 = vrot.slane %v1017, 2
    %v1019 = vadd.f32 %v1017, %v1018
    %v1020 = vrot.slane %v1019, 1
    %v1021 = vadd.f32 %v1019, %v1020
    %v1024 = vsel %vm959, %v1021, %v1014
    %v1026 = vadd.f32 %v1006, %v1024
    %vm1027 = vcmask 1024
    %1028 = vst.msk [vmem:[#allocation5] sm:$0x3] %vm1027, %v1026
    %v1029 = vld [vmem:[#allocation6] sm:$0x3]
    %1031 = vset.pattern.permute.xlu0 0
    %1032 = vperm.xlu0 %1031, %v965
    %v1033 = vpop.permute.xlu0 %1032
    %v1035 = vmul.f32 %v1033, %v1029
    %1037 = vset.pattern.permute.xlu0 0
    %1038 = vperm.xlu0 %1037, %v1002
    %v1039 = vpop.permute.xlu0 %1038
    %1042 = vset.pattern.permute.xlu0 0
    %1043 = vperm.xlu0 %1042, %v1004
    %v1044 = vpop.permute.xlu0 %1043
    %v1046 = vmul.f32 %v1039, %v805
    %v1047 = vmul.f32 %v1044, %v806
    %v1048 = vsel %vm811, %v1046, 0.0
    %v1049 = vrot.slane %v1048, 4
    %v1050 = vadd.f32 %v1048, %v1049
    %v1051 = vrot.slane %v1050, 2
    %v1052 = vadd.f32 %v1050, %v1051
    %v1053 = vrot.slane %v1052, 1
    %v1054 = vadd.f32 %v1052, %v1053
    %v1055 = vsel %vm811, %v1047, 0.0
    %v1056 = vrot.slane %v1055, 4
    %v1057 = vadd.f32 %v1055, %v1056
    %v1058 = vrot.slane %v1057, 2
    %v1059 = vadd.f32 %v1057, %v1058
    %v1060 = vrot.slane %v1059, 1
    %v1061 = vadd.f32 %v1059, %v1060
    %v1064 = vsel %vm959, %v1061, %v1054
    %v1066 = vadd.f32 %v1035, %v1064
    %vm1067 = vcmask 254976
    %1068 = vst.msk [vmem:[#allocation6] sm:$0x3] %vm1067, %v1066
    %1069 = vst.msk [vmem:[#allocation4] sm:$0x3] %vm1027, %v962
    // Predicated region
    $region130: #{attention_decoder.1} parent=1 // pred_check
      %p1070 = pneg %p221
    $region131: #{attention_decoder.1} parent=1 // pred_check_branch
      %1072 = sbr.rel (%p1070) target = $region133
    $region132: #{attention_decoder.1} parent=1 // pred_region
      %v1073 = vld [vmem:[#allocation6] sm:$0x3]
      %v1074 = vld [vmem:[#allocation5] sm:$0x3]
      %v1075 = vrcp.pop %v1074
      %1077 = vset.pattern.permute.xlu0 0
      %1078 = vperm.xlu0 %1077, %v1075
      %v1079 = vpop.permute.xlu0 %1078
      %v1081 = vmul.f32 %v1073, %v1079
      %v1082 = vld [vmem:[#allocation2] sm:$0x3]
      %v1083 = vld [vmem:[#allocation21] sm:$0xff]
      %v1084 = vld [vmem:[#allocation21 + $0x8] sm:$0xff]
      %v1085 = vld [vmem:[#allocation21 + $0x10] sm:$0xff]
      %v1086 = vld [vmem:[#allocation21 + $0x18] sm:$0xff]
      %s1087 = scalar_lea.vmem [#allocation21], 32
      %v1088 = vld [vmem:[%s1087] sm:$0xff]
      %v1089 = vld [vmem:[%s1087 + $0x8] sm:$0xff]
      %v1090 = vld [vmem:[%s1087 + $0x10] sm:$0xff]
      %v1091 = vld [vmem:[%s1087 + $0x18] sm:$0xff]
      %v1093 = vsel %vm811, %v1081, 0
      %1095 = vmatprep.subr.mxu0 0.0
      %1096 = vmatpush1.msra.mxu0 %v1088
      %1097 = vmatprep.subr.mxu0 0.0
      %1098 = vmatpush1.msra.mxu0 %v1089
      %1099 = vmatprep.subr.mxu0 0.0
      %1100 = vmatpush1.msra.mxu0 %v1090
      %1101 = vmatprep.subr.mxu0 0.0
      %1102 = vmatpush1.msra.mxu0 %v1091
      %1103 = vmatprep.subr.mxu0 0.0
      %1104 = vmatpush1.msra.mxu0 0.0
      %1105 = vmatprep.subr.mxu0 0.0
      %1106 = vmatpush1.msra.mxu0 0.0
      %1107 = vmatprep.subr.mxu0 0.0
      %1108 = vmatpush1.msra.mxu0 0.0
      %1109 = vmatprep.subr.mxu0 0.0
      %1110 = vmatpush1.msra.mxu0 0.0
      %1111 = vmatprep.subr.mxu0 0.0
      %1112 = vmatpush1.msra.mxu0 0.0
      %1113 = vmatprep.subr.mxu0 0.0
      %1114 = vmatpush1.msra.mxu0 0.0
      %1115 = vmatprep.subr.mxu0 0.0
      %1116 = vmatpush1.msra.mxu0 0.0
      %1117 = vmatprep.subr.mxu0 0.0
      %1118 = vmatpush1.msra.mxu0 0.0
      %1119 = vmatprep.subr.mxu0 0.0
      %1120 = vmatpush1.msra.mxu0 0.0
      %1121 = vmatprep.subr.mxu0 0.0
      %1122 = vmatpush1.msra.mxu0 0.0
      %1123 = vmatprep.subr.mxu0 0.0
      %1124 = vmatpush1.msra.mxu0 0.0
      %1125 = vmatprep.subr.mxu0 0.0
      %1126 = vmatpush1.msra.mxu0 0.0
      %1127 = vmatprep.subr.mxu0 0.0
      %1128 = vmatpush1.msra.mxu0 0.0
      %1129 = vmatprep.subr.mxu0 0.0
      %1130 = vmatpush1.msra.mxu0 0.0
      %1131 = vmatprep.subr.mxu0 0.0
      %1132 = vmatpush1.msra.mxu0 0.0
      %1133 = vmatprep.subr.mxu0 0.0
      %1134 = vmatpush1.msra.mxu0 0.0
      %1135 = vmatprep.subr.mxu0 0.0
      %1136 = vmatpush1.msra.mxu0 0.0
      %1137 = vmatprep.subr.mxu0 0.0
      %1138 = vmatpush1.msra.mxu0 0.0
      %1139 = vmatprep.subr.mxu0 0.0
      %1140 = vmatpush1.msra.mxu0 0.0
      %1141 = vmatprep.subr.mxu0 0.0
      %1142 = vmatpush1.msra.mxu0 0.0
      %1143 = vmatprep.subr.mxu0 0.0
      %1144 = vmatpush1.msra.mxu0 0.0
      %1145 = vmatprep.subr.mxu0 0.0
      %1146 = vmatpush1.msra.mxu0 0.0
      %1147 = vmatprep.subr.mxu0 0.0
      %1148 = vmatpush1.msra.mxu0 0.0
      %1149 = vmatprep.subr.mxu0 0.0
      %1150 = vmatpush1.msra.mxu0 0.0
      %1151 = vmatprep.subr.mxu0 0.0
      %1152 = vmatpush1.msra.mxu0 0.0
      %1153 = vmatprep.subr.mxu0 0.0
      %1154 = vmatpush1.msra.mxu0 0.0
      %1155 = vmatprep.subr.mxu0 0.0
      %1156 = vmatpush1.msra.mxu0 0.0
      %1157 = vmatprep.subr.mxu0 0.0
      %1158 = vmatpush1.msra.mxu0 0.0
      %1159 = vmatprep.mubr.f32.mxu0 0.0
      %1160 = vmatmul.mubr.f32.gmra.mrb[0].mxu0 %v1093
      %v1161 = vpop.f32.mrb[0].mxu0
      %v1162 = vadd.f32 0.0, %v1161
      %v1163 = vpop.f32.mrb[0].mxu0
      %1164 = vdwg.mxu0
      %v1166 = vsel %vm811, %v1082, 0
      %1168 = vmatprep.subr.mxu0 0.0
      %1169 = vmatpush1.msra.mxu0 %v1083
      %1170 = vmatprep.subr.mxu0 0.0
      %1171 = vmatpush1.msra.mxu0 %v1084
      %1172 = vmatprep.subr.mxu0 0.0
      %1173 = vmatpush1.msra.mxu0 %v1085
      %1174 = vmatprep.subr.mxu0 0.0
      %1175 = vmatpush1.msra.mxu0 %v1086
      %1176 = vmatprep.subr.mxu0 0.0
      %1177 = vmatpush1.msra.mxu0 0.0
      %1178 = vmatprep.subr.mxu0 0.0
      %1179 = vmatpush1.msra.mxu0 0.0
      %1180 = vmatprep.subr.mxu0 0.0
      %1181 = vmatpush1.msra.mxu0 0.0
      %1182 = vmatprep.subr.mxu0 0.0
      %1183 = vmatpush1.msra.mxu0 0.0
      %1184 = vmatprep.subr.mxu0 0.0
      %1185 = vmatpush1.msra.mxu0 0.0
      %1186 = vmatprep.subr.mxu0 0.0
      %1187 = vmatpush1.msra.mxu0 0.0
      %1188 = vmatprep.subr.mxu0 0.0
      %1189 = vmatpush1.msra.mxu0 0.0
      %1190 = vmatprep.subr.mxu0 0.0
      %1191 = vmatpush1.msra.mxu0 0.0
      %1192 = vmatprep.subr.mxu0 0.0
      %1193 = vmatpush1.msra.mxu0 0.0
      %1194 = vmatprep.subr.mxu0 0.0
      %1195 = vmatpush1.msra.mxu0 0.0
      %1196 = vmatprep.subr.mxu0 0.0
      %1197 = vmatpush1.msra.mxu0 0.0
      %1198 = vmatprep.subr.mxu0 0.0
      %1199 = vmatpush1.msra.mxu0 0.0
      %1200 = vmatprep.subr.mxu0 0.0
      %1201 = vmatpush1.msra.mxu0 0.0
      %1202 = vmatprep.subr.mxu0 0.0
      %1203 = vmatpush1.msra.mxu0 0.0
      %1204 = vmatprep.subr.mxu0 0.0
      %1205 = vmatpush1.msra.mxu0 0.0
      %1206 = vmatprep.subr.mxu0 0.0
      %1207 = vmatpush1.msra.mxu0 0.0
      %1208 = vmatprep.subr.mxu0 0.0
      %1209 = vmatpush1.msra.mxu0 0.0
      %1210 = vmatprep.subr.mxu0 0.0
      %1211 = vmatpush1.msra.mxu0 0.0
      %1212 = vmatprep.subr.mxu0 0.0
      %1213 = vmatpush1.msra.mxu0 0.0
      %1214 = vmatprep.subr.mxu0 0.0
      %1215 = vmatpush1.msra.mxu0 0.0
      %1216 = vmatprep.subr.mxu0 0.0
      %1217 = vmatpush1.msra.mxu0 0.0
      %1218 = vmatprep.subr.mxu0 0.0
      %1219 = vmatpush1.msra.mxu0 0.0
      %1220 = vmatprep.subr.mxu0 0.0
      %1221 = vmatpush1.msra.mxu0 0.0
      %1222 = vmatprep.subr.mxu0 0.0
      %1223 = vmatpush1.msra.mxu0 0.0
      %1224 = vmatprep.subr.mxu0 0.0
      %1225 = vmatpush1.msra.mxu0 0.0
      %1226 = vmatprep.subr.mxu0 0.0
      %1227 = vmatpush1.msra.mxu0 0.0
      %1228 = vmatprep.subr.mxu0 0.0
      %1229 = vmatpush1.msra.mxu0 0.0
      %1230 = vmatprep.subr.mxu0 0.0
      %1231 = vmatpush1.msra.mxu0 0.0
      %1232 = vmatprep.mubr.f32.mxu0 0.0
      %1233 = vmatmul.mubr.f32.gmra.mrb[0].mxu0 %v1166
      %v1234 = vpop.f32.mrb[0].mxu0
      %v1235 = vadd.f32 %v1162, %v1234
      %v1236 = vpop.f32.mrb[0].mxu0
      %1237 = vdwg.mxu0
      %v1238 = vld [vmem:[#allocation20 + $0x1] sm:$0x1]
      %v1239 = vlaneseq
      %v1240 = vshrl.u32 %v1239, 7
      %v1241 = vsub.s32 0, %v1240
      %v1242 = vrot.slane %v1238, %v1241
      %v1243 = vadd.f32 %v1235, %v1242
      %v1244 = vld [vmem:[%s3] sm:$0x3]
      %v1245 = vld [vmem:[#allocation9] sm:$0xff]
      %v1246 = vld [vmem:[#allocation9 + $0x8] sm:$0xff]
      %v1247 = vld [vmem:[#allocation9 + $0x10] sm:$0xff]
      %v1248 = vld [vmem:[#allocation9 + $0x18] sm:$0xff]
      %v1249 = vld [vmem:[#allocation11] sm:$0xff]
      %v1250 = vld [vmem:[#allocation11 + $0x8] sm:$0xff]
      %v1251 = vld [vmem:[#allocation11 + $0x10] sm:$0xff]
      %v1252 = vld [vmem:[#allocation11 + $0x18] sm:$0xff]
      %v1254 = vsel %vm811, %v1244, 0
      %1256 = vmatprep.subr.mxu0 0.0
      %1257 = vmatpush1.msra.mxu0 %v1249
      %1258 = vmatprep.subr.mxu0 0.0
      %1259 = vmatpush1.msra.mxu0 %v1250
      %1260 = vmatprep.subr.mxu0 0.0
      %1261 = vmatpush1.msra.mxu0 %v1251
      %1262 = vmatprep.subr.mxu0 0.0
      %1263 = vmatpush1.msra.mxu0 %v1252
      %1264 = vmatprep.subr.mxu0 0.0
      %1265 = vmatpush1.msra.mxu0 0.0
      %1266 = vmatprep.subr.mxu0 0.0
      %1267 = vmatpush1.msra.mxu0 0.0
      %1268 = vmatprep.subr.mxu0 0.0
      %1269 = vmatpush1.msra.mxu0 0.0
      %1270 = vmatprep.subr.mxu0 0.0
      %1271 = vmatpush1.msra.mxu0 0.0
      %1272 = vmatprep.subr.mxu0 0.0
      %1273 = vmatpush1.msra.mxu0 0.0
      %1274 = vmatprep.subr.mxu0 0.0
      %1275 = vmatpush1.msra.mxu0 0.0
      %1276 = vmatprep.subr.mxu0 0.0
      %1277 = vmatpush1.msra.mxu0 0.0
      %1278 = vmatprep.subr.mxu0 0.0
      %1279 = vmatpush1.msra.mxu0 0.0
      %1280 = vmatprep.subr.mxu0 0.0
      %1281 = vmatpush1.msra.mxu0 0.0
      %1282 = vmatprep.subr.mxu0 0.0
      %1283 = vmatpush1.msra.mxu0 0.0
      %1284 = vmatprep.subr.mxu0 0.0
      %1285 = vmatpush1.msra.mxu0 0.0
      %1286 = vmatprep.subr.mxu0 0.0
      %1287 = vmatpush1.msra.mxu0 0.0
      %1288 = vmatprep.subr.mxu0 0.0
      %1289 = vmatpush1.msra.mxu0 0.0
      %1290 = vmatprep.subr.mxu0 0.0
      %1291 = vmatpush1.msra.mxu0 0.0
      %1292 = vmatprep.subr.mxu0 0.0
      %1293 = vmatpush1.msra.mxu0 0.0
      %1294 = vmatprep.subr.mxu0 0.0
      %1295 = vmatpush1.msra.mxu0 0.0
      %1296 = vmatprep.subr.mxu0 0.0
      %1297 = vmatpush1.msra.mxu0 0.0
      %1298 = vmatprep.subr.mxu0 0.0
      %1299 = vmatpush1.msra.mxu0 0.0
      %1300 = vmatprep.subr.mxu0 0.0
      %1301 = vmatpush1.msra.mxu0 0.0
      %1302 = vmatprep.subr.mxu0 0.0
      %1303 = vmatpush1.msra.mxu0 0.0
      %1304 = vmatprep.subr.mxu0 0.0
      %1305 = vmatpush1.msra.mxu0 0.0
      %1306 = vmatprep.subr.mxu0 0.0
      %1307 = vmatpush1.msra.mxu0 0.0
      %1308 = vmatprep.subr.mxu0 0.0
      %1309 = vmatpush1.msra.mxu0 0.0
      %1310 = vmatprep.subr.mxu0 0.0
      %1311 = vmatpush1.msra.mxu0 0.0
      %1312 = vmatprep.subr.mxu0 0.0
      %1313 = vmatpush1.msra.mxu0 0.0
      %1314 = vmatprep.subr.mxu0 0.0
      %1315 = vmatpush1.msra.mxu0 0.0
      %1316 = vmatprep.subr.mxu0 0.0
      %1317 = vmatpush1.msra.mxu0 0.0
      %1318 = vmatprep.subr.mxu0 0.0
      %1319 = vmatpush1.msra.mxu0 0.0
      %1320 = vmatprep.mubr.f32.mxu0 0.0
      %1321 = vmatmul.mubr.f32.gmra.mrb[0].mxu0 %v1254
      %v1322 = vpop.f32.mrb[0].mxu0
      %v1323 = vadd.f32 0.0, %v1322
      %v1324 = vpop.f32.mrb[0].mxu0
      %1325 = vdwg.mxu0
      %v1327 = vsel %vm811, %v1243, 0
      %1329 = vmatprep.subr.mxu0 0.0
      %1330 = vmatpush1.msra.mxu0 %v1245
      %1331 = vmatprep.subr.mxu0 0.0
      %1332 = vmatpush1.msra.mxu0 %v1246
      %1333 = vmatprep.subr.mxu0 0.0
      %1334 = vmatpush1.msra.mxu0 %v1247
      %1335 = vmatprep.subr.mxu0 0.0
      %1336 = vmatpush1.msra.mxu0 %v1248
      %1337 = vmatprep.subr.mxu0 0.0
      %1338 = vmatpush1.msra.mxu0 0.0
      %1339 = vmatprep.subr.mxu0 0.0
      %1340 = vmatpush1.msra.mxu0 0.0
      %1341 = vmatprep.subr.mxu0 0.0
      %1342 = vmatpush1.msra.mxu0 0.0
      %1343 = vmatprep.subr.mxu0 0.0
      %1344 = vmatpush1.msra.mxu0 0.0
      %1345 = vmatprep.subr.mxu0 0.0
      %1346 = vmatpush1.msra.mxu0 0.0
      %1347 = vmatprep.subr.mxu0 0.0
      %1348 = vmatpush1.msra.mxu0 0.0
      %1349 = vmatprep.subr.mxu0 0.0
      %1350 = vmatpush1.msra.mxu0 0.0
      %1351 = vmatprep.subr.mxu0 0.0
      %1352 = vmatpush1.msra.mxu0 0.0
      %1353 = vmatprep.subr.mxu0 0.0
      %1354 = vmatpush1.msra.mxu0 0.0
      %1355 = vmatprep.subr.mxu0 0.0
      %1356 = vmatpush1.msra.mxu0 0.0
      %1357 = vmatprep.subr.mxu0 0.0
      %1358 = vmatpush1.msra.mxu0 0.0
      %1359 = vmatprep.subr.mxu0 0.0
      %1360 = vmatpush1.msra.mxu0 0.0
      %1361 = vmatprep.subr.mxu0 0.0
      %1362 = vmatpush1.msra.mxu0 0.0
      %1363 = vmatprep.subr.mxu0 0.0
      %1364 = vmatpush1.msra.mxu0 0.0
      %1365 = vmatprep.subr.mxu0 0.0
      %1366 = vmatpush1.msra.mxu0 0.0
      %1367 = vmatprep.subr.mxu0 0.0
      %1368 = vmatpush1.msra.mxu0 0.0
      %1369 = vmatprep.subr.mxu0 0.0
      %1370 = vmatpush1.msra.mxu0 0.0
      %1371 = vmatprep.subr.mxu0 0.0
      %1372 = vmatpush1.msra.mxu0 0.0
      %1373 = vmatprep.subr.mxu0 0.0
      %1374 = vmatpush1.msra.mxu0 0.0
      %1375 = vmatprep.subr.mxu0 0.0
      %1376 = vmatpush1.msra.mxu0 0.0
      %1377 = vmatprep.subr.mxu0 0.0
      %1378 = vmatpush1.msra.mxu0 0.0
      %1379 = vmatprep.subr.mxu0 0.0
      %1380 = vmatpush1.msra.mxu0 0.0
      %1381 = vmatprep.subr.mxu0 0.0
      %1382 = vmatpush1.msra.mxu0 0.0
      %1383 = vmatprep.subr.mxu0 0.0
      %1384 = vmatpush1.msra.mxu0 0.0
      %1385 = vmatprep.subr.mxu0 0.0
      %1386 = vmatpush1.msra.mxu0 0.0
      %1387 = vmatprep.subr.mxu0 0.0
      %1388 = vmatpush1.msra.mxu0 0.0
      %1389 = vmatprep.subr.mxu0 0.0
      %1390 = vmatpush1.msra.mxu0 0.0
      %1391 = vmatprep.subr.mxu0 0.0
      %1392 = vmatpush1.msra.mxu0 0.0
      %1393 = vmatprep.mubr.f32.mxu0 0.0
      %1394 = vmatmul.mubr.f32.gmra.mrb[0].mxu0 %v1327
      %v1395 = vpop.f32.mrb[0].mxu0
      %v1396 = vadd.f32 %v1323, %v1395
      %v1397 = vpop.f32.mrb[0].mxu0
      %1398 = vdwg.mxu0
      %v1399 = vld [vmem:[#allocation12] sm:$0x1]
      %v1400 = vlaneseq
      %v1401 = vshrl.u32 %v1400, 7
      %v1402 = vsub.s32 0, %v1401
      %v1403 = vrot.slane %v1399, %v1402
      %v1404 = vadd.f32 %v1396, %v1403
      %v1405 = vmul.f32 %v1404, 0.5
      %v1406 = vtanh.pop %v1405
      %v1407 = vadd.f32 %v1406, 1.0
      %v1408 = vmul.f32 %v1407, 0.5
      %s1409 = scalar_lea.vmem [#allocation9], 32
      %v1410 = vld [vmem:[%s1409] sm:$0xff]
      %v1411 = vld [vmem:[%s1409 + $0x8] sm:$0xff]
      %v1412 = vld [vmem:[%s1409 + $0x10] sm:$0xff]
      %v1413 = vld [vmem:[%s1409 + $0x18] sm:$0xff]
      %s1414 = scalar_lea.vmem [#allocation11], 32
      %v1415 = vld [vmem:[%s1414] sm:$0xff]
      %v1416 = vld [vmem:[%s1414 + $0x8] sm:$0xff]
      %v1417 = vld [vmem:[%s1414 + $0x10] sm:$0xff]
      %v1418 = vld [vmem:[%s1414 + $0x18] sm:$0xff]
      %1419 = vmatprep.subr.mxu0 0.0
      %1420 = vmatpush1.msra.mxu0 %v1415
      %1421 = vmatprep.subr.mxu0 0.0
      %1422 = vmatpush1.msra.mxu0 %v1416
      %1423 = vmatprep.subr.mxu0 0.0
      %1424 = vmatpush1.msra.mxu0 %v1417
      %1425 = vmatprep.subr.mxu0 0.0
      %1426 = vmatpush1.msra.mxu0 %v1418
      %1427 = vmatprep.subr.mxu0 0.0
      %1428 = vmatpush1.msra.mxu0 0.0
      %1429 = vmatprep.subr.mxu0 0.0
      %1430 = vmatpush1.msra.mxu0 0.0
      %1431 = vmatprep.subr.mxu0 0.0
      %1432 = vmatpush1.msra.mxu0 0.0
      %1433 = vmatprep.subr.mxu0 0.0
      %1434 = vmatpush1.msra.mxu0 0.0
      %1435 = vmatprep.subr.mxu0 0.0
      %1436 = vmatpush1.msra.mxu0 0.0
      %1437 = vmatprep.subr.mxu0 0.0
      %1438 = vmatpush1.msra.mxu0 0.0
      %1439 = vmatprep.subr.mxu0 0.0
      %1440 = vmatpush1.msra.mxu0 0.0
      %1441 = vmatprep.subr.mxu0 0.0
      %1442 = vmatpush1.msra.mxu0 0.0
      %1443 = vmatprep.subr.mxu0 0.0
      %1444 = vmatpush1.msra.mxu0 0.0
      %1445 = vmatprep.subr.mxu0 0.0
      %1446 = vmatpush1.msra.mxu0 0.0
      %1447 = vmatprep.subr.mxu0 0.0
      %1448 = vmatpush1.msra.mxu0 0.0
      %1449 = vmatprep.subr.mxu0 0.0
      %1450 = vmatpush1.msra.mxu0 0.0
      %1451 = vmatprep.subr.mxu0 0.0
      %1452 = vmatpush1.msra.mxu0 0.0
      %1453 = vmatprep.subr.mxu0 0.0
      %1454 = vmatpush1.msra.mxu0 0.0
      %1455 = vmatprep.subr.mxu0 0.0
      %1456 = vmatpush1.msra.mxu0 0.0
      %1457 = vmatprep.subr.mxu0 0.0
      %1458 = vmatpush1.msra.mxu0 0.0
      %1459 = vmatprep.subr.mxu0 0.0
      %1460 = vmatpush1.msra.mxu0 0.0
      %1461 = vmatprep.subr.mxu0 0.0
      %1462 = vmatpush1.msra.mxu0 0.0
      %1463 = vmatprep.subr.mxu0 0.0
      %1464 = vmatpush1.msra.mxu0 0.0
      %1465 = vmatprep.subr.mxu0 0.0
      %1466 = vmatpush1.msra.mxu0 0.0
      %1467 = vmatprep.subr.mxu0 0.0
      %1468 = vmatpush1.msra.mxu0 0.0
      %1469 = vmatprep.subr.mxu0 0.0
      %1470 = vmatpush1.msra.mxu0 0.0
      %1471 = vmatprep.subr.mxu0 0.0
      %1472 = vmatpush1.msra.mxu0 0.0
      %1473 = vmatprep.subr.mxu0 0.0
      %1474 = vmatpush1.msra.mxu0 0.0
      %1475 = vmatprep.subr.mxu0 0.0
      %1476 = vmatpush1.msra.mxu0 0.0
      %1477 = vmatprep.subr.mxu0 0.0
      %1478 = vmatpush1.msra.mxu0 0.0
      %1479 = vmatprep.subr.mxu0 0.0
      %1480 = vmatpush1.msra.mxu0 0.0
      %1481 = vmatprep.subr.mxu0 0.0
      %1482 = vmatpush1.msra.mxu0 0.0
      %1483 = vmatprep.mubr.f32.mxu0 0.0
      %1484 = vmatmul.mubr.f32.gmra.mrb[0].mxu0 %v1254
      %v1485 = vpop.f32.mrb[0].mxu0
      %v1486 = vadd.f32 0.0, %v1485
      %v1487 = vpop.f32.mrb[0].mxu0
      %1488 = vdwg.mxu0
      %1489 = vmatprep.subr.mxu0 0.0
      %1490 = vmatpush1.msra.mxu0 %v1410
      %1491 = vmatprep.subr.mxu0 0.0
      %1492 = vmatpush1.msra.mxu0 %v1411
      %1493 = vmatprep.subr.mxu0 0.0
      %1494 = vmatpush1.msra.mxu0 %v1412
      %1495 = vmatprep.subr.mxu0 0.0
      %1496 = vmatpush1.msra.mxu0 %v1413
      %1497 = vmatprep.subr.mxu0 0.0
      %1498 = vmatpush1.msra.mxu0 0.0
      %1499 = vmatprep.subr.mxu0 0.0
      %1500 = vmatpush1.msra.mxu0 0.0
      %1501 = vmatprep.subr.mxu0 0.0
      %1502 = vmatpush1.msra.mxu0 0.0
      %1503 = vmatprep.subr.mxu0 0.0
      %1504 = vmatpush1.msra.mxu0 0.0
      %1505 = vmatprep.subr.mxu0 0.0
      %1506 = vmatpush1.msra.mxu0 0.0
      %1507 = vmatprep.subr.mxu0 0.0
      %1508 = vmatpush1.msra.mxu0 0.0
      %1509 = vmatprep.subr.mxu0 0.0
      %1510 = vmatpush1.msra.mxu0 0.0
      %1511 = vmatprep.subr.mxu0 0.0
      %1512 = vmatpush1.msra.mxu0 0.0
      %1513 = vmatprep.subr.mxu0 0.0
      %1514 = vmatpush1.msra.mxu0 0.0
      %1515 = vmatprep.subr.mxu0 0.0
      %1516 = vmatpush1.msra.mxu0 0.0
      %1517 = vmatprep.subr.mxu0 0.0
      %1518 = vmatpush1.msra.mxu0 0.0
      %1519 = vmatprep.subr.mxu0 0.0
      %1520 = vmatpush1.msra.mxu0 0.0
      %1521 = vmatprep.subr.mxu0 0.0
      %1522 = vmatpush1.msra.mxu0 0.0
      %1523 = vmatprep.subr.mxu0 0.0
      %1524 = vmatpush1.msra.mxu0 0.0
      %1525 = vmatprep.subr.mxu0 0.0
      %1526 = vmatpush1.msra.mxu0 0.0
      %1527 = vmatprep.subr.mxu0 0.0
      %1528 = vmatpush1.msra.mxu0 0.0
      %1529 = vmatprep.subr.mxu0 0.0
      %1530 = vmatpush1.msra.mxu0 0.0
      %1531 = vmatprep.subr.mxu0 0.0
      %1532 = vmatpush1.msra.mxu0 0.0
      %1533 = vmatprep.subr.mxu0 0.0
      %1534 = vmatpush1.msra.mxu0 0.0
      %1535 = vmatprep.subr.mxu0 0.0
      %1536 = vmatpush1.msra.mxu0 0.0
      %1537 = vmatprep.subr.mxu0 0.0
      %1538 = vmatpush1.msra.mxu0 0.0
      %1539 = vmatprep.subr.mxu0 0.0
      %1540 = vmatpush1.msra.mxu0 0.0
      %1541 = vmatprep.subr.mxu0 0.0
      %1542 = vmatpush1.msra.mxu0 0.0
      %1543 = vmatprep.subr.mxu0 0.0
      %1544 = vmatpush1.msra.mxu0 0.0
      %1545 = vmatprep.subr.mxu0 0.0
      %1546 = vmatpush1.msra.mxu0 0.0
      %1547 = vmatprep.subr.mxu0 0.0
      %1548 = vmatpush1.msra.mxu0 0.0
      %1549 = vmatprep.subr.mxu0 0.0
      %1550 = vmatpush1.msra.mxu0 0.0
      %1551 = vmatprep.subr.mxu0 0.0
      %1552 = vmatpush1.msra.mxu0 0.0
      %1553 = vmatprep.mubr.f32.mxu0 0.0
      %1554 = vmatmul.mubr.f32.gmra.mrb[0].mxu0 %v1327
      %v1555 = vpop.f32.mrb[0].mxu0
      %v1556 = vadd.f32 %v1486, %v1555
      %v1557 = vpop.f32.mrb[0].mxu0
      %1558 = vdwg.mxu0
      %v1559 = vld [vmem:[#allocation12 + $0x1] sm:$0x1]
      %v1560 = vlaneseq
      %v1561 = vshrl.u32 %v1560, 7
      %v1562 = vsub.s32 0, %v1561
      %v1563 = vrot.slane %v1559, %v1562
      %v1564 = vadd.f32 %v1556, %v1563
      %v1565 = vmul.f32 %v1564, 0.5
      %v1566 = vtanh.pop %v1565
      %v1567 = vadd.f32 %v1566, 1.0
      %v1568 = vmul.f32 %v1567, 0.5
      %s1569 = scalar_lea.vmem [#allocation9], 64
      %v1570 = vld [vmem:[%s1569] sm:$0xff]
      %v1571 = vld [vmem:[%s1569 + $0x8] sm:$0xff]
      %v1572 = vld [vmem:[%s1569 + $0x10] sm:$0xff]
      %v1573 = vld [vmem:[%s1569 + $0x18] sm:$0xff]
      %v1574 = vld [vmem:[#allocation12 + $0x2] sm:$0x1]
      %v1575 = vlaneseq
      %v1576 = vshrl.u32 %v1575, 7
      %v1577 = vsub.s32 0, %v1576
      %v1578 = vrot.slane %v1574, %v1577
      %1579 = vmatprep.subr.mxu0 0.0
      %1580 = vmatpush1.msra.mxu0 %v1570
      %1581 = vmatprep.subr.mxu0 0.0
      %1582 = vmatpush1.msra.mxu0 %v1571
      %1583 = vmatprep.subr.mxu0 0.0
      %1584 = vmatpush1.msra.mxu0 %v1572
      %1585 = vmatprep.subr.mxu0 0.0
      %1586 = vmatpush1.msra.mxu0 %v1573
      %1587 = vmatprep.subr.mxu0 0.0
      %1588 = vmatpush1.msra.mxu0 0.0
      %1589 = vmatprep.subr.mxu0 0.0
      %1590 = vmatpush1.msra.mxu0 0.0
      %1591 = vmatprep.subr.mxu0 0.0
      %1592 = vmatpush1.msra.mxu0 0.0
      %1593 = vmatprep.subr.mxu0 0.0
      %1594 = vmatpush1.msra.mxu0 0.0
      %1595 = vmatprep.subr.mxu0 0.0
      %1596 = vmatpush1.msra.mxu0 0.0
      %1597 = vmatprep.subr.mxu0 0.0
      %1598 = vmatpush1.msra.mxu0 0.0
      %1599 = vmatprep.subr.mxu0 0.0
      %1600 = vmatpush1.msra.mxu0 0.0
      %1601 = vmatprep.subr.mxu0 0.0
      %1602 = vmatpush1.msra.mxu0 0.0
      %1603 = vmatprep.subr.mxu0 0.0
      %1604 = vmatpush1.msra.mxu0 0.0
      %1605 = vmatprep.subr.mxu0 0.0
      %1606 = vmatpush1.msra.mxu0 0.0
      %1607 = vmatprep.subr.mxu0 0.0
      %1608 = vmatpush1.msra.mxu0 0.0
      %1609 = vmatprep.subr.mxu0 0.0
      %1610 = vmatpush1.msra.mxu0 0.0
      %1611 = vmatprep.subr.mxu0 0.0
      %1612 = vmatpush1.msra.mxu0 0.0
      %1613 = vmatprep.subr.mxu0 0.0
      %1614 = vmatpush1.msra.mxu0 0.0
      %1615 = vmatprep.subr.mxu0 0.0
      %1616 = vmatpush1.msra.mxu0 0.0
      %1617 = vmatprep.subr.mxu0 0.0
      %1618 = vmatpush1.msra.mxu0 0.0
      %1619 = vmatprep.subr.mxu0 0.0
      %1620 = vmatpush1.msra.mxu0 0.0
      %1621 = vmatprep.subr.mxu0 0.0
      %1622 = vmatpush1.msra.mxu0 0.0
      %1623 = vmatprep.subr.mxu0 0.0
      %1624 = vmatpush1.msra.mxu0 0.0
      %1625 = vmatprep.subr.mxu0 0.0
      %1626 = vmatpush1.msra.mxu0 0.0
      %1627 = vmatprep.subr.mxu0 0.0
      %1628 = vmatpush1.msra.mxu0 0.0
      %1629 = vmatprep.subr.mxu0 0.0
      %1630 = vmatpush1.msra.mxu0 0.0
      %1631 = vmatprep.subr.mxu0 0.0
      %1632 = vmatpush1.msra.mxu0 0.0
      %1633 = vmatprep.subr.mxu0 0.0
      %1634 = vmatpush1.msra.mxu0 0.0
      %1635 = vmatprep.subr.mxu0 0.0
      %1636 = vmatpush1.msra.mxu0 0.0
      %1637 = vmatprep.subr.mxu0 0.0
      %1638 = vmatpush1.msra.mxu0 0.0
      %1639 = vmatprep.subr.mxu0 0.0
      %1640 = vmatpush1.msra.mxu0 0.0
      %1641 = vmatprep.subr.mxu0 0.0
      %1642 = vmatpush1.msra.mxu0 0.0
      %1643 = vmatprep.mubr.f32.mxu0 0.0
      %1644 = vmatmul.mubr.f32.gmra.mrb[0].mxu0 %v1327
      %v1645 = vpop.f32.mrb[0].mxu0
      %v1646 = vadd.f32 %v1578, %v1645
      %v1647 = vpop.f32.mrb[0].mxu0
      %1648 = vdwg.mxu0
      %s1649 = scalar_lea.vmem [#allocation11], 64
      %v1650 = vld [vmem:[%s1649] sm:$0xff]
      %v1651 = vld [vmem:[%s1649 + $0x8] sm:$0xff]
      %v1652 = vld [vmem:[%s1649 + $0x10] sm:$0xff]
      %v1653 = vld [vmem:[%s1649 + $0x18] sm:$0xff]
      %v1654 = vld [vmem:[#allocation12 + $0x3] sm:$0x1]
      %v1655 = vlaneseq
      %v1656 = vshrl.u32 %v1655, 7
      %v1657 = vsub.s32 0, %v1656
      %v1658 = vrot.slane %v1654, %v1657
      %1659 = vmatprep.subr.mxu0 0.0
      %1660 = vmatpush1.msra.mxu0 %v1650
      %1661 = vmatprep.subr.mxu0 0.0
      %1662 = vmatpush1.msra.mxu0 %v1651
      %1663 = vmatprep.subr.mxu0 0.0
      %1664 = vmatpush1.msra.mxu0 %v1652
      %1665 = vmatprep.subr.mxu0 0.0
      %1666 = vmatpush1.msra.mxu0 %v1653
      %1667 = vmatprep.subr.mxu0 0.0
      %1668 = vmatpush1.msra.mxu0 0.0
      %1669 = vmatprep.subr.mxu0 0.0
      %1670 = vmatpush1.msra.mxu0 0.0
      %1671 = vmatprep.subr.mxu0 0.0
      %1672 = vmatpush1.msra.mxu0 0.0
      %1673 = vmatprep.subr.mxu0 0.0
      %1674 = vmatpush1.msra.mxu0 0.0
      %1675 = vmatprep.subr.mxu0 0.0
      %1676 = vmatpush1.msra.mxu0 0.0
      %1677 = vmatprep.subr.mxu0 0.0
      %1678 = vmatpush1.msra.mxu0 0.0
      %1679 = vmatprep.subr.mxu0 0.0
      %1680 = vmatpush1.msra.mxu0 0.0
      %1681 = vmatprep.subr.mxu0 0.0
      %1682 = vmatpush1.msra.mxu0 0.0
      %1683 = vmatprep.subr.mxu0 0.0
      %1684 = vmatpush1.msra.mxu0 0.0
      %1685 = vmatprep.subr.mxu0 0.0
      %1686 = vmatpush1.msra.mxu0 0.0
      %1687 = vmatprep.subr.mxu0 0.0
      %1688 = vmatpush1.msra.mxu0 0.0
      %1689 = vmatprep.subr.mxu0 0.0
      %1690 = vmatpush1.msra.mxu0 0.0
      %1691 = vmatprep.subr.mxu0 0.0
      %1692 = vmatpush1.msra.mxu0 0.0
      %1693 = vmatprep.subr.mxu0 0.0
      %1694 = vmatpush1.msra.mxu0 0.0
      %1695 = vmatprep.subr.mxu0 0.0
      %1696 = vmatpush1.msra.mxu0 0.0
      %1697 = vmatprep.subr.mxu0 0.0
      %1698 = vmatpush1.msra.mxu0 0.0
      %1699 = vmatprep.subr.mxu0 0.0
      %1700 = vmatpush1.msra.mxu0 0.0
      %1701 = vmatprep.subr.mxu0 0.0
      %1702 = vmatpush1.msra.mxu0 0.0
      %1703 = vmatprep.subr.mxu0 0.0
      %1704 = vmatpush1.msra.mxu0 0.0
      %1705 = vmatprep.subr.mxu0 0.0
      %1706 = vmatpush1.msra.mxu0 0.0
      %1707 = vmatprep.subr.mxu0 0.0
      %1708 = vmatpush1.msra.mxu0 0.0
      %1709 = vmatprep.subr.mxu0 0.0
      %1710 = vmatpush1.msra.mxu0 0.0
      %1711 = vmatprep.subr.mxu0 0.0
      %1712 = vmatpush1.msra.mxu0 0.0
      %1713 = vmatprep.subr.mxu0 0.0
      %1714 = vmatpush1.msra.mxu0 0.0
      %1715 = vmatprep.subr.mxu0 0.0
      %1716 = vmatpush1.msra.mxu0 0.0
      %1717 = vmatprep.subr.mxu0 0.0
      %1718 = vmatpush1.msra.mxu0 0.0
      %1719 = vmatprep.subr.mxu0 0.0
      %1720 = vmatpush1.msra.mxu0 0.0
      %1721 = vmatprep.subr.mxu0 0.0
      %1722 = vmatpush1.msra.mxu0 0.0
      %1723 = vmatprep.mubr.f32.mxu0 0.0
      %1724 = vmatmul.mubr.f32.gmra.mrb[0].mxu0 %v1254
      %v1725 = vpop.f32.mrb[0].mxu0
      %v1726 = vadd.f32 %v1658, %v1725
      %v1727 = vpop.f32.mrb[0].mxu0
      %1728 = vdwg.mxu0
      %v1729 = vmul.f32 %v1408, %v1726
      %v1730 = vadd.f32 %v1646, %v1729
      %v1731 = vtanh.pop %v1730
      %v1732 = vsub.f32 1.0, %v1568
      %v1733 = vmul.f32 %v1732, %v1731
      %v1734 = vmul.f32 %v1568, %v1244
      %v1735 = vadd.f32 %v1733, %v1734
      %1736 = vst.msk [vmem:[%s21] sm:$0x3] %vm1067, %v1735
      %v1737 = vadd.f32 %v1735, %v1243
      %v1738 = vld [vmem:[%s4] sm:$0x3]
      %v1739 = vld [vmem:[#allocation14] sm:$0xff]
      %v1740 = vld [vmem:[#allocation14 + $0x8] sm:$0xff]
      %v1741 = vld [vmem:[#allocation14 + $0x10] sm:$0xff]
      %v1742 = vld [vmem:[#allocation14 + $0x18] sm:$0xff]
      %v1743 = vld [vmem:[#allocation15] sm:$0xff]
      %v1744 = vld [vmem:[#allocation15 + $0x8] sm:$0xff]
      %v1745 = vld [vmem:[#allocation15 + $0x10] sm:$0xff]
      %v1746 = vld [vmem:[#allocation15 + $0x18] sm:$0xff]
      %v1748 = vsel %vm811, %v1738, 0
      %1750 = vmatprep.subr.mxu0 0.0
      %1751 = vmatpush1.msra.mxu0 %v1743
      %1752 = vmatprep.subr.mxu0 0.0
      %1753 = vmatpush1.msra.mxu0 %v1744
      %1754 = vmatprep.subr.mxu0 0.0
      %1755 = vmatpush1.msra.mxu0 %v1745
      %1756 = vmatprep.subr.mxu0 0.0
      %1757 = vmatpush1.msra.mxu0 %v1746
      %1758 = vmatprep.subr.mxu0 0.0
      %1759 = vmatpush1.msra.mxu0 0.0
      %1760 = vmatprep.subr.mxu0 0.0
      %1761 = vmatpush1.msra.mxu0 0.0
      %1762 = vmatprep.subr.mxu0 0.0
      %1763 = vmatpush1.msra.mxu0 0.0
      %1764 = vmatprep.subr.mxu0 0.0
      %1765 = vmatpush1.msra.mxu0 0.0
      %1766 = vmatprep.subr.mxu0 0.0
      %1767 = vmatpush1.msra.mxu0 0.0
      %1768 = vmatprep.subr.mxu0 0.0
      %1769 = vmatpush1.msra.mxu0 0.0
      %1770 = vmatprep.subr.mxu0 0.0
      %1771 = vmatpush1.msra.mxu0 0.0
      %1772 = vmatprep.subr.mxu0 0.0
      %1773 = vmatpush1.msra.mxu0 0.0
      %1774 = vmatprep.subr.mxu0 0.0
      %1775 = vmatpush1.msra.mxu0 0.0
      %1776 = vmatprep.subr.mxu0 0.0
      %1777 = vmatpush1.msra.mxu0 0.0
      %1778 = vmatprep.subr.mxu0 0.0
      %1779 = vmatpush1.msra.mxu0 0.0
      %1780 = vmatprep.subr.mxu0 0.0
      %1781 = vmatpush1.msra.mxu0 0.0
      %1782 = vmatprep.subr.mxu0 0.0
      %1783 = vmatpush1.msra.mxu0 0.0
      %1784 = vmatprep.subr.mxu0 0.0
      %1785 = vmatpush1.msra.mxu0 0.0
      %1786 = vmatprep.subr.mxu0 0.0
      %1787 = vmatpush1.msra.mxu0 0.0
      %1788 = vmatprep.subr.mxu0 0.0
      %1789 = vmatpush1.msra.mxu0 0.0
      %1790 = vmatprep.subr.mxu0 0.0
      %1791 = vmatpush1.msra.mxu0 0.0
      %1792 = vmatprep.subr.mxu0 0.0
      %1793 = vmatpush1.msra.mxu0 0.0
      %1794 = vmatprep.subr.mxu0 0.0
      %1795 = vmatpush1.msra.mxu0 0.0
      %1796 = vmatprep.subr.mxu0 0.0
      %1797 = vmatpush1.msra.mxu0 0.0
      %1798 = vmatprep.subr.mxu0 0.0
      %1799 = vmatpush1.msra.mxu0 0.0
      %1800 = vmatprep.subr.mxu0 0.0
      %1801 = vmatpush1.msra.mxu0 0.0
      %1802 = vmatprep.subr.mxu0 0.0
      %1803 = vmatpush1.msra.mxu0 0.0
      %1804 = vmatprep.subr.mxu0 0.0
      %1805 = vmatpush1.msra.mxu0 0.0
      %1806 = vmatprep.subr.mxu0 0.0
      %1807 = vmatpush1.msra.mxu0 0.0
      %1808 = vmatprep.subr.mxu0 0.0
      %1809 = vmatpush1.msra.mxu0 0.0
      %1810 = vmatprep.subr.mxu0 0.0
      %1811 = vmatpush1.msra.mxu0 0.0
      %1812 = vmatprep.subr.mxu0 0.0
      %1813 = vmatpush1.msra.mxu0 0.0
      %1814 = vmatprep.mubr.f32.mxu0 0.0
      %1815 = vmatmul.mubr.f32.gmra.mrb[0].mxu0 %v1748
      %v1816 = vpop.f32.mrb[0].mxu0
      %v1817 = vadd.f32 0.0, %v1816
      %v1818 = vpop.f32.mrb[0].mxu0
      %1819 = vdwg.mxu0
      %v1821 = vsel %vm811, %v1737, 0
      %1823 = vmatprep.subr.mxu0 0.0
      %1824 = vmatpush1.msra.mxu0 %v1739
      %1825 = vmatprep.subr.mxu0 0.0
      %1826 = vmatpush1.msra.mxu0 %v1740
      %1827 = vmatprep.subr.mxu0 0.0
      %1828 = vmatpush1.msra.mxu0 %v1741
      %1829 = vmatprep.subr.mxu0 0.0
      %1830 = vmatpush1.msra.mxu0 %v1742
      %1831 = vmatprep.subr.mxu0 0.0
      %1832 = vmatpush1.msra.mxu0 0.0
      %1833 = vmatprep.subr.mxu0 0.0
      %1834 = vmatpush1.msra.mxu0 0.0
      %1835 = vmatprep.subr.mxu0 0.0
      %1836 = vmatpush1.msra.mxu0 0.0
      %1837 = vmatprep.subr.mxu0 0.0
      %1838 = vmatpush1.msra.mxu0 0.0
      %1839 = vmatprep.subr.mxu0 0.0
      %1840 = vmatpush1.msra.mxu0 0.0
      %1841 = vmatprep.subr.mxu0 0.0
      %1842 = vmatpush1.msra.mxu0 0.0
      %1843 = vmatprep.subr.mxu0 0.0
      %1844 = vmatpush1.msra.mxu0 0.0
      %1845 = vmatprep.subr.mxu0 0.0
      %1846 = vmatpush1.msra.mxu0 0.0
      %1847 = vmatprep.subr.mxu0 0.0
      %1848 = vmatpush1.msra.mxu0 0.0
      %1849 = vmatprep.subr.mxu0 0.0
      %1850 = vmatpush1.msra.mxu0 0.0
      %1851 = vmatprep.subr.mxu0 0.0
      %1852 = vmatpush1.msra.mxu0 0.0
      %1853 = vmatprep.subr.mxu0 0.0
      %1854 = vmatpush1.msra.mxu0 0.0
      %1855 = vmatprep.subr.mxu0 0.0
      %1856 = vmatpush1.msra.mxu0 0.0
      %1857 = vmatprep.subr.mxu0 0.0
      %1858 = vmatpush1.msra.mxu0 0.0
      %1859 = vmatprep.subr.mxu0 0.0
      %1860 = vmatpush1.msra.mxu0 0.0
      %1861 = vmatprep.subr.mxu0 0.0
      %1862 = vmatpush1.msra.mxu0 0.0
      %1863 = vmatprep.subr.mxu0 0.0
      %1864 = vmatpush1.msra.mxu0 0.0
      %1865 = vmatprep.subr.mxu0 0.0
      %1866 = vmatpush1.msra.mxu0 0.0
      %1867 = vmatprep.subr.mxu0 0.0
      %1868 = vmatpush1.msra.mxu0 0.0
      %1869 = vmatprep.subr.mxu0 0.0
      %1870 = vmatpush1.msra.mxu0 0.0
      %1871 = vmatprep.subr.mxu0 0.0
      %1872 = vmatpush1.msra.mxu0 0.0
      %1873 = vmatprep.subr.mxu0 0.0
      %1874 = vmatpush1.msra.mxu0 0.0
      %1875 = vmatprep.subr.mxu0 0.0
      %1876 = vmatpush1.msra.mxu0 0.0
      %1877 = vmatprep.subr.mxu0 0.0
      %1878 = vmatpush1.msra.mxu0 0.0
      %1879 = vmatprep.subr.mxu0 0.0
      %1880 = vmatpush1.msra.mxu0 0.0
      %1881 = vmatprep.subr.mxu0 0.0
      %1882 = vmatpush1.msra.mxu0 0.0
      %1883 = vmatprep.subr.mxu0 0.0
      %1884 = vmatpush1.msra.mxu0 0.0
      %1885 = vmatprep.subr.mxu0 0.0
      %1886 = vmatpush1.msra.mxu0 0.0
      %1887 = vmatprep.mubr.f32.mxu0 0.0
      %1888 = vmatmul.mubr.f32.gmra.mrb[0].mxu0 %v1821
      %v1889 = vpop.f32.mrb[0].mxu0
      %v1890 = vadd.f32 %v1817, %v1889
      %v1891 = vpop.f32.mrb[0].mxu0
      %1892 = vdwg.mxu0
      %v1893 = vld [vmem:[#allocation17] sm:$0x1]
      %v1894 = vlaneseq
      %v1895 = vshrl.u32 %v1894, 7
      %v1896 = vsub.s32 0, %v1895
      %v1897 = vrot.slane %v1893, %v1896
      %v1898 = vadd.f32 %v1890, %v1897
      %v1899 = vmul.f32 %v1898, 0.5
      %v1900 = vtanh.pop %v1899
      %v1901 = vadd.f32 %v1900, 1.0
      %v1902 = vmul.f32 %v1901, 0.5
      %s1903 = scalar_lea.vmem [#allocation14], 32
      %v1904 = vld [vmem:[%s1903] sm:$0xff]
      %v1905 = vld [vmem:[%s1903 + $0x8] sm:$0xff]
      %v1906 = vld [vmem:[%s1903 + $0x10] sm:$0xff]
      %v1907 = vld [vmem:[%s1903 + $0x18] sm:$0xff]
      %s1908 = scalar_lea.vmem [#allocation15], 32
      %v1909 = vld [vmem:[%s1908] sm:$0xff]
      %v1910 = vld [vmem:[%s1908 + $0x8] sm:$0xff]
      %v1911 = vld [vmem:[%s1908 + $0x10] sm:$0xff]
      %v1912 = vld [vmem:[%s1908 + $0x18] sm:$0xff]
      %1913 = vmatprep.subr.mxu0 0.0
      %1914 = vmatpush1.msra.mxu0 %v1909
      %1915 = vmatprep.subr.mxu0 0.0
      %1916 = vmatpush1.msra.mxu0 %v1910
      %1917 = vmatprep.subr.mxu0 0.0
      %1918 = vmatpush1.msra.mxu0 %v1911
      %1919 = vmatprep.subr.mxu0 0.0
      %1920 = vmatpush1.msra.mxu0 %v1912
      %1921 = vmatprep.subr.mxu0 0.0
      %1922 = vmatpush1.msra.mxu0 0.0
      %1923 = vmatprep.subr.mxu0 0.0
      %1924 = vmatpush1.msra.mxu0 0.0
      %1925 = vmatprep.subr.mxu0 0.0
      %1926 = vmatpush1.msra.mxu0 0.0
      %1927 = vmatprep.subr.mxu0 0.0
      %1928 = vmatpush1.msra.mxu0 0.0
      %1929 = vmatprep.subr.mxu0 0.0
      %1930 = vmatpush1.msra.mxu0 0.0
      %1931 = vmatprep.subr.mxu0 0.0
      %1932 = vmatpush1.msra.mxu0 0.0
      %1933 = vmatprep.subr.mxu0 0.0
      %1934 = vmatpush1.msra.mxu0 0.0
      %1935 = vmatprep.subr.mxu0 0.0
      %1936 = vmatpush1.msra.mxu0 0.0
      %1937 = vmatprep.subr.mxu0 0.0
      %1938 = vmatpush1.msra.mxu0 0.0
      %1939 = vmatprep.subr.mxu0 0.0
      %1940 = vmatpush1.msra.mxu0 0.0
      %1941 = vmatprep.subr.mxu0 0.0
      %1942 = vmatpush1.msra.mxu0 0.0
      %1943 = vmatprep.subr.mxu0 0.0
      %1944 = vmatpush1.msra.mxu0 0.0
      %1945 = vmatprep.subr.mxu0 0.0
      %1946 = vmatpush1.msra.mxu0 0.0
      %1947 = vmatprep.subr.mxu0 0.0
      %1948 = vmatpush1.msra.mxu0 0.0
      %1949 = vmatprep.subr.mxu0 0.0
      %1950 = vmatpush1.msra.mxu0 0.0
      %1951 = vmatprep.subr.mxu0 0.0
      %1952 = vmatpush1.msra.mxu0 0.0
      %1953 = vmatprep.subr.mxu0 0.0
      %1954 = vmatpush1.msra.mxu0 0.0
      %1955 = vmatprep.subr.mxu0 0.0
      %1956 = vmatpush1.msra.mxu0 0.0
      %1957 = vmatprep.subr.mxu0 0.0
      %1958 = vmatpush1.msra.mxu0 0.0
      %1959 = vmatprep.subr.mxu0 0.0
      %1960 = vmatpush1.msra.mxu0 0.0
      %1961 = vmatprep.subr.mxu0 0.0
      %1962 = vmatpush1.msra.mxu0 0.0
      %1963 = vmatprep.subr.mxu0 0.0
      %1964 = vmatpush1.msra.mxu0 0.0
      %1965 = vmatprep.subr.mxu0 0.0
      %1966 = vmatpush1.msra.mxu0 0.0
      %1967 = vmatprep.subr.mxu0 0.0
      %1968 = vmatpush1.msra.mxu0 0.0
      %1969 = vmatprep.subr.mxu0 0.0
      %1970 = vmatpush1.msra.mxu0 0.0
      %1971 = vmatprep.subr.mxu0 0.0
      %1972 = vmatpush1.msra.mxu0 0.0
      %1973 = vmatprep.subr.mxu0 0.0
      %1974 = vmatpush1.msra.mxu0 0.0
      %1975 = vmatprep.subr.mxu0 0.0
      %1976 = vmatpush1.msra.mxu0 0.0
      %1977 = vmatprep.mubr.f32.mxu0 0.0
      %1978 = vmatmul.mubr.f32.gmra.mrb[0].mxu0 %v1748
      %v1979 = vpop.f32.mrb[0].mxu0
      %v1980 = vadd.f32 0.0, %v1979
      %v1981 = vpop.f32.mrb[0].mxu0
      %1982 = vdwg.mxu0
      %1983 = vmatprep.subr.mxu0 0.0
      %1984 = vmatpush1.msra.mxu0 %v1904
      %1985 = vmatprep.subr.mxu0 0.0
      %1986 = vmatpush1.msra.mxu0 %v1905
      %1987 = vmatprep.subr.mxu0 0.0
      %1988 = vmatpush1.msra.mxu0 %v1906
      %1989 = vmatprep.subr.mxu0 0.0
      %1990 = vmatpush1.msra.mxu0 %v1907
      %1991 = vmatprep.subr.mxu0 0.0
      %1992 = vmatpush1.msra.mxu0 0.0
      %1993 = vmatprep.subr.mxu0 0.0
      %1994 = vmatpush1.msra.mxu0 0.0
      %1995 = vmatprep.subr.mxu0 0.0
      %1996 = vmatpush1.msra.mxu0 0.0
      %1997 = vmatprep.subr.mxu0 0.0
      %1998 = vmatpush1.msra.mxu0 0.0
      %1999 = vmatprep.subr.mxu0 0.0
      %2000 = vmatpush1.msra.mxu0 0.0
      %2001 = vmatprep.subr.mxu0 0.0
      %2002 = vmatpush1.msra.mxu0 0.0
      %2003 = vmatprep.subr.mxu0 0.0
      %2004 = vmatpush1.msra.mxu0 0.0
      %2005 = vmatprep.subr.mxu0 0.0
      %2006 = vmatpush1.msra.mxu0 0.0
      %2007 = vmatprep.subr.mxu0 0.0
      %2008 = vmatpush1.msra.mxu0 0.0
      %2009 = vmatprep.subr.mxu0 0.0
      %2010 = vmatpush1.msra.mxu0 0.0
      %2011 = vmatprep.subr.mxu0 0.0
      %2012 = vmatpush1.msra.mxu0 0.0
      %2013 = vmatprep.subr.mxu0 0.0
      %2014 = vmatpush1.msra.mxu0 0.0
      %2015 = vmatprep.subr.mxu0 0.0
      %2016 = vmatpush1.msra.mxu0 0.0
      %2017 = vmatprep.subr.mxu0 0.0
      %2018 = vmatpush1.msra.mxu0 0.0
      %2019 = vmatprep.subr.mxu0 0.0
      %2020 = vmatpush1.msra.mxu0 0.0
      %2021 = vmatprep.subr.mxu0 0.0
      %2022 = vmatpush1.msra.mxu0 0.0
      %2023 = vmatprep.subr.mxu0 0.0
      %2024 = vmatpush1.msra.mxu0 0.0
      %2025 = vmatprep.subr.mxu0 0.0
      %2026 = vmatpush1.msra.mxu0 0.0
      %2027 = vmatprep.subr.mxu0 0.0
      %2028 = vmatpush1.msra.mxu0 0.0
      %2029 = vmatprep.subr.mxu0 0.0
      %2030 = vmatpush1.msra.mxu0 0.0
      %2031 = vmatprep.subr.mxu0 0.0
      %2032 = vmatpush1.msra.mxu0 0.0
      %2033 = vmatprep.subr.mxu0 0.0
      %2034 = vmatpush1.msra.mxu0 0.0
      %2035 = vmatprep.subr.mxu0 0.0
      %2036 = vmatpush1.msra.mxu0 0.0
      %2037 = vmatprep.subr.mxu0 0.0
      %2038 = vmatpush1.msra.mxu0 0.0
      %2039 = vmatprep.subr.mxu0 0.0
      %2040 = vmatpush1.msra.mxu0 0.0
      %2041 = vmatprep.subr.mxu0 0.0
      %2042 = vmatpush1.msra.mxu0 0.0
      %2043 = vmatprep.subr.mxu0 0.0
      %2044 = vmatpush1.msra.mxu0 0.0
      %2045 = vmatprep.subr.mxu0 0.0
      %2046 = vmatpush1.msra.mxu0 0.0
      %2047 = vmatprep.mubr.f32.mxu0 0.0
      %2048 = vmatmul.mubr.f32.gmra.mrb[0].mxu0 %v1821
      %v2049 = vpop.f32.mrb[0].mxu0
      %v2050 = vadd.f32 %v1980, %v2049
      %v2051 = vpop.f32.mrb[0].mxu0
      %2052 = vdwg.mxu0
      %v2053 = vld [vmem:[#allocation17 + $0x1] sm:$0x1]
      %v2054 = vlaneseq
      %v2055 = vshrl.u32 %v2054, 7
      %v2056 = vsub.s32 0, %v2055
      %v2057 = vrot.slane %v2053, %v2056
      %v2058 = vadd.f32 %v2050, %v2057
      %v2059 = vmul.f32 %v2058, 0.5
      %v2060 = vtanh.pop %v2059
      %v2061 = vadd.f32 %v2060, 1.0
      %v2062 = vmul.f32 %v2061, 0.5
      %s2063 = scalar_lea.vmem [#allocation14], 64
      %v2064 = vld [vmem:[%s2063] sm:$0xff]
      %v2065 = vld [vmem:[%s2063 + $0x8] sm:$0xff]
      %v2066 = vld [vmem:[%s2063 + $0x10] sm:$0xff]
      %v2067 = vld [vmem:[%s2063 + $0x18] sm:$0xff]
      %v2068 = vld [vmem:[#allocation17 + $0x2] sm:$0x1]
      %v2069 = vlaneseq
      %v2070 = vshrl.u32 %v2069, 7
      %v2071 = vsub.s32 0, %v2070
      %v2072 = vrot.slane %v2068, %v2071
      %2073 = vmatprep.subr.mxu0 0.0
      %2074 = vmatpush1.msra.mxu0 %v2064
      %2075 = vmatprep.subr.mxu0 0.0
      %2076 = vmatpush1.msra.mxu0 %v2065
      %2077 = vmatprep.subr.mxu0 0.0
      %2078 = vmatpush1.msra.mxu0 %v2066
      %2079 = vmatprep.subr.mxu0 0.0
      %2080 = vmatpush1.msra.mxu0 %v2067
      %2081 = vmatprep.subr.mxu0 0.0
      %2082 = vmatpush1.msra.mxu0 0.0
      %2083 = vmatprep.subr.mxu0 0.0
      %2084 = vmatpush1.msra.mxu0 0.0
      %2085 = vmatprep.subr.mxu0 0.0
      %2086 = vmatpush1.msra.mxu0 0.0
      %2087 = vmatprep.subr.mxu0 0.0
      %2088 = vmatpush1.msra.mxu0 0.0
      %2089 = vmatprep.subr.mxu0 0.0
      %2090 = vmatpush1.msra.mxu0 0.0
      %2091 = vmatprep.subr.mxu0 0.0
      %2092 = vmatpush1.msra.mxu0 0.0
      %2093 = vmatprep.subr.mxu0 0.0
      %2094 = vmatpush1.msra.mxu0 0.0
      %2095 = vmatprep.subr.mxu0 0.0
      %2096 = vmatpush1.msra.mxu0 0.0
      %2097 = vmatprep.subr.mxu0 0.0
      %2098 = vmatpush1.msra.mxu0 0.0
      %2099 = vmatprep.subr.mxu0 0.0
      %2100 = vmatpush1.msra.mxu0 0.0
      %2101 = vmatprep.subr.mxu0 0.0
      %2102 = vmatpush1.msra.mxu0 0.0
      %2103 = vmatprep.subr.mxu0 0.0
      %2104 = vmatpush1.msra.mxu0 0.0
      %2105 = vmatprep.subr.mxu0 0.0
      %2106 = vmatpush1.msra.mxu0 0.0
      %2107 = vmatprep.subr.mxu0 0.0
      %2108 = vmatpush1.msra.mxu0 0.0
      %2109 = vmatprep.subr.mxu0 0.0
      %2110 = vmatpush1.msra.mxu0 0.0
      %2111 = vmatprep.subr.mxu0 0.0
      %2112 = vmatpush1.msra.mxu0 0.0
      %2113 = vmatprep.subr.mxu0 0.0
      %2114 = vmatpush1.msra.mxu0 0.0
      %2115 = vmatprep.subr.mxu0 0.0
      %2116 = vmatpush1.msra.mxu0 0.0
      %2117 = vmatprep.subr.mxu0 0.0
      %2118 = vmatpush1.msra.mxu0 0.0
      %2119 = vmatprep.subr.mxu0 0.0
      %2120 = vmatpush1.msra.mxu0 0.0
      %2121 = vmatprep.subr.mxu0 0.0
      %2122 = vmatpush1.msra.mxu0 0.0
      %2123 = vmatprep.subr.mxu0 0.0
      %2124 = vmatpush1.msra.mxu0 0.0
      %2125 = vmatprep.subr.mxu0 0.0
      %2126 = vmatpush1.msra.mxu0 0.0
      %2127 = vmatprep.subr.mxu0 0.0
      %2128 = vmatpush1.msra.mxu0 0.0
      %2129 = vmatprep.subr.mxu0 0.0
      %2130 = vmatpush1.msra.mxu0 0.0
      %2131 = vmatprep.subr.mxu0 0.0
      %2132 = vmatpush1.msra.mxu0 0.0
      %2133 = vmatprep.subr.mxu0 0.0
      %2134 = vmatpush1.msra.mxu0 0.0
      %2135 = vmatprep.subr.mxu0 0.0
      %2136 = vmatpush1.msra.mxu0 0.0
      %2137 = vmatprep.mubr.f32.mxu0 0.0
      %2138 = vmatmul.mubr.f32.gmra.mrb[0].mxu0 %v1821
      %v2139 = vpop.f32.mrb[0].mxu0
      %v2140 = vadd.f32 %v2072, %v2139
      %v2141 = vpop.f32.mrb[0].mxu0
      %2142 = vdwg.mxu0
      %s2143 = scalar_lea.vmem [#allocation15], 64
      %v2144 = vld [vmem:[%s2143] sm:$0xff]
      %v2145 = vld [vmem:[%s2143 + $0x8] sm:$0xff]
      %v2146 = vld [vmem:[%s2143 + $0x10] sm:$0xff]
      %v2147 = vld [vmem:[%s2143 + $0x18] sm:$0xff]
      %v2148 = vld [vmem:[#allocation17 + $0x3] sm:$0x1]
      %v2149 = vlaneseq
      %v2150 = vshrl.u32 %v2149, 7
      %v2151 = vsub.s32 0, %v2150
      %v2152 = vrot.slane %v2148, %v2151
      %2153 = vmatprep.subr.mxu0 0.0
      %2154 = vmatpush1.msra.mxu0 %v2144
      %2155 = vmatprep.subr.mxu0 0.0
      %2156 = vmatpush1.msra.mxu0 %v2145
      %2157 = vmatprep.subr.mxu0 0.0
      %2158 = vmatpush1.msra.mxu0 %v2146
      %2159 = vmatprep.subr.mxu0 0.0
      %2160 = vmatpush1.msra.mxu0 %v2147
      %2161 = vmatprep.subr.mxu0 0.0
      %2162 = vmatpush1.msra.mxu0 0.0
      %2163 = vmatprep.subr.mxu0 0.0
      %2164 = vmatpush1.msra.mxu0 0.0
      %2165 = vmatprep.subr.mxu0 0.0
      %2166 = vmatpush1.msra.mxu0 0.0
      %2167 = vmatprep.subr.mxu0 0.0
      %2168 = vmatpush1.msra.mxu0 0.0
      %2169 = vmatprep.subr.mxu0 0.0
      %2170 = vmatpush1.msra.mxu0 0.0
      %2171 = vmatprep.subr.mxu0 0.0
      %2172 = vmatpush1.msra.mxu0 0.0
      %2173 = vmatprep.subr.mxu0 0.0
      %2174 = vmatpush1.msra.mxu0 0.0
      %2175 = vmatprep.subr.mxu0 0.0
      %2176 = vmatpush1.msra.mxu0 0.0
      %2177 = vmatprep.subr.mxu0 0.0
      %2178 = vmatpush1.msra.mxu0 0.0
      %2179 = vmatprep.subr.mxu0 0.0
      %2180 = vmatpush1.msra.mxu0 0.0
      %2181 = vmatprep.subr.mxu0 0.0
      %2182 = vmatpush1.msra.mxu0 0.0
      %2183 = vmatprep.subr.mxu0 0.0
      %2184 = vmatpush1.msra.mxu0 0.0
      %2185 = vmatprep.subr.mxu0 0.0
      %2186 = vmatpush1.msra.mxu0 0.0
      %2187 = vmatprep.subr.mxu0 0.0
      %2188 = vmatpush1.msra.mxu0 0.0
      %2189 = vmatprep.subr.mxu0 0.0
      %2190 = vmatpush1.msra.mxu0 0.0
      %2191 = vmatprep.subr.mxu0 0.0
      %2192 = vmatpush1.msra.mxu0 0.0
      %2193 = vmatprep.subr.mxu0 0.0
      %2194 = vmatpush1.msra.mxu0 0.0
      %2195 = vmatprep.subr.mxu0 0.0
      %2196 = vmatpush1.msra.mxu0 0.0
      %2197 = vmatprep.subr.mxu0 0.0
      %2198 = vmatpush1.msra.mxu0 0.0
      %2199 = vmatprep.subr.mxu0 0.0
      %2200 = vmatpush1.msra.mxu0 0.0
      %2201 = vmatprep.subr.mxu0 0.0
      %2202 = vmatpush1.msra.mxu0 0.0
      %2203 = vmatprep.subr.mxu0 0.0
      %2204 = vmatpush1.msra.mxu0 0.0
      %2205 = vmatprep.subr.mxu0 0.0
      %2206 = vmatpush1.msra.mxu0 0.0
      %2207 = vmatprep.subr.mxu0 0.0
      %2208 = vmatpush1.msra.mxu0 0.0
      %2209 = vmatprep.subr.mxu0 0.0
      %2210 = vmatpush1.msra.mxu0 0.0
      %2211 = vmatprep.subr.mxu0 0.0
      %2212 = vmatpush1.msra.mxu0 0.0
      %2213 = vmatprep.subr.mxu0 0.0
      %2214 = vmatpush1.msra.mxu0 0.0
      %2215 = vmatprep.subr.mxu0 0.0
      %2216 = vmatpush1.msra.mxu0 0.0
      %2217 = vmatprep.mubr.f32.mxu0 0.0
      %2218 = vmatmul.mubr.f32.gmra.mrb[0].mxu0 %v1748
      %v2219 = vpop.f32.mrb[0].mxu0
      %v2220 = vadd.f32 %v2152, %v2219
      %v2221 = vpop.f32.mrb[0].mxu0
      %2222 = vdwg.mxu0
      %v2223 = vmul.f32 %v1902, %v2220
      %v2224 = vadd.f32 %v2140, %v2223
      %v2225 = vtanh.pop %v2224
      %v2226 = vsub.f32 1.0, %v2062
      %v2227 = vmul.f32 %v2226, %v2225
      %v2228 = vmul.f32 %v2062, %v1738
      %v2229 = vadd.f32 %v2227, %v2228
      %2230 = vst.msk [vmem:[%s22] sm:$0x3] %vm1067, %v2229
      %v2231 = vadd.f32 %v1737, %v2229
      %v2232 = vld [vmem:[#allocation23] sm:$0xff]
      %v2233 = vld [vmem:[#allocation23 + $0x8] sm:$0xff]
      %v2234 = vld [vmem:[#allocation23 + $0x10] sm:$0xff]
      %v2235 = vld [vmem:[#allocation23 + $0x18] sm:$0xff]
      %v2236 = vld [vmem:[#allocation24] sm:$0x1]
      %v2238 = vlaneseq
      %v2239 = vshrl.u32 %v2238, 7
      %v2240 = vsub.s32 0, %v2239
      %v2241 = vrot.slane %v2236, %v2240
      %v2244 = vsel %vm811, %v2231, 0
      %2246 = vmatprep.subr.mxu0 0.0
      %2247 = vmatpush1.msra.mxu0 %v2232
      %2248 = vmatprep.subr.mxu0 0.0
      %2249 = vmatpush1.msra.mxu0 %v2233
      %2250 = vmatprep.subr.mxu0 0.0
      %2251 = vmatpush1.msra.mxu0 %v2234
      %2252 = vmatprep.subr.mxu0 0.0
      %2253 = vmatpush1.msra.mxu0 %v2235
      %2254 = vmatprep.subr.mxu0 0.0
      %2255 = vmatpush1.msra.mxu0 0.0
      %2256 = vmatprep.subr.mxu0 0.0
      %2257 = vmatpush1.msra.mxu0 0.0
      %2258 = vmatprep.subr.mxu0 0.0
      %2259 = vmatpush1.msra.mxu0 0.0
      %2260 = vmatprep.subr.mxu0 0.0
      %2261 = vmatpush1.msra.mxu0 0.0
      %2262 = vmatprep.subr.mxu0 0.0
      %2263 = vmatpush1.msra.mxu0 0.0
      %2264 = vmatprep.subr.mxu0 0.0
      %2265 = vmatpush1.msra.mxu0 0.0
      %2266 = vmatprep.subr.mxu0 0.0
      %2267 = vmatpush1.msra.mxu0 0.0
      %2268 = vmatprep.subr.mxu0 0.0
      %2269 = vmatpush1.msra.mxu0 0.0
      %2270 = vmatprep.subr.mxu0 0.0
      %2271 = vmatpush1.msra.mxu0 0.0
      %2272 = vmatprep.subr.mxu0 0.0
      %2273 = vmatpush1.msra.mxu0 0.0
      %2274 = vmatprep.subr.mxu0 0.0
      %2275 = vmatpush1.msra.mxu0 0.0
      %2276 = vmatprep.subr.mxu0 0.0
      %2277 = vmatpush1.msra.mxu0 0.0
      %2278 = vmatprep.subr.mxu0 0.0
      %2279 = vmatpush1.msra.mxu0 0.0
      %2280 = vmatprep.subr.mxu0 0.0
      %2281 = vmatpush1.msra.mxu0 0.0
      %2282 = vmatprep.subr.mxu0 0.0
      %2283 = vmatpush1.msra.mxu0 0.0
      %2284 = vmatprep.subr.mxu0 0.0
      %2285 = vmatpush1.msra.mxu0 0.0
      %2286 = vmatprep.subr.mxu0 0.0
      %2287 = vmatpush1.msra.mxu0 0.0
      %2288 = vmatprep.subr.mxu0 0.0
      %2289 = vmatpush1.msra.mxu0 0.0
      %2290 = vmatprep.subr.mxu0 0.0
      %2291 = vmatpush1.msra.mxu0 0.0
      %2292 = vmatprep.subr.mxu0 0.0
      %2293 = vmatpush1.msra.mxu0 0.0
      %2294 = vmatprep.subr.mxu0 0.0
      %2295 = vmatpush1.msra.mxu0 0.0
      %2296 = vmatprep.subr.mxu0 0.0
      %2297 = vmatpush1.msra.mxu0 0.0
      %2298 = vmatprep.subr.mxu0 0.0
      %2299 = vmatpush1.msra.mxu0 0.0
      %2300 = vmatprep.subr.mxu0 0.0
      %2301 = vmatpush1.msra.mxu0 0.0
      %2302 = vmatprep.subr.mxu0 0.0
      %2303 = vmatpush1.msra.mxu0 0.0
      %2304 = vmatprep.subr.mxu0 0.0
      %2305 = vmatpush1.msra.mxu0 0.0
      %2306 = vmatprep.subr.mxu0 0.0
      %2307 = vmatpush1.msra.mxu0 0.0
      %2308 = vmatprep.subr.mxu0 0.0
      %2309 = vmatpush1.msra.mxu0 0.0
      %2310 = vmatprep.mubr.f32.mxu0 0.0
      %2311 = vmatmul.mubr.f32.gmra.mrb[0].mxu0 %v2244
      %v2312 = vpop.f32.mrb[0].mxu0
      %v2313 = vadd.f32 %v2241, %v2312
      %v2314 = vpop.f32.mrb[0].mxu0
      %2315 = vdwg.mxu0
      %2316 = vst [vmem:[%s19] sm:$0x3] %v2313
    $region133: #{attention_decoder.1} parent=1 // pred_fallthru
      _
    // Predicated region
    $region134: #{attention_decoder.1} parent=1 // pred_check
      _
    $region135: #{attention_decoder.1} parent=1 // pred_check_branch
      %2318 = sbr.rel (0) target = $region137
    $region136: #{attention_decoder.1} parent=1 // pred_region
      _
    $region137: #{attention_decoder.1} parent=1 // pred_fallthru
      _
    // Predicated region
    $region138: #{attention_decoder.1} parent=1 // pred_check
      _
    $region139: #{attention_decoder.1} parent=1 // pred_check_branch
      %2320 = sbr.rel (0) target = $region141
    $region140: #{attention_decoder.1} parent=1 // pred_region
      _
    $region141: #{attention_decoder.1} parent=1 // pred_fallthru
      _
    // Predicated region
    $region142: #{attention_decoder.1} parent=1 // pred_check
      _
    $region143: #{attention_decoder.1} parent=1 // pred_check_branch
      %2322 = sbr.rel (0) target = $region145
    $region144: #{attention_decoder.1} parent=1 // pred_region
      _
    $region145: #{attention_decoder.1} parent=1 // pred_fallthru
      _
    // Predicated region
    $region146: #{attention_decoder.1} parent=1 // pred_check
      _
    $region147: #{attention_decoder.1} parent=1 // pred_check_branch
      %2324 = sbr.rel (0) target = $region149
    $region148: #{attention_decoder.1} parent=1 // pred_region
      _
    $region149: #{attention_decoder.1} parent=1 // pred_fallthru
      _
    // Predicated region
    $region150: #{attention_decoder.1} parent=1 // pred_check
      _
    $region151: #{attention_decoder.1} parent=1 // pred_check_branch
      %2326 = sbr.rel (0) target = $region153
    $region152: #{attention_decoder.1} parent=1 // pred_region
      _
    $region153: #{attention_decoder.1} parent=1 // pred_fallthru
      _
    // Predicated region
    $region154: #{attention_decoder.1} parent=1 // pred_check
      _
    $region155: #{attention_decoder.1} parent=1 // pred_check_branch
      %2328 = sbr.rel (0) target = $region157
    $region156: #{attention_decoder.1} parent=1 // pred_region
      _
    $region157: #{attention_decoder.1} parent=1 // pred_fallthru
      _
    // Predicated region
    $region158: #{attention_decoder.1} parent=1 // pred_check
      _
    $region159: #{attention_decoder.1} parent=1 // pred_check_branch
      %2330 = sbr.rel (0) target = $region161
    $region160: #{attention_decoder.1} parent=1 // pred_region
      _
    $region161: #{attention_decoder.1} parent=1 // pred_fallthru
      _
    // Predicated region
    $region162: #{attention_decoder.1} parent=1 // pred_check
      _
    $region163: #{attention_decoder.1} parent=1 // pred_check_branch
      %2332 = sbr.rel (0) target = $region165
    $region164: #{attention_decoder.1} parent=1 // pred_region
      _
    $region165: #{attention_decoder.1} parent=1 // pred_fallthru
      _
    %2333 = vsyncpa [#allocation8], 1
    %2334 = vsyncpa [#allocation10], 1
    %2335 = vsyncpa [#allocation13], 1
    %2336 = vsyncpa [#allocation16], 1
    %2337 = vsyncpa [#allocation19], 1
    %2338 = vsyncpa [#allocation22], 1
    %2339 = vsyncpa [#allocation25], 1

</llo_original>
